<compile_context>
chip_gen: v5e
topology: v5e:2x2
jax: 0.10.0
libtpu: 0.0.40
codegen_flags: <defaults>
</compile_context>

<pallas_src>
import functools

import jax
import jax.numpy as jnp
from jax.experimental import pallas as pl
from jax.experimental.pallas import tpu as pltpu


def _dyn_attn_kernel(x_ref, wqkv_t_ref, wproj_t_ref, bproj_ref,
                     out_ref, vis_ref, qkv_scr, y_scr, *,
                     num_heads, head_dim, batch_block, seq_len):
    """One grid step handles one block of `batch_block` batch elements.

    x_ref:       (Bt*N, C)  compute dtype    wqkv_t_ref: (C, 3C)  (scale folded into q cols)
    wproj_t_ref: (C, C)                      bproj_ref:  (1, C)   f32
    out_ref:     (Bt*N, C)                   vis_ref:    (1, N, N) f32 (sum of attn over Bt, H)
    qkv_scr:     (Bt*N, 3C) compute dtype    y_scr:      (Bt*N, C) compute dtype
    """
    H, hd, N, Bt = num_heads, head_dim, seq_len, batch_block
    C = H * hd

    # Fused qkv projection on the MXU: input-dtype operands, f32 accumulation,
    # result staged back at the compute dtype (halves live VMEM for bf16).
    qkv_f32 = jnp.dot(x_ref[...], wqkv_t_ref[...],
                      preferred_element_type=jnp.float32)        # (Bt*N, 3C)
    qkv_scr[...] = qkv_f32.astype(qkv_scr.dtype)

    vis_acc = jnp.zeros((N, N), dtype=jnp.float32)

    for h in range(H):          # static unroll over heads; math batched over Bt
        lo = h * hd
        # Slice q/k/v per head from the VMEM scratch ref (static offsets) so the
        # lane offset is applied at load time rather than via value relayouts.
        qh = qkv_scr[:, lo:lo + hd].reshape(Bt, N, hd)
        kh = qkv_scr[:, C + lo:C + lo + hd].reshape(Bt, N, hd)
        vh = qkv_scr[:, 2 * C + lo:2 * C + lo + hd].reshape(Bt, N, hd)

        # q k^T: input-dtype operands, f32 accumulation (1/sqrt(hd) scale is
        # folded into the q columns of Wqkv in the wrapper).
        s = jnp.einsum('bnd,bmd->bnm', qh, kh,
                       preferred_element_type=jnp.float32)       # (Bt, N, N) f32
        s = s - jnp.max(s, axis=-1, keepdims=True)
        p = jnp.exp(s)
        # approx reciprocal runs on the EUP slot; ~1e-3 relative error in the
        # softmax normalisation (documented; acceptable for this inference path).
        a = p * pl.reciprocal(jnp.sum(p, axis=-1, keepdims=True), approx=True)
        # attn_drop is identity (p=0.0)

        vis_acc = vis_acc + jnp.sum(a, axis=0)                   # partial sum over Bt

        oh = jnp.einsum('bnm,bmd->bnd', a.astype(vh.dtype), vh,
                        preferred_element_type=jnp.float32)      # (Bt, N, hd) f32
        # Stage this head's output in its lane slot; the output projection is
        # done ONCE after the loop with K=C (fills the MXU contraction depth).
        y_scr[:, lo:lo + hd] = oh.reshape(Bt * N, hd).astype(y_scr.dtype)

    y = jnp.dot(y_scr[...], wproj_t_ref[...],
                preferred_element_type=jnp.float32)              # (Bt*N, C) f32
    y = y + bproj_ref[...]                                       # broadcast (1, C)
    # proj_drop is identity (p=0.0)
    out_ref[...] = y.astype(out_ref.dtype)
    vis_ref[0] = vis_acc


def _vmem_budget_bytes():
    """Per-generation VMEM budget: ~80% of physical capacity (headroom for
    compiler-internal scratch); conservative 64 MiB fallback if the query is
    unavailable (still safe on v7x's 64 MiB parts)."""
    try:
        cap = int(pltpu.get_tpu_info().vmem_capacity_bytes)
    except Exception:                      # pragma: no cover - query unavailable
        cap = 64 << 20
    return int(cap * 0.80)


def _pick_batch_block(B, N, C, in_bytes, budget):
    """Largest batch fold whose modelled per-step VMEM footprint fits `budget`,
    keeping >=2 grid steps when possible (both v7x TensorCores get work on the
    single 'parallel' axis) and respecting (8,128) block tiling of (Bt*N, C)."""
    def footprint(bt):
        rows = bt * N
        x_blk   = rows * C * in_bytes * 2                 # double-buffered input
        out_blk = rows * C * in_bytes * 2                 # double-buffered output
        vis_blk = N * N * 4 * 2                           # double-buffered vis partial
        weights = (3 * C * C + C * C + C) * in_bytes * 2  # worst case: double-buffered
        qkv_scr = rows * 3 * C * in_bytes                 # VMEM scratch (single buffer)
        y_scr   = rows * C * in_bytes
        qkv_f32 = rows * 3 * C * 4                        # transient f32 before the cast
        smax    = 3 * bt * N * N * 4                      # ~3 live (Bt, N, N) f32 temps
        return (x_blk + out_blk + vis_blk + weights
                + qkv_scr + y_scr + qkv_f32 + smax)

    valid = [bt for bt in range(1, B + 1)
             if B % bt == 0 and (bt == B or (bt * N) % 8 == 0)]
    multi = [bt for bt in valid if B // bt >= 2]          # >=2 grid steps if possible
    cands = multi if multi else valid
    fits = [bt for bt in cands if footprint(bt) <= budget]
    if fits:
        return max(fits)
    # Even the smallest fold exceeds the modelled budget (softmax temporaries
    # dominate at large N) -- proceed with the smallest candidate.
    # TODO(synk): KV-block online-softmax path for N where (N, N) f32 tiles no
    # longer fit VMEM (earliest on v7x around N~2k).
    return min(cands)


def dynamic_attention(x, wqkv, wproj, bproj, *, num_heads, batch_block=None):
    """Forward of Dynamic_Attention (ft=False, N>1). Returns (out, vis_attn)."""
    B, N, C = x.shape
    assert C % num_heads == 0
    head_dim = C // num_heads
    scale = head_dim ** (-0.5)
    cdt = x.dtype                                   # compute dtype fed to the MXU

    budget = _vmem_budget_bytes()
    in_bytes = jnp.dtype(cdt).itemsize
    Bt = (_pick_batch_block(B, N, C, in_bytes, budget)
          if batch_block is None else batch_block)
    assert B % Bt == 0
    G = B // Bt

    # Wrapper-side layout prep (one-time XLA ops, hoisted out of the kernel):
    #   - pre-transpose weights (no in-kernel .T / XLU vxpose)
    #   - fold the attention scale into the q columns of the fused qkv weight
    #   - cast weights to the activation dtype so the MXU sees input-dtype
    #     operands (bf16 on bf16 activations); accumulation stays f32 in-kernel
    #   - present x / out as lane-oriented 2-D (B*N, C) slabs
    wqkv_t = wqkv.T                                               # (C, 3C)
    wqkv_t = jnp.concatenate([wqkv_t[:, :C] * scale, wqkv_t[:, C:]],
                             axis=1).astype(cdt)
    wproj_t = wproj.T.astype(cdt)                                 # (C, C)
    bproj2 = bproj.reshape(1, C).astype(jnp.float32)
    x2 = x.reshape(B * N, C)

    kernel = functools.partial(
        _dyn_attn_kernel, num_heads=num_heads, head_dim=head_dim,
        batch_block=Bt, seq_len=N)

    def run(single_buffer_weights):
        def wspec(shape):
            idx = lambda g: (0,) * len(shape)
            if single_buffer_weights:
                # Constant blocks never change -> no double buffering needed;
                # frees VMEM headroom that directly buys a larger Bt.
                return pl.BlockSpec(shape, idx, pipeline_mode=pl.Buffered(1))
            return pl.BlockSpec(shape, idx)

        return pl.pallas_call(
            kernel,
            out_shape=(
                jax.ShapeDtypeStruct((B * N, C), x.dtype),
                jax.ShapeDtypeStruct((G, N, N), jnp.float32),
            ),
            grid_spec=pltpu.PrefetchScalarGridSpec(
                num_scalar_prefetch=0,
                grid=(G,),
                in_specs=[
                    pl.BlockSpec((Bt * N, C), lambda g: (g, 0)),   # x
                    wspec((C, 3 * C)),                             # Wqkv.T (scaled)
                    wspec((C, C)),                                 # Wproj.T
                    wspec((1, C)),                                 # proj bias
                ],
                out_specs=[
                    pl.BlockSpec((Bt * N, C), lambda g: (g, 0)),   # out
                    pl.BlockSpec((1, N, N), lambda g: (g, 0, 0)),  # attn partial sum
                ],
                scratch_shapes=[
                    pltpu.VMEM((Bt * N, 3 * C), cdt),              # staged qkv
                    pltpu.VMEM((Bt * N, C), cdt),                  # assembled head outputs
                ],
            ),
            compiler_params=pltpu.CompilerParams(
                dimension_semantics=("parallel",),   # batch-block axis across TCs
                vmem_limit_bytes=budget,
            ),
        )(x2, wqkv_t, wproj_t, bproj2)

    try:
        out2, vis_part = run(single_buffer_weights=True)
    except Exception:   # pragma: no cover - jax without Buffered(1) input support
        out2, vis_part = run(single_buffer_weights=False)

    out = out2.reshape(B, N, C)
    # vis_attn = attn.mean(over B).mean(over H): finish the tiny reduction in XLA.
    vis_attn = vis_part.sum(axis=0) / (B * num_heads)
    return out, vis_attn


def _reference(x, wqkv, wproj, bproj, *, num_heads):
    """Pure-JAX reference mirroring the PyTorch forward (ft=False, N>1)."""
    B, N, C = x.shape
    hd = C // num_heads
    scale = hd ** (-0.5)
    qkv = jnp.einsum('bnc,dc->bnd', x, wqkv)                    # (B, N, 3C)
    qkv = qkv.reshape(B, N, 3, num_heads, hd).transpose(2, 0, 3, 1, 4)
    q, k, v = qkv[0], qkv[1], qkv[2]                            # (B, H, N, hd)
    attn = jnp.einsum('bhnd,bhmd->bhnm', q, k) * scale
    attn = jax.nn.softmax(attn, axis=-1)
    vis_attn = attn.mean(0).mean(0)
    o = jnp.einsum('bhnm,bhmd->bhnd', attn, v)
    o = o.transpose(0, 2, 1, 3).reshape(B, N, C)
    o = jnp.einsum('bnc,dc->bnd', o, wproj) + bproj
    return o, vis_attn


if __name__ == "__main__":
    B, N, C, H = 2, 8, 32, 8   # batch=2, seq=8, dim=32, num_heads=8 (head_dim=4)

    key = jax.random.PRNGKey(0)
    kx, kw1, kw2, kb = jax.random.split(key, 4)
    x = jax.random.normal(kx, (B, N, C), dtype=jnp.float32)
    # Deterministic synthetic parameters (module __init__ shapes):
    wqkv = jax.random.normal(kw1, (3 * C, C), dtype=jnp.float32) * 0.05   # qkv.weight
    # qkv_bias=False -> no qkv bias
    wproj = jax.random.normal(kw2, (C, C), dtype=jnp.float32) * 0.05      # proj.weight
    bproj = jax.random.normal(kb, (C,), dtype=jnp.float32) * 0.05         # proj.bias

    out, vis_attn = dynamic_attention(x, wqkv, wproj, bproj, num_heads=H)
    jax.block_until_ready((out, vis_attn))

    ref_out, ref_vis = _reference(x, wqkv, wproj, bproj, num_heads=H)
    # approx reciprocal in the softmax -> slightly relaxed tolerance
    assert jnp.allclose(out, ref_out, atol=2e-3, rtol=2e-3), "output mismatch"
    assert jnp.allclose(vis_attn, ref_vis, atol=2e-3, rtol=2e-3), "vis_attn mismatch"

    print("KERNEL_OK")
</pallas_src>

<mosaic_0001>
module attributes {stable_mosaic.version = 11 : i64} {
  func.func @_dyn_attn_kernel(%arg0: i32, %arg1: memref<8x32xf32, #tpu.memory_space<vmem>>, %arg2: memref<32x96xf32, #tpu.memory_space<vmem>>, %arg3: memref<32x32xf32, #tpu.memory_space<vmem>>, %arg4: memref<1x32xf32, #tpu.memory_space<vmem>>, %arg5: memref<8x32xf32, #tpu.memory_space<vmem>>, %arg6: memref<1x8x8xf32, #tpu.memory_space<vmem>>, %arg7: memref<8x96xf32, #tpu.memory_space<vmem>>, %arg8: memref<8x32xf32, #tpu.memory_space<vmem>>) attributes {dimension_semantics = [#tpu.dimension_semantics<parallel>], iteration_bounds = array<i64: 2>, scalar_prefetch = 0 : i64, scratch_operands = 2 : i64, tpu.core_type = #tpu.core_type<tc>, window_params = [{transform_indices = @transform_0, window_bounds = array<i64: 8, 32>}, {pipeline_mode = #tpu.pipeline_mode<synchronous>, transform_indices = @transform_1, window_bounds = array<i64: 32, 96>}, {pipeline_mode = #tpu.pipeline_mode<synchronous>, transform_indices = @transform_2, window_bounds = array<i64: 32, 32>}, {pipeline_mode = #tpu.pipeline_mode<synchronous>, transform_indices = @transform_3, window_bounds = array<i64: 1, 32>}, {transform_indices = @transform_4, window_bounds = array<i64: 8, 32>}, {transform_indices = @transform_5, window_bounds = array<i64: 1, 8, 8>}]} {
    %c0 = arith.constant 0 : index
    %c0_0 = arith.constant 0 : index
    %0 = vector.load %arg1[%c0, %c0_0] : memref<8x32xf32, #tpu.memory_space<vmem>>, vector<8x32xf32>
    %c0_1 = arith.constant 0 : index
    %c0_2 = arith.constant 0 : index
    %1 = vector.load %arg2[%c0_1, %c0_2] : memref<32x96xf32, #tpu.memory_space<vmem>>, vector<32x96xf32>
    %cst = arith.constant dense<0.000000e+00> : vector<8x96xf32>
    %2 = tpu.matmul %0, %1, %cst {dimension_numbers = #tpu.dot_dimension_numbers<[1], [0], [0], [1], [0, 0, 1, 1], [], []>} : vector<8x32xf32>, vector<32x96xf32>, vector<8x96xf32> -> vector<8x96xf32>
    %c0_3 = arith.constant 0 : index
    %c0_4 = arith.constant 0 : index
    %3 = vector.load %arg7[%c0_3, %c0_4] : memref<8x96xf32, #tpu.memory_space<vmem>>, vector<8x96xf32>
    tpu.vector_store %arg7[%c0_3, %c0_4], %2 {strides = array<i32>} : memref<8x96xf32, #tpu.memory_space<vmem>>, vector<8x96xf32>,
    %cst_5 = arith.constant 0.000000e+00 : f32
    %4 = vector.broadcast %cst_5 : f32 to vector<8x8xf32>
    %c0_6 = arith.constant 0 : index
    %c0_7 = arith.constant 0 : index
    %5 = vector.load %arg7[%c0_6, %c0_7] : memref<8x96xf32, #tpu.memory_space<vmem>>, vector<8x4xf32>
    %6 = vector.shape_cast %5 : vector<8x4xf32> to vector<1x8x4xf32>
    %c0_8 = arith.constant 0 : index
    %c32 = arith.constant 32 : index
    %7 = vector.load %arg7[%c0_8, %c32] : memref<8x96xf32, #tpu.memory_space<vmem>>, vector<8x4xf32>
    %8 = vector.shape_cast %7 : vector<8x4xf32> to vector<1x8x4xf32>
    %c0_9 = arith.constant 0 : index
    %c64 = arith.constant 64 : index
    %9 = vector.load %arg7[%c0_9, %c64] : memref<8x96xf32, #tpu.memory_space<vmem>>, vector<8x4xf32>
    %10 = vector.shape_cast %9 : vector<8x4xf32> to vector<1x8x4xf32>
    "tpu.trace_start"() <{level = 10 : i32, message = "bnd,bmd->bnm"}> : () -> ()
    %cst_10 = arith.constant dense<0.000000e+00> : vector<1x8x8xf32>
    %11 = tpu.matmul %6, %8, %cst_10 {dimension_numbers = #tpu.dot_dimension_numbers<[2], [2], [1], [1], [0, 0, 0, 1, 1, 1], [0], [0]>} : vector<1x8x4xf32>, vector<1x8x4xf32>, vector<1x8x8xf32> -> vector<1x8x8xf32>
    "tpu.trace_stop"() : () -> ()
    %cst_11 = arith.constant dense<0xFF800000> : vector<1x8xf32>
    %12 = vector.multi_reduction <maximumf>, %11, %cst_11 [2] : vector<1x8x8xf32> to vector<1x8xf32>
    %13 = vector.shape_cast %12 : vector<1x8xf32> to vector<1x8x1xf32>
    %14 = vector.broadcast %13 : vector<1x8x1xf32> to vector<1x8x8xf32>
    %15 = arith.subf %11, %14 : vector<1x8x8xf32>
    %16 = math.exp %15 : vector<1x8x8xf32>
    %cst_12 = arith.constant dense<0.000000e+00> : vector<1x8xf32>
    %17 = vector.multi_reduction <add>, %16, %cst_12 [2] : vector<1x8x8xf32> to vector<1x8xf32>
    %18 = vector.shape_cast %17 : vector<1x8xf32> to vector<1x8x1xf32>
    %19 = tpu.reciprocal %18 {approx = true} : vector<1x8x1xf32> -> vector<1x8x1xf32>
    %20 = vector.broadcast %19 : vector<1x8x1xf32> to vector<1x8x8xf32>
    %21 = arith.mulf %16, %20 : vector<1x8x8xf32>
    %cst_13 = arith.constant dense<0.000000e+00> : vector<8x8xf32>
    %22 = vector.multi_reduction <add>, %21, %cst_13 [0] : vector<1x8x8xf32> to vector<8x8xf32>
    %23 = arith.addf %4, %22 : vector<8x8xf32>
    "tpu.trace_start"() <{level = 10 : i32, message = "bnm,bmd->bnd"}> : () -> ()
    %cst_14 = arith.constant dense<0.000000e+00> : vector<1x8x4xf32>
    %24 = tpu.matmul %21, %10, %cst_14 {dimension_numbers = #tpu.dot_dimension_numbers<[2], [1], [1], [2], [0, 0, 0, 1, 1, 2], [0], [0]>} : vector<1x8x8xf32>, vector<1x8x4xf32>, vector<1x8x4xf32> -> vector<1x8x4xf32>
    "tpu.trace_stop"() : () -> ()
    %25 = vector.shape_cast %24 : vector<1x8x4xf32> to vector<8x4xf32>
    %c0_15 = arith.constant 0 : index
    %c0_16 = arith.constant 0 : index
    %26 = vector.load %arg8[%c0_15, %c0_16] : memref<8x32xf32, #tpu.memory_space<vmem>>, vector<8x4xf32>
    tpu.vector_store %arg8[%c0_15, %c0_16], %25 {strides = array<i32>} : memref<8x32xf32, #tpu.memory_space<vmem>>, vector<8x4xf32>,
    %c0_17 = arith.constant 0 : index
    %c4 = arith.constant 4 : index
    %27 = vector.load %arg7[%c0_17, %c4] : memref<8x96xf32, #tpu.memory_space<vmem>>, vector<8x4xf32>
    %28 = vector.shape_cast %27 : vector<8x4xf32> to vector<1x8x4xf32>
    %c0_18 = arith.constant 0 : index
    %c36 = arith.constant 36 : index
    %29 = vector.load %arg7[%c0_18, %c36] : memref<8x96xf32, #tpu.memory_space<vmem>>, vector<8x4xf32>
    %30 = vector.shape_cast %29 : vector<8x4xf32> to vector<1x8x4xf32>
    %c0_19 = arith.constant 0 : index
    %c68 = arith.constant 68 : index
    %31 = vector.load %arg7[%c0_19, %c68] : memref<8x96xf32, #tpu.memory_space<vmem>>, vector<8x4xf32>
    %32 = vector.shape_cast %31 : vector<8x4xf32> to vector<1x8x4xf32>
    "tpu.trace_start"() <{level = 10 : i32, message = "bnd,bmd->bnm"}> : () -> ()
    %cst_20 = arith.constant dense<0.000000e+00> : vector<1x8x8xf32>
    %33 = tpu.matmul %28, %30, %cst_20 {dimension_numbers = #tpu.dot_dimension_numbers<[2], [2], [1], [1], [0, 0, 0, 1, 1, 1], [0], [0]>} : vector<1x8x4xf32>, vector<1x8x4xf32>, vector<1x8x8xf32> -> vector<1x8x8xf32>
    "tpu.trace_stop"() : () -> ()
    %cst_21 = arith.constant dense<0xFF800000> : vector<1x8xf32>
    %34 = vector.multi_reduction <maximumf>, %33, %cst_21 [2] : vector<1x8x8xf32> to vector<1x8xf32>
    %35 = vector.shape_cast %34 : vector<1x8xf32> to vector<1x8x1xf32>
    %36 = vector.broadcast %35 : vector<1x8x1xf32> to vector<1x8x8xf32>
    %37 = arith.subf %33, %36 : vector<1x8x8xf32>
    %38 = math.exp %37 : vector<1x8x8xf32>
    %cst_22 = arith.constant dense<0.000000e+00> : vector<1x8xf32>
    %39 = vector.multi_reduction <add>, %38, %cst_22 [2] : vector<1x8x8xf32> to vector<1x8xf32>
    %40 = vector.shape_cast %39 : vector<1x8xf32> to vector<1x8x1xf32>
    %41 = tpu.reciprocal %40 {approx = true} : vector<1x8x1xf32> -> vector<1x8x1xf32>
    %42 = vector.broadcast %41 : vector<1x8x1xf32> to vector<1x8x8xf32>
    %43 = arith.mulf %38, %42 : vector<1x8x8xf32>
    %cst_23 = arith.constant dense<0.000000e+00> : vector<8x8xf32>
    %44 = vector.multi_reduction <add>, %43, %cst_23 [0] : vector<1x8x8xf32> to vector<8x8xf32>
    %45 = arith.addf %23, %44 : vector<8x8xf32>
    "tpu.trace_start"() <{level = 10 : i32, message = "bnm,bmd->bnd"}> : () -> ()
    %cst_24 = arith.constant dense<0.000000e+00> : vector<1x8x4xf32>
    %46 = tpu.matmul %43, %32, %cst_24 {dimension_numbers = #tpu.dot_dimension_numbers<[2], [1], [1], [2], [0, 0, 0, 1, 1, 2], [0], [0]>} : vector<1x8x8xf32>, vector<1x8x4xf32>, vector<1x8x4xf32> -> vector<1x8x4xf32>
    "tpu.trace_stop"() : () -> ()
    %47 = vector.shape_cast %46 : vector<1x8x4xf32> to vector<8x4xf32>
    %c0_25 = arith.constant 0 : index
    %c4_26 = arith.constant 4 : index
    %48 = vector.load %arg8[%c0_25, %c4_26] : memref<8x32xf32, #tpu.memory_space<vmem>>, vector<8x4xf32>
    tpu.vector_store %arg8[%c0_25, %c4_26], %47 {strides = array<i32>} : memref<8x32xf32, #tpu.memory_space<vmem>>, vector<8x4xf32>,
    %c0_27 = arith.constant 0 : index
    %c8 = arith.constant 8 : index
    %49 = vector.load %arg7[%c0_27, %c8] : memref<8x96xf32, #tpu.memory_space<vmem>>, vector<8x4xf32>
    %50 = vector.shape_cast %49 : vector<8x4xf32> to vector<1x8x4xf32>
    %c0_28 = arith.constant 0 : index
    %c40 = arith.constant 40 : index
    %51 = vector.load %arg7[%c0_28, %c40] : memref<8x96xf32, #tpu.memory_space<vmem>>, vector<8x4xf32>
    %52 = vector.shape_cast %51 : vector<8x4xf32> to vector<1x8x4xf32>
    %c0_29 = arith.constant 0 : index
    %c72 = arith.constant 72 : index
    %53 = vector.load %arg7[%c0_29, %c72] : memref<8x96xf32, #tpu.memory_space<vmem>>, vector<8x4xf32>
    %54 = vector.shape_cast %53 : vector<8x4xf32> to vector<1x8x4xf32>
    "tpu.trace_start"() <{level = 10 : i32, message = "bnd,bmd->bnm"}> : () -> ()
    %cst_30 = arith.constant dense<0.000000e+00> : vector<1x8x8xf32>
    %55 = tpu.matmul %50, %52, %cst_30 {dimension_numbers = #tpu.dot_dimension_numbers<[2], [2], [1], [1], [0, 0, 0, 1, 1, 1], [0], [0]>} : vector<1x8x4xf32>, vector<1x8x4xf32>, vector<1x8x8xf32> -> vector<1x8x8xf32>
    "tpu.trace_stop"() : () -> ()
    %cst_31 = arith.constant dense<0xFF800000> : vector<1x8xf32>
    %56 = vector.multi_reduction <maximumf>, %55, %cst_31 [2] : vector<1x8x8xf32> to vector<1x8xf32>
    %57 = vector.shape_cast %56 : vector<1x8xf32> to vector<1x8x1xf32>
    %58 = vector.broadcast %57 : vector<1x8x1xf32> to vector<1x8x8xf32>
    %59 = arith.subf %55, %58 : vector<1x8x8xf32>
    %60 = math.exp %59 : vector<1x8x8xf32>
    %cst_32 = arith.constant dense<0.000000e+00> : vector<1x8xf32>
    %61 = vector.multi_reduction <add>, %60, %cst_32 [2] : vector<1x8x8xf32> to vector<1x8xf32>
    %62 = vector.shape_cast %61 : vector<1x8xf32> to vector<1x8x1xf32>
    %63 = tpu.reciprocal %62 {approx = true} : vector<1x8x1xf32> -> vector<1x8x1xf32>
    %64 = vector.broadcast %63 : vector<1x8x1xf32> to vector<1x8x8xf32>
    %65 = arith.mulf %60, %64 : vector<1x8x8xf32>
    %cst_33 = arith.constant dense<0.000000e+00> : vector<8x8xf32>
    %66 = vector.multi_reduction <add>, %65, %cst_33 [0] : vector<1x8x8xf32> to vector<8x8xf32>
    %67 = arith.addf %45, %66 : vector<8x8xf32>
    "tpu.trace_start"() <{level = 10 : i32, message = "bnm,bmd->bnd"}> : () -> ()
    %cst_34 = arith.constant dense<0.000000e+00> : vector<1x8x4xf32>
    %68 = tpu.matmul %65, %54, %cst_34 {dimension_numbers = #tpu.dot_dimension_numbers<[2], [1], [1], [2], [0, 0, 0, 1, 1, 2], [0], [0]>} : vector<1x8x8xf32>, vector<1x8x4xf32>, vector<1x8x4xf32> -> vector<1x8x4xf32>
    "tpu.trace_stop"() : () -> ()
    %69 = vector.shape_cast %68 : vector<1x8x4xf32> to vector<8x4xf32>
    %c0_35 = arith.constant 0 : index
    %c8_36 = arith.constant 8 : index
    %70 = vector.load %arg8[%c0_35, %c8_36] : memref<8x32xf32, #tpu.memory_space<vmem>>, vector<8x4xf32>
    tpu.vector_store %arg8[%c0_35, %c8_36], %69 {strides = array<i32>} : memref<8x32xf32, #tpu.memory_space<vmem>>, vector<8x4xf32>,
    %c0_37 = arith.constant 0 : index
    %c12 = arith.constant 12 : index
    %71 = vector.load %arg7[%c0_37, %c12] : memref<8x96xf32, #tpu.memory_space<vmem>>, vector<8x4xf32>
    %72 = vector.shape_cast %71 : vector<8x4xf32> to vector<1x8x4xf32>
    %c0_38 = arith.constant 0 : index
    %c44 = arith.constant 44 : index
    %73 = vector.load %arg7[%c0_38, %c44] : memref<8x96xf32, #tpu.memory_space<vmem>>, vector<8x4xf32>
    %74 = vector.shape_cast %73 : vector<8x4xf32> to vector<1x8x4xf32>
    %c0_39 = arith.constant 0 : index
    %c76 = arith.constant 76 : index
    %75 = vector.load %arg7[%c0_39, %c76] : memref<8x96xf32, #tpu.memory_space<vmem>>, vector<8x4xf32>
    %76 = vector.shape_cast %75 : vector<8x4xf32> to vector<1x8x4xf32>
    "tpu.trace_start"() <{level = 10 : i32, message = "bnd,bmd->bnm"}> : () -> ()
    %cst_40 = arith.constant dense<0.000000e+00> : vector<1x8x8xf32>
    %77 = tpu.matmul %72, %74, %cst_40 {dimension_numbers = #tpu.dot_dimension_numbers<[2], [2], [1], [1], [0, 0, 0, 1, 1, 1], [0], [0]>} : vector<1x8x4xf32>, vector<1x8x4xf32>, vector<1x8x8xf32> -> vector<1x8x8xf32>
    "tpu.trace_stop"() : () -> ()
    %cst_41 = arith.constant dense<0xFF800000> : vector<1x8xf32>
    %78 = vector.multi_reduction <maximumf>, %77, %cst_41 [2] : vector<1x8x8xf32> to vector<1x8xf32>
    %79 = vector.shape_cast %78 : vector<1x8xf32> to vector<1x8x1xf32>
    %80 = vector.broadcast %79 : vector<1x8x1xf32> to vector<1x8x8xf32>
    %81 = arith.subf %77, %80 : vector<1x8x8xf32>
    %82 = math.exp %81 : vector<1x8x8xf32>
    %cst_42 = arith.constant dense<0.000000e+00> : vector<1x8xf32>
    %83 = vector.multi_reduction <add>, %82, %cst_42 [2] : vector<1x8x8xf32> to vector<1x8xf32>
    %84 = vector.shape_cast %83 : vector<1x8xf32> to vector<1x8x1xf32>
    %85 = tpu.reciprocal %84 {approx = true} : vector<1x8x1xf32> -> vector<1x8x1xf32>
    %86 = vector.broadcast %85 : vector<1x8x1xf32> to vector<1x8x8xf32>
    %87 = arith.mulf %82, %86 : vector<1x8x8xf32>
    %cst_43 = arith.constant dense<0.000000e+00> : vector<8x8xf32>
    %88 = vector.multi_reduction <add>, %87, %cst_43 [0] : vector<1x8x8xf32> to vector<8x8xf32>
    %89 = arith.addf %67, %88 : vector<8x8xf32>
    "tpu.trace_start"() <{level = 10 : i32, message = "bnm,bmd->bnd"}> : () -> ()
    %cst_44 = arith.constant dense<0.000000e+00> : vector<1x8x4xf32>
    %90 = tpu.matmul %87, %76, %cst_44 {dimension_numbers = #tpu.dot_dimension_numbers<[2], [1], [1], [2], [0, 0, 0, 1, 1, 2], [0], [0]>} : vector<1x8x8xf32>, vector<1x8x4xf32>, vector<1x8x4xf32> -> vector<1x8x4xf32>
    "tpu.trace_stop"() : () -> ()
    %91 = vector.shape_cast %90 : vector<1x8x4xf32> to vector<8x4xf32>
    %c0_45 = arith.constant 0 : index
    %c12_46 = arith.constant 12 : index
    %92 = vector.load %arg8[%c0_45, %c12_46] : memref<8x32xf32, #tpu.memory_space<vmem>>, vector<8x4xf32>
    tpu.vector_store %arg8[%c0_45, %c12_46], %91 {strides = array<i32>} : memref<8x32xf32, #tpu.memory_space<vmem>>, vector<8x4xf32>,
    %c0_47 = arith.constant 0 : index
    %c16 = arith.constant 16 : index
    %93 = vector.load %arg7[%c0_47, %c16] : memref<8x96xf32, #tpu.memory_space<vmem>>, vector<8x4xf32>
    %94 = vector.shape_cast %93 : vector<8x4xf32> to vector<1x8x4xf32>
    %c0_48 = arith.constant 0 : index
    %c48 = arith.constant 48 : index
    %95 = vector.load %arg7[%c0_48, %c48] : memref<8x96xf32, #tpu.memory_space<vmem>>, vector<8x4xf32>
    %96 = vector.shape_cast %95 : vector<8x4xf32> to vector<1x8x4xf32>
    %c0_49 = arith.constant 0 : index
    %c80 = arith.constant 80 : index
    %97 = vector.load %arg7[%c0_49, %c80] : memref<8x96xf32, #tpu.memory_space<vmem>>, vector<8x4xf32>
    %98 = vector.shape_cast %97 : vector<8x4xf32> to vector<1x8x4xf32>
    "tpu.trace_start"() <{level = 10 : i32, message = "bnd,bmd->bnm"}> : () -> ()
    %cst_50 = arith.constant dense<0.000000e+00> : vector<1x8x8xf32>
    %99 = tpu.matmul %94, %96, %cst_50 {dimension_numbers = #tpu.dot_dimension_numbers<[2], [2], [1], [1], [0, 0, 0, 1, 1, 1], [0], [0]>} : vector<1x8x4xf32>, vector<1x8x4xf32>, vector<1x8x8xf32> -> vector<1x8x8xf32>
    "tpu.trace_stop"() : () -> ()
    %cst_51 = arith.constant dense<0xFF800000> : vector<1x8xf32>
    %100 = vector.multi_reduction <maximumf>, %99, %cst_51 [2] : vector<1x8x8xf32> to vector<1x8xf32>
    %101 = vector.shape_cast %100 : vector<1x8xf32> to vector<1x8x1xf32>
    %102 = vector.broadcast %101 : vector<1x8x1xf32> to vector<1x8x8xf32>
    %103 = arith.subf %99, %102 : vector<1x8x8xf32>
    %104 = math.exp %103 : vector<1x8x8xf32>
    %cst_52 = arith.constant dense<0.000000e+00> : vector<1x8xf32>
    %105 = vector.multi_reduction <add>, %104, %cst_52 [2] : vector<1x8x8xf32> to vector<1x8xf32>
    %106 = vector.shape_cast %105 : vector<1x8xf32> to vector<1x8x1xf32>
    %107 = tpu.reciprocal %106 {approx = true} : vector<1x8x1xf32> -> vector<1x8x1xf32>
    %108 = vector.broadcast %107 : vector<1x8x1xf32> to vector<1x8x8xf32>
    %109 = arith.mulf %104, %108 : vector<1x8x8xf32>
    %cst_53 = arith.constant dense<0.000000e+00> : vector<8x8xf32>
    %110 = vector.multi_reduction <add>, %109, %cst_53 [0] : vector<1x8x8xf32> to vector<8x8xf32>
    %111 = arith.addf %89, %110 : vector<8x8xf32>
    "tpu.trace_start"() <{level = 10 : i32, message = "bnm,bmd->bnd"}> : () -> ()
    %cst_54 = arith.constant dense<0.000000e+00> : vector<1x8x4xf32>
    %112 = tpu.matmul %109, %98, %cst_54 {dimension_numbers = #tpu.dot_dimension_numbers<[2], [1], [1], [2], [0, 0, 0, 1, 1, 2], [0], [0]>} : vector<1x8x8xf32>, vector<1x8x4xf32>, vector<1x8x4xf32> -> vector<1x8x4xf32>
    "tpu.trace_stop"() : () -> ()
    %113 = vector.shape_cast %112 : vector<1x8x4xf32> to vector<8x4xf32>
    %c0_55 = arith.constant 0 : index
    %c16_56 = arith.constant 16 : index
    %114 = vector.load %arg8[%c0_55, %c16_56] : memref<8x32xf32, #tpu.memory_space<vmem>>, vector<8x4xf32>
    tpu.vector_store %arg8[%c0_55, %c16_56], %113 {strides = array<i32>} : memref<8x32xf32, #tpu.memory_space<vmem>>, vector<8x4xf32>,
    %c0_57 = arith.constant 0 : index
    %c20 = arith.constant 20 : index
    %115 = vector.load %arg7[%c0_57, %c20] : memref<8x96xf32, #tpu.memory_space<vmem>>, vector<8x4xf32>
    %116 = vector.shape_cast %115 : vector<8x4xf32> to vector<1x8x4xf32>
    %c0_58 = arith.constant 0 : index
    %c52 = arith.constant 52 : index
    %117 = vector.load %arg7[%c0_58, %c52] : memref<8x96xf32, #tpu.memory_space<vmem>>, vector<8x4xf32>
    %118 = vector.shape_cast %117 : vector<8x4xf32> to vector<1x8x4xf32>
    %c0_59 = arith.constant 0 : index
    %c84 = arith.constant 84 : index
    %119 = vector.load %arg7[%c0_59, %c84] : memref<8x96xf32, #tpu.memory_space<vmem>>, vector<8x4xf32>
    %120 = vector.shape_cast %119 : vector<8x4xf32> to vector<1x8x4xf32>
    "tpu.trace_start"() <{level = 10 : i32, message = "bnd,bmd->bnm"}> : () -> ()
    %cst_60 = arith.constant dense<0.000000e+00> : vector<1x8x8xf32>
    %121 = tpu.matmul %116, %118, %cst_60 {dimension_numbers = #tpu.dot_dimension_numbers<[2], [2], [1], [1], [0, 0, 0, 1, 1, 1], [0], [0]>} : vector<1x8x4xf32>, vector<1x8x4xf32>, vector<1x8x8xf32> -> vector<1x8x8xf32>
    "tpu.trace_stop"() : () -> ()
    %cst_61 = arith.constant dense<0xFF800000> : vector<1x8xf32>
    %122 = vector.multi_reduction <maximumf>, %121, %cst_61 [2] : vector<1x8x8xf32> to vector<1x8xf32>
    %123 = vector.shape_cast %122 : vector<1x8xf32> to vector<1x8x1xf32>
    %124 = vector.broadcast %123 : vector<1x8x1xf32> to vector<1x8x8xf32>
    %125 = arith.subf %121, %124 : vector<1x8x8xf32>
    %126 = math.exp %125 : vector<1x8x8xf32>
    %cst_62 = arith.constant dense<0.000000e+00> : vector<1x8xf32>
    %127 = vector.multi_reduction <add>, %126, %cst_62 [2] : vector<1x8x8xf32> to vector<1x8xf32>
    %128 = vector.shape_cast %127 : vector<1x8xf32> to vector<1x8x1xf32>
    %129 = tpu.reciprocal %128 {approx = true} : vector<1x8x1xf32> -> vector<1x8x1xf32>
    %130 = vector.broadcast %129 : vector<1x8x1xf32> to vector<1x8x8xf32>
    %131 = arith.mulf %126, %130 : vector<1x8x8xf32>
    %cst_63 = arith.constant dense<0.000000e+00> : vector<8x8xf32>
    %132 = vector.multi_reduction <add>, %131, %cst_63 [0] : vector<1x8x8xf32> to vector<8x8xf32>
    %133 = arith.addf %111, %132 : vector<8x8xf32>
    "tpu.trace_start"() <{level = 10 : i32, message = "bnm,bmd->bnd"}> : () -> ()
    %cst_64 = arith.constant dense<0.000000e+00> : vector<1x8x4xf32>
    %134 = tpu.matmul %131, %120, %cst_64 {dimension_numbers = #tpu.dot_dimension_numbers<[2], [1], [1], [2], [0, 0, 0, 1, 1, 2], [0], [0]>} : vector<1x8x8xf32>, vector<1x8x4xf32>, vector<1x8x4xf32> -> vector<1x8x4xf32>
    "tpu.trace_stop"() : () -> ()
    %135 = vector.shape_cast %134 : vector<1x8x4xf32> to vector<8x4xf32>
    %c0_65 = arith.constant 0 : index
    %c20_66 = arith.constant 20 : index
    %136 = vector.load %arg8[%c0_65, %c20_66] : memref<8x32xf32, #tpu.memory_space<vmem>>, vector<8x4xf32>
    tpu.vector_store %arg8[%c0_65, %c20_66], %135 {strides = array<i32>} : memref<8x32xf32, #tpu.memory_space<vmem>>, vector<8x4xf32>,
    %c0_67 = arith.constant 0 : index
    %c24 = arith.constant 24 : index
    %137 = vector.load %arg7[%c0_67, %c24] : memref<8x96xf32, #tpu.memory_space<vmem>>, vector<8x4xf32>
    %138 = vector.shape_cast %137 : vector<8x4xf32> to vector<1x8x4xf32>
    %c0_68 = arith.constant 0 : index
    %c56 = arith.constant 56 : index
    %139 = vector.load %arg7[%c0_68, %c56] : memref<8x96xf32, #tpu.memory_space<vmem>>, vector<8x4xf32>
    %140 = vector.shape_cast %139 : vector<8x4xf32> to vector<1x8x4xf32>
    %c0_69 = arith.constant 0 : index
    %c88 = arith.constant 88 : index
    %141 = vector.load %arg7[%c0_69, %c88] : memref<8x96xf32, #tpu.memory_space<vmem>>, vector<8x4xf32>
    %142 = vector.shape_cast %141 : vector<8x4xf32> to vector<1x8x4xf32>
    "tpu.trace_start"() <{level = 10 : i32, message = "bnd,bmd->bnm"}> : () -> ()
    %cst_70 = arith.constant dense<0.000000e+00> : vector<1x8x8xf32>
    %143 = tpu.matmul %138, %140, %cst_70 {dimension_numbers = #tpu.dot_dimension_numbers<[2], [2], [1], [1], [0, 0, 0, 1, 1, 1], [0], [0]>} : vector<1x8x4xf32>, vector<1x8x4xf32>, vector<1x8x8xf32> -> vector<1x8x8xf32>
    "tpu.trace_stop"() : () -> ()
    %cst_71 = arith.constant dense<0xFF800000> : vector<1x8xf32>
    %144 = vector.multi_reduction <maximumf>, %143, %cst_71 [2] : vector<1x8x8xf32> to vector<1x8xf32>
    %145 = vector.shape_cast %144 : vector<1x8xf32> to vector<1x8x1xf32>
    %146 = vector.broadcast %145 : vector<1x8x1xf32> to vector<1x8x8xf32>
    %147 = arith.subf %143, %146 : vector<1x8x8xf32>
    %148 = math.exp %147 : vector<1x8x8xf32>
    %cst_72 = arith.constant dense<0.000000e+00> : vector<1x8xf32>
    %149 = vector.multi_reduction <add>, %148, %cst_72 [2] : vector<1x8x8xf32> to vector<1x8xf32>
    %150 = vector.shape_cast %149 : vector<1x8xf32> to vector<1x8x1xf32>
    %151 = tpu.reciprocal %150 {approx = true} : vector<1x8x1xf32> -> vector<1x8x1xf32>
    %152 = vector.broadcast %151 : vector<1x8x1xf32> to vector<1x8x8xf32>
    %153 = arith.mulf %148, %152 : vector<1x8x8xf32>
    %cst_73 = arith.constant dense<0.000000e+00> : vector<8x8xf32>
    %154 = vector.multi_reduction <add>, %153, %cst_73 [0] : vector<1x8x8xf32> to vector<8x8xf32>
    %155 = arith.addf %133, %154 : vector<8x8xf32>
    "tpu.trace_start"() <{level = 10 : i32, message = "bnm,bmd->bnd"}> : () -> ()
    %cst_74 = arith.constant dense<0.000000e+00> : vector<1x8x4xf32>
    %156 = tpu.matmul %153, %142, %cst_74 {dimension_numbers = #tpu.dot_dimension_numbers<[2], [1], [1], [2], [0, 0, 0, 1, 1, 2], [0], [0]>} : vector<1x8x8xf32>, vector<1x8x4xf32>, vector<1x8x4xf32> -> vector<1x8x4xf32>
    "tpu.trace_stop"() : () -> ()
    %157 = vector.shape_cast %156 : vector<1x8x4xf32> to vector<8x4xf32>
    %c0_75 = arith.constant 0 : index
    %c24_76 = arith.constant 24 : index
    %158 = vector.load %arg8[%c0_75, %c24_76] : memref<8x32xf32, #tpu.memory_space<vmem>>, vector<8x4xf32>
    tpu.vector_store %arg8[%c0_75, %c24_76], %157 {strides = array<i32>} : memref<8x32xf32, #tpu.memory_space<vmem>>, vector<8x4xf32>,
    %c0_77 = arith.constant 0 : index
    %c28 = arith.constant 28 : index
    %159 = vector.load %arg7[%c0_77, %c28] : memref<8x96xf32, #tpu.memory_space<vmem>>, vector<8x4xf32>
    %160 = vector.shape_cast %159 : vector<8x4xf32> to vector<1x8x4xf32>
    %c0_78 = arith.constant 0 : index
    %c60 = arith.constant 60 : index
    %161 = vector.load %arg7[%c0_78, %c60] : memref<8x96xf32, #tpu.memory_space<vmem>>, vector<8x4xf32>
    %162 = vector.shape_cast %161 : vector<8x4xf32> to vector<1x8x4xf32>
    %c0_79 = arith.constant 0 : index
    %c92 = arith.constant 92 : index
    %163 = vector.load %arg7[%c0_79, %c92] : memref<8x96xf32, #tpu.memory_space<vmem>>, vector<8x4xf32>
    %164 = vector.shape_cast %163 : vector<8x4xf32> to vector<1x8x4xf32>
    "tpu.trace_start"() <{level = 10 : i32, message = "bnd,bmd->bnm"}> : () -> ()
    %cst_80 = arith.constant dense<0.000000e+00> : vector<1x8x8xf32>
    %165 = tpu.matmul %160, %162, %cst_80 {dimension_numbers = #tpu.dot_dimension_numbers<[2], [2], [1], [1], [0, 0, 0, 1, 1, 1], [0], [0]>} : vector<1x8x4xf32>, vector<1x8x4xf32>, vector<1x8x8xf32> -> vector<1x8x8xf32>
    "tpu.trace_stop"() : () -> ()
    %cst_81 = arith.constant dense<0xFF800000> : vector<1x8xf32>
    %166 = vector.multi_reduction <maximumf>, %165, %cst_81 [2] : vector<1x8x8xf32> to vector<1x8xf32>
    %167 = vector.shape_cast %166 : vector<1x8xf32> to vector<1x8x1xf32>
    %168 = vector.broadcast %167 : vector<1x8x1xf32> to vector<1x8x8xf32>
    %169 = arith.subf %165, %168 : vector<1x8x8xf32>
    %170 = math.exp %169 : vector<1x8x8xf32>
    %cst_82 = arith.constant dense<0.000000e+00> : vector<1x8xf32>
    %171 = vector.multi_reduction <add>, %170, %cst_82 [2] : vector<1x8x8xf32> to vector<1x8xf32>
    %172 = vector.shape_cast %171 : vector<1x8xf32> to vector<1x8x1xf32>
    %173 = tpu.reciprocal %172 {approx = true} : vector<1x8x1xf32> -> vector<1x8x1xf32>
    %174 = vector.broadcast %173 : vector<1x8x1xf32> to vector<1x8x8xf32>
    %175 = arith.mulf %170, %174 : vector<1x8x8xf32>
    %cst_83 = arith.constant dense<0.000000e+00> : vector<8x8xf32>
    %176 = vector.multi_reduction <add>, %175, %cst_83 [0] : vector<1x8x8xf32> to vector<8x8xf32>
    %177 = arith.addf %155, %176 : vector<8x8xf32>
    "tpu.trace_start"() <{level = 10 : i32, message = "bnm,bmd->bnd"}> : () -> ()
    %cst_84 = arith.constant dense<0.000000e+00> : vector<1x8x4xf32>
    %178 = tpu.matmul %175, %164, %cst_84 {dimension_numbers = #tpu.dot_dimension_numbers<[2], [1], [1], [2], [0, 0, 0, 1, 1, 2], [0], [0]>} : vector<1x8x8xf32>, vector<1x8x4xf32>, vector<1x8x4xf32> -> vector<1x8x4xf32>
    "tpu.trace_stop"() : () -> ()
    %179 = vector.shape_cast %178 : vector<1x8x4xf32> to vector<8x4xf32>
    %c0_85 = arith.constant 0 : index
    %c28_86 = arith.constant 28 : index
    %180 = vector.load %arg8[%c0_85, %c28_86] : memref<8x32xf32, #tpu.memory_space<vmem>>, vector<8x4xf32>
    tpu.vector_store %arg8[%c0_85, %c28_86], %179 {strides = array<i32>} : memref<8x32xf32, #tpu.memory_space<vmem>>, vector<8x4xf32>,
    %c0_87 = arith.constant 0 : index
    %c0_88 = arith.constant 0 : index
    %181 = vector.load %arg8[%c0_87, %c0_88] : memref<8x32xf32, #tpu.memory_space<vmem>>, vector<8x32xf32>
    %c0_89 = arith.constant 0 : index
    %c0_90 = arith.constant 0 : index
    %182 = vector.load %arg3[%c0_89, %c0_90] : memref<32x32xf32, #tpu.memory_space<vmem>>, vector<32x32xf32>
    %cst_91 = arith.constant dense<0.000000e+00> : vector<8x32xf32>
    %183 = tpu.matmul %181, %182, %cst_91 {dimension_numbers = #tpu.dot_dimension_numbers<[1], [0], [0], [1], [0, 0, 1, 1], [], []>} : vector<8x32xf32>, vector<32x32xf32>, vector<8x32xf32> -> vector<8x32xf32>
    %c0_92 = arith.constant 0 : index
    %c0_93 = arith.constant 0 : index
    %184 = vector.load %arg4[%c0_92, %c0_93] : memref<1x32xf32, #tpu.memory_space<vmem>>, vector<1x32xf32>
    %185 = vector.broadcast %184 : vector<1x32xf32> to vector<8x32xf32>
    %186 = arith.addf %183, %185 : vector<8x32xf32>
    %c0_94 = arith.constant 0 : index
    %c0_95 = arith.constant 0 : index
    %187 = vector.load %arg5[%c0_94, %c0_95] : memref<8x32xf32, #tpu.memory_space<vmem>>, vector<8x32xf32>
    tpu.vector_store %arg5[%c0_94, %c0_95], %186 {strides = array<i32>} : memref<8x32xf32, #tpu.memory_space<vmem>>, vector<8x32xf32>,
    %c0_96 = arith.constant 0 : index
    %c0_97 = arith.constant 0 : index
    %c0_98 = arith.constant 0 : index
    %188 = vector.load %arg6[%c0_96, %c0_97, %c0_98] : memref<1x8x8xf32, #tpu.memory_space<vmem>>, vector<1x8x8xf32>
    %189 = vector.shape_cast %188 : vector<1x8x8xf32> to vector<8x8xf32>
    %190 = vector.shape_cast %177 : vector<8x8xf32> to vector<1x8x8xf32>
    tpu.vector_store %arg6[%c0_96, %c0_97, %c0_98], %190 {strides = array<i32>} : memref<1x8x8xf32, #tpu.memory_space<vmem>>, vector<1x8x8xf32>,
    return
  }
  func.func @transform_0(%arg0: i32) -> (i32, i32) {
    %c0_i32 = arith.constant 0 : i32
    %c0_i32_0 = arith.constant 0 : i32
    return %arg0, %c0_i32 : i32, i32
  }
  func.func @transform_1(%arg0: i32) -> (i32, i32) {
    %c0_i32 = arith.constant 0 : i32
    %c0_i32_0 = arith.constant 0 : i32
    %c0_i32_1 = arith.constant 0 : i32
    return %c0_i32, %c0_i32_0 : i32, i32
  }
  func.func @transform_2(%arg0: i32) -> (i32, i32) {
    %c0_i32 = arith.constant 0 : i32
    %c0_i32_0 = arith.constant 0 : i32
    %c0_i32_1 = arith.constant 0 : i32
    return %c0_i32, %c0_i32_0 : i32, i32
  }
  func.func @transform_3(%arg0: i32) -> (i32, i32) {
    %c0_i32 = arith.constant 0 : i32
    %c0_i32_0 = arith.constant 0 : i32
    %c0_i32_1 = arith.constant 0 : i32
    return %c0_i32, %c0_i32_0 : i32, i32
  }
  func.func @transform_4(%arg0: i32) -> (i32, i32) {
    %c0_i32 = arith.constant 0 : i32
    %c0_i32_0 = arith.constant 0 : i32
    return %arg0, %c0_i32 : i32, i32
  }
  func.func @transform_5(%arg0: i32) -> (i32, i32, i32) {
    %c0_i32 = arith.constant 0 : i32
    %c0_i32_0 = arith.constant 0 : i32
    %c0_i32_1 = arith.constant 0 : i32
    return %arg0, %c0_i32, %c0_i32_0 : i32, i32, i32
  }
}

module attributes {stable_mosaic.version = 11 : i64} {
  func.func @_dyn_attn_kernel(%arg0: i32, %arg1: memref<8x32xf32, #tpu.memory_space<vmem>>, %arg2: memref<32x96xf32, #tpu.memory_space<vmem>>, %arg3: memref<32x32xf32, #tpu.memory_space<vmem>>, %arg4: memref<1x32xf32, #tpu.memory_space<vmem>>, %arg5: memref<8x32xf32, #tpu.memory_space<vmem>>, %arg6: memref<1x8x8xf32, #tpu.memory_space<vmem>>, %arg7: memref<8x96xf32, #tpu.memory_space<vmem>>, %arg8: memref<8x32xf32, #tpu.memory_space<vmem>>) attributes {dimension_semantics = [#tpu.dimension_semantics<parallel>], iteration_bounds = array<i64: 2>, scalar_prefetch = 0 : i64, scratch_operands = 2 : i64, tpu.core_type = #tpu.core_type<tc>, window_params = [{transform_indices = @transform_0, window_bounds = array<i64: 8, 32>}, {pipeline_mode = #tpu.pipeline_mode<synchronous>, transform_indices = @transform_1, window_bounds = array<i64: 32, 96>}, {pipeline_mode = #tpu.pipeline_mode<synchronous>, transform_indices = @transform_2, window_bounds = array<i64: 32, 32>}, {pipeline_mode = #tpu.pipeline_mode<synchronous>, transform_indices = @transform_3, window_bounds = array<i64: 1, 32>}, {transform_indices = @transform_4, window_bounds = array<i64: 8, 32>}, {transform_indices = @transform_5, window_bounds = array<i64: 1, 8, 8>}]} {
    %c0 = arith.constant 0 : index
    %c0_0 = arith.constant 0 : index
    %0 = vector.load %arg1[%c0, %c0_0] : memref<8x32xf32, #tpu.memory_space<vmem>>, vector<8x32xf32>
    %c0_1 = arith.constant 0 : index
    %c0_2 = arith.constant 0 : index
    %1 = vector.load %arg2[%c0_1, %c0_2] : memref<32x96xf32, #tpu.memory_space<vmem>>, vector<32x96xf32>
    %cst = arith.constant dense<0.000000e+00> : vector<8x96xf32>
    %2 = tpu.matmul %0, %1, %cst {dimension_numbers = #tpu.dot_dimension_numbers<[1], [0], [0], [1], [0, 0, 1, 1], [], []>} : vector<8x32xf32>, vector<32x96xf32>, vector<8x96xf32> -> vector<8x96xf32>
    %c0_3 = arith.constant 0 : index
    %c0_4 = arith.constant 0 : index
    %3 = vector.load %arg7[%c0_3, %c0_4] : memref<8x96xf32, #tpu.memory_space<vmem>>, vector<8x96xf32>
    tpu.vector_store %arg7[%c0_3, %c0_4], %2 {strides = array<i32>} : memref<8x96xf32, #tpu.memory_space<vmem>>, vector<8x96xf32>,
    %cst_5 = arith.constant 0.000000e+00 : f32
    %4 = vector.broadcast %cst_5 : f32 to vector<8x8xf32>
    %c0_6 = arith.constant 0 : index
    %c0_7 = arith.constant 0 : index
    %5 = vector.load %arg7[%c0_6, %c0_7] : memref<8x96xf32, #tpu.memory_space<vmem>>, vector<8x4xf32>
    %6 = vector.shape_cast %5 : vector<8x4xf32> to vector<1x8x4xf32>
    %c0_8 = arith.constant 0 : index
    %c32 = arith.constant 32 : index
    %7 = vector.load %arg7[%c0_8, %c32] : memref<8x96xf32, #tpu.memory_space<vmem>>, vector<8x4xf32>
    %8 = vector.shape_cast %7 : vector<8x4xf32> to vector<1x8x4xf32>
    %c0_9 = arith.constant 0 : index
    %c64 = arith.constant 64 : index
    %9 = vector.load %arg7[%c0_9, %c64] : memref<8x96xf32, #tpu.memory_space<vmem>>, vector<8x4xf32>
    %10 = vector.shape_cast %9 : vector<8x4xf32> to vector<1x8x4xf32>
    "tpu.trace_start"() <{level = 10 : i32, message = "bnd,bmd->bnm"}> : () -> ()
    %cst_10 = arith.constant dense<0.000000e+00> : vector<1x8x8xf32>
    %11 = tpu.matmul %6, %8, %cst_10 {dimension_numbers = #tpu.dot_dimension_numbers<[2], [2], [1], [1], [0, 0, 0, 1, 1, 1], [0], [0]>} : vector<1x8x4xf32>, vector<1x8x4xf32>, vector<1x8x8xf32> -> vector<1x8x8xf32>
    "tpu.trace_stop"() : () -> ()
    %cst_11 = arith.constant dense<0xFF800000> : vector<1x8xf32>
    %12 = vector.multi_reduction <maximumf>, %11, %cst_11 [2] : vector<1x8x8xf32> to vector<1x8xf32>
    %13 = vector.shape_cast %12 : vector<1x8xf32> to vector<1x8x1xf32>
    %14 = vector.broadcast %13 : vector<1x8x1xf32> to vector<1x8x8xf32>
    %15 = arith.subf %11, %14 : vector<1x8x8xf32>
    %16 = math.exp %15 : vector<1x8x8xf32>
    %cst_12 = arith.constant dense<0.000000e+00> : vector<1x8xf32>
    %17 = vector.multi_reduction <add>, %16, %cst_12 [2] : vector<1x8x8xf32> to vector<1x8xf32>
    %18 = vector.shape_cast %17 : vector<1x8xf32> to vector<1x8x1xf32>
    %19 = tpu.reciprocal %18 {approx = true} : vector<1x8x1xf32> -> vector<1x8x1xf32>
    %20 = vector.broadcast %19 : vector<1x8x1xf32> to vector<1x8x8xf32>
    %21 = arith.mulf %16, %20 : vector<1x8x8xf32>
    %cst_13 = arith.constant dense<0.000000e+00> : vector<8x8xf32>
    %22 = vector.multi_reduction <add>, %21, %cst_13 [0] : vector<1x8x8xf32> to vector<8x8xf32>
    %23 = arith.addf %4, %22 : vector<8x8xf32>
    "tpu.trace_start"() <{level = 10 : i32, message = "bnm,bmd->bnd"}> : () -> ()
    %cst_14 = arith.constant dense<0.000000e+00> : vector<1x8x4xf32>
    %24 = tpu.matmul %21, %10, %cst_14 {dimension_numbers = #tpu.dot_dimension_numbers<[2], [1], [1], [2], [0, 0, 0, 1, 1, 2], [0], [0]>} : vector<1x8x8xf32>, vector<1x8x4xf32>, vector<1x8x4xf32> -> vector<1x8x4xf32>
    "tpu.trace_stop"() : () -> ()
    %25 = vector.shape_cast %24 : vector<1x8x4xf32> to vector<8x4xf32>
    %c0_15 = arith.constant 0 : index
    %c0_16 = arith.constant 0 : index
    %26 = vector.load %arg8[%c0_15, %c0_16] : memref<8x32xf32, #tpu.memory_space<vmem>>, vector<8x4xf32>
    tpu.vector_store %arg8[%c0_15, %c0_16], %25 {strides = array<i32>} : memref<8x32xf32, #tpu.memory_space<vmem>>, vector<8x4xf32>,
    %c0_17 = arith.constant 0 : index
    %c4 = arith.constant 4 : index
    %27 = vector.load %arg7[%c0_17, %c4] : memref<8x96xf32, #tpu.memory_space<vmem>>, vector<8x4xf32>
    %28 = vector.shape_cast %27 : vector<8x4xf32> to vector<1x8x4xf32>
    %c0_18 = arith.constant 0 : index
    %c36 = arith.constant 36 : index
    %29 = vector.load %arg7[%c0_18, %c36] : memref<8x96xf32, #tpu.memory_space<vmem>>, vector<8x4xf32>
    %30 = vector.shape_cast %29 : vector<8x4xf32> to vector<1x8x4xf32>
    %c0_19 = arith.constant 0 : index
    %c68 = arith.constant 68 : index
    %31 = vector.load %arg7[%c0_19, %c68] : memref<8x96xf32, #tpu.memory_space<vmem>>, vector<8x4xf32>
    %32 = vector.shape_cast %31 : vector<8x4xf32> to vector<1x8x4xf32>
    "tpu.trace_start"() <{level = 10 : i32, message = "bnd,bmd->bnm"}> : () -> ()
    %cst_20 = arith.constant dense<0.000000e+00> : vector<1x8x8xf32>
    %33 = tpu.matmul %28, %30, %cst_20 {dimension_numbers = #tpu.dot_dimension_numbers<[2], [2], [1], [1], [0, 0, 0, 1, 1, 1], [0], [0]>} : vector<1x8x4xf32>, vector<1x8x4xf32>, vector<1x8x8xf32> -> vector<1x8x8xf32>
    "tpu.trace_stop"() : () -> ()
    %cst_21 = arith.constant dense<0xFF800000> : vector<1x8xf32>
    %34 = vector.multi_reduction <maximumf>, %33, %cst_21 [2] : vector<1x8x8xf32> to vector<1x8xf32>
    %35 = vector.shape_cast %34 : vector<1x8xf32> to vector<1x8x1xf32>
    %36 = vector.broadcast %35 : vector<1x8x1xf32> to vector<1x8x8xf32>
    %37 = arith.subf %33, %36 : vector<1x8x8xf32>
    %38 = math.exp %37 : vector<1x8x8xf32>
    %cst_22 = arith.constant dense<0.000000e+00> : vector<1x8xf32>
    %39 = vector.multi_reduction <add>, %38, %cst_22 [2] : vector<1x8x8xf32> to vector<1x8xf32>
    %40 = vector.shape_cast %39 : vector<1x8xf32> to vector<1x8x1xf32>
    %41 = tpu.reciprocal %40 {approx = true} : vector<1x8x1xf32> -> vector<1x8x1xf32>
    %42 = vector.broadcast %41 : vector<1x8x1xf32> to vector<1x8x8xf32>
    %43 = arith.mulf %38, %42 : vector<1x8x8xf32>
    %cst_23 = arith.constant dense<0.000000e+00> : vector<8x8xf32>
    %44 = vector.multi_reduction <add>, %43, %cst_23 [0] : vector<1x8x8xf32> to vector<8x8xf32>
    %45 = arith.addf %23, %44 : vector<8x8xf32>
    "tpu.trace_start"() <{level = 10 : i32, message = "bnm,bmd->bnd"}> : () -> ()
    %cst_24 = arith.constant dense<0.000000e+00> : vector<1x8x4xf32>
    %46 = tpu.matmul %43, %32, %cst_24 {dimension_numbers = #tpu.dot_dimension_numbers<[2], [1], [1], [2], [0, 0, 0, 1, 1, 2], [0], [0]>} : vector<1x8x8xf32>, vector<1x8x4xf32>, vector<1x8x4xf32> -> vector<1x8x4xf32>
    "tpu.trace_stop"() : () -> ()
    %47 = vector.shape_cast %46 : vector<1x8x4xf32> to vector<8x4xf32>
    %c0_25 = arith.constant 0 : index
    %c4_26 = arith.constant 4 : index
    %48 = vector.load %arg8[%c0_25, %c4_26] : memref<8x32xf32, #tpu.memory_space<vmem>>, vector<8x4xf32>
    tpu.vector_store %arg8[%c0_25, %c4_26], %47 {strides = array<i32>} : memref<8x32xf32, #tpu.memory_space<vmem>>, vector<8x4xf32>,
    %c0_27 = arith.constant 0 : index
    %c8 = arith.constant 8 : index
    %49 = vector.load %arg7[%c0_27, %c8] : memref<8x96xf32, #tpu.memory_space<vmem>>, vector<8x4xf32>
    %50 = vector.shape_cast %49 : vector<8x4xf32> to vector<1x8x4xf32>
    %c0_28 = arith.constant 0 : index
    %c40 = arith.constant 40 : index
    %51 = vector.load %arg7[%c0_28, %c40] : memref<8x96xf32, #tpu.memory_space<vmem>>, vector<8x4xf32>
    %52 = vector.shape_cast %51 : vector<8x4xf32> to vector<1x8x4xf32>
    %c0_29 = arith.constant 0 : index
    %c72 = arith.constant 72 : index
    %53 = vector.load %arg7[%c0_29, %c72] : memref<8x96xf32, #tpu.memory_space<vmem>>, vector<8x4xf32>
    %54 = vector.shape_cast %53 : vector<8x4xf32> to vector<1x8x4xf32>
    "tpu.trace_start"() <{level = 10 : i32, message = "bnd,bmd->bnm"}> : () -> ()
    %cst_30 = arith.constant dense<0.000000e+00> : vector<1x8x8xf32>
    %55 = tpu.matmul %50, %52, %cst_30 {dimension_numbers = #tpu.dot_dimension_numbers<[2], [2], [1], [1], [0, 0, 0, 1, 1, 1], [0], [0]>} : vector<1x8x4xf32>, vector<1x8x4xf32>, vector<1x8x8xf32> -> vector<1x8x8xf32>
    "tpu.trace_stop"() : () -> ()
    %cst_31 = arith.constant dense<0xFF800000> : vector<1x8xf32>
    %56 = vector.multi_reduction <maximumf>, %55, %cst_31 [2] : vector<1x8x8xf32> to vector<1x8xf32>
    %57 = vector.shape_cast %56 : vector<1x8xf32> to vector<1x8x1xf32>
    %58 = vector.broadcast %57 : vector<1x8x1xf32> to vector<1x8x8xf32>
    %59 = arith.subf %55, %58 : vector<1x8x8xf32>
    %60 = math.exp %59 : vector<1x8x8xf32>
    %cst_32 = arith.constant dense<0.000000e+00> : vector<1x8xf32>
    %61 = vector.multi_reduction <add>, %60, %cst_32 [2] : vector<1x8x8xf32> to vector<1x8xf32>
    %62 = vector.shape_cast %61 : vector<1x8xf32> to vector<1x8x1xf32>
    %63 = tpu.reciprocal %62 {approx = true} : vector<1x8x1xf32> -> vector<1x8x1xf32>
    %64 = vector.broadcast %63 : vector<1x8x1xf32> to vector<1x8x8xf32>
    %65 = arith.mulf %60, %64 : vector<1x8x8xf32>
    %cst_33 = arith.constant dense<0.000000e+00> : vector<8x8xf32>
    %66 = vector.multi_reduction <add>, %65, %cst_33 [0] : vector<1x8x8xf32> to vector<8x8xf32>
    %67 = arith.addf %45, %66 : vector<8x8xf32>
    "tpu.trace_start"() <{level = 10 : i32, message = "bnm,bmd->bnd"}> : () -> ()
    %cst_34 = arith.constant dense<0.000000e+00> : vector<1x8x4xf32>
    %68 = tpu.matmul %65, %54, %cst_34 {dimension_numbers = #tpu.dot_dimension_numbers<[2], [1], [1], [2], [0, 0, 0, 1, 1, 2], [0], [0]>} : vector<1x8x8xf32>, vector<1x8x4xf32>, vector<1x8x4xf32> -> vector<1x8x4xf32>
    "tpu.trace_stop"() : () -> ()
    %69 = vector.shape_cast %68 : vector<1x8x4xf32> to vector<8x4xf32>
    %c0_35 = arith.constant 0 : index
    %c8_36 = arith.constant 8 : index
    %70 = vector.load %arg8[%c0_35, %c8_36] : memref<8x32xf32, #tpu.memory_space<vmem>>, vector<8x4xf32>
    tpu.vector_store %arg8[%c0_35, %c8_36], %69 {strides = array<i32>} : memref<8x32xf32, #tpu.memory_space<vmem>>, vector<8x4xf32>,
    %c0_37 = arith.constant 0 : index
    %c12 = arith.constant 12 : index
    %71 = vector.load %arg7[%c0_37, %c12] : memref<8x96xf32, #tpu.memory_space<vmem>>, vector<8x4xf32>
    %72 = vector.shape_cast %71 : vector<8x4xf32> to vector<1x8x4xf32>
    %c0_38 = arith.constant 0 : index
    %c44 = arith.constant 44 : index
    %73 = vector.load %arg7[%c0_38, %c44] : memref<8x96xf32, #tpu.memory_space<vmem>>, vector<8x4xf32>
    %74 = vector.shape_cast %73 : vector<8x4xf32> to vector<1x8x4xf32>
    %c0_39 = arith.constant 0 : index
    %c76 = arith.constant 76 : index
    %75 = vector.load %arg7[%c0_39, %c76] : memref<8x96xf32, #tpu.memory_space<vmem>>, vector<8x4xf32>
    %76 = vector.shape_cast %75 : vector<8x4xf32> to vector<1x8x4xf32>
    "tpu.trace_start"() <{level = 10 : i32, message = "bnd,bmd->bnm"}> : () -> ()
    %cst_40 = arith.constant dense<0.000000e+00> : vector<1x8x8xf32>
    %77 = tpu.matmul %72, %74, %cst_40 {dimension_numbers = #tpu.dot_dimension_numbers<[2], [2], [1], [1], [0, 0, 0, 1, 1, 1], [0], [0]>} : vector<1x8x4xf32>, vector<1x8x4xf32>, vector<1x8x8xf32> -> vector<1x8x8xf32>
    "tpu.trace_stop"() : () -> ()
    %cst_41 = arith.constant dense<0xFF800000> : vector<1x8xf32>
    %78 = vector.multi_reduction <maximumf>, %77, %cst_41 [2] : vector<1x8x8xf32> to vector<1x8xf32>
    %79 = vector.shape_cast %78 : vector<1x8xf32> to vector<1x8x1xf32>
    %80 = vector.broadcast %79 : vector<1x8x1xf32> to vector<1x8x8xf32>
    %81 = arith.subf %77, %80 : vector<1x8x8xf32>
    %82 = math.exp %81 : vector<1x8x8xf32>
    %cst_42 = arith.constant dense<0.000000e+00> : vector<1x8xf32>
    %83 = vector.multi_reduction <add>, %82, %cst_42 [2] : vector<1x8x8xf32> to vector<1x8xf32>
    %84 = vector.shape_cast %83 : vector<1x8xf32> to vector<1x8x1xf32>
    %85 = tpu.reciprocal %84 {approx = true} : vector<1x8x1xf32> -> vector<1x8x1xf32>
    %86 = vector.broadcast %85 : vector<1x8x1xf32> to vector<1x8x8xf32>
    %87 = arith.mulf %82, %86 : vector<1x8x8xf32>
    %cst_43 = arith.constant dense<0.000000e+00> : vector<8x8xf32>
    %88 = vector.multi_reduction <add>, %87, %cst_43 [0] : vector<1x8x8xf32> to vector<8x8xf32>
    %89 = arith.addf %67, %88 : vector<8x8xf32>
    "tpu.trace_start"() <{level = 10 : i32, message = "bnm,bmd->bnd"}> : () -> ()
    %cst_44 = arith.constant dense<0.000000e+00> : vector<1x8x4xf32>
    %90 = tpu.matmul %87, %76, %cst_44 {dimension_numbers = #tpu.dot_dimension_numbers<[2], [1], [1], [2], [0, 0, 0, 1, 1, 2], [0], [0]>} : vector<1x8x8xf32>, vector<1x8x4xf32>, vector<1x8x4xf32> -> vector<1x8x4xf32>
    "tpu.trace_stop"() : () -> ()
    %91 = vector.shape_cast %90 : vector<1x8x4xf32> to vector<8x4xf32>
    %c0_45 = arith.constant 0 : index
    %c12_46 = arith.constant 12 : index
    %92 = vector.load %arg8[%c0_45, %c12_46] : memref<8x32xf32, #tpu.memory_space<vmem>>, vector<8x4xf32>
    tpu.vector_store %arg8[%c0_45, %c12_46], %91 {strides = array<i32>} : memref<8x32xf32, #tpu.memory_space<vmem>>, vector<8x4xf32>,
    %c0_47 = arith.constant 0 : index
    %c16 = arith.constant 16 : index
    %93 = vector.load %arg7[%c0_47, %c16] : memref<8x96xf32, #tpu.memory_space<vmem>>, vector<8x4xf32>
    %94 = vector.shape_cast %93 : vector<8x4xf32> to vector<1x8x4xf32>
    %c0_48 = arith.constant 0 : index
    %c48 = arith.constant 48 : index
    %95 = vector.load %arg7[%c0_48, %c48] : memref<8x96xf32, #tpu.memory_space<vmem>>, vector<8x4xf32>
    %96 = vector.shape_cast %95 : vector<8x4xf32> to vector<1x8x4xf32>
    %c0_49 = arith.constant 0 : index
    %c80 = arith.constant 80 : index
    %97 = vector.load %arg7[%c0_49, %c80] : memref<8x96xf32, #tpu.memory_space<vmem>>, vector<8x4xf32>
    %98 = vector.shape_cast %97 : vector<8x4xf32> to vector<1x8x4xf32>
    "tpu.trace_start"() <{level = 10 : i32, message = "bnd,bmd->bnm"}> : () -> ()
    %cst_50 = arith.constant dense<0.000000e+00> : vector<1x8x8xf32>
    %99 = tpu.matmul %94, %96, %cst_50 {dimension_numbers = #tpu.dot_dimension_numbers<[2], [2], [1], [1], [0, 0, 0, 1, 1, 1], [0], [0]>} : vector<1x8x4xf32>, vector<1x8x4xf32>, vector<1x8x8xf32> -> vector<1x8x8xf32>
    "tpu.trace_stop"() : () -> ()
    %cst_51 = arith.constant dense<0xFF800000> : vector<1x8xf32>
    %100 = vector.multi_reduction <maximumf>, %99, %cst_51 [2] : vector<1x8x8xf32> to vector<1x8xf32>
    %101 = vector.shape_cast %100 : vector<1x8xf32> to vector<1x8x1xf32>
    %102 = vector.broadcast %101 : vector<1x8x1xf32> to vector<1x8x8xf32>
    %103 = arith.subf %99, %102 : vector<1x8x8xf32>
    %104 = math.exp %103 : vector<1x8x8xf32>
    %cst_52 = arith.constant dense<0.000000e+00> : vector<1x8xf32>
    %105 = vector.multi_reduction <add>, %104, %cst_52 [2] : vector<1x8x8xf32> to vector<1x8xf32>
    %106 = vector.shape_cast %105 : vector<1x8xf32> to vector<1x8x1xf32>
    %107 = tpu.reciprocal %106 {approx = true} : vector<1x8x1xf32> -> vector<1x8x1xf32>
    %108 = vector.broadcast %107 : vector<1x8x1xf32> to vector<1x8x8xf32>
    %109 = arith.mulf %104, %108 : vector<1x8x8xf32>
    %cst_53 = arith.constant dense<0.000000e+00> : vector<8x8xf32>
    %110 = vector.multi_reduction <add>, %109, %cst_53 [0] : vector<1x8x8xf32> to vector<8x8xf32>
    %111 = arith.addf %89, %110 : vector<8x8xf32>
    "tpu.trace_start"() <{level = 10 : i32, message = "bnm,bmd->bnd"}> : () -> ()
    %cst_54 = arith.constant dense<0.000000e+00> : vector<1x8x4xf32>
    %112 = tpu.matmul %109, %98, %cst_54 {dimension_numbers = #tpu.dot_dimension_numbers<[2], [1], [1], [2], [0, 0, 0, 1, 1, 2], [0], [0]>} : vector<1x8x8xf32>, vector<1x8x4xf32>, vector<1x8x4xf32> -> vector<1x8x4xf32>
    "tpu.trace_stop"() : () -> ()
    %113 = vector.shape_cast %112 : vector<1x8x4xf32> to vector<8x4xf32>
    %c0_55 = arith.constant 0 : index
    %c16_56 = arith.constant 16 : index
    %114 = vector.load %arg8[%c0_55, %c16_56] : memref<8x32xf32, #tpu.memory_space<vmem>>, vector<8x4xf32>
    tpu.vector_store %arg8[%c0_55, %c16_56], %113 {strides = array<i32>} : memref<8x32xf32, #tpu.memory_space<vmem>>, vector<8x4xf32>,
    %c0_57 = arith.constant 0 : index
    %c20 = arith.constant 20 : index
    %115 = vector.load %arg7[%c0_57, %c20] : memref<8x96xf32, #tpu.memory_space<vmem>>, vector<8x4xf32>
    %116 = vector.shape_cast %115 : vector<8x4xf32> to vector<1x8x4xf32>
    %c0_58 = arith.constant 0 : index
    %c52 = arith.constant 52 : index
    %117 = vector.load %arg7[%c0_58, %c52] : memref<8x96xf32, #tpu.memory_space<vmem>>, vector<8x4xf32>
    %118 = vector.shape_cast %117 : vector<8x4xf32> to vector<1x8x4xf32>
    %c0_59 = arith.constant 0 : index
    %c84 = arith.constant 84 : index
    %119 = vector.load %arg7[%c0_59, %c84] : memref<8x96xf32, #tpu.memory_space<vmem>>, vector<8x4xf32>
    %120 = vector.shape_cast %119 : vector<8x4xf32> to vector<1x8x4xf32>
    "tpu.trace_start"() <{level = 10 : i32, message = "bnd,bmd->bnm"}> : () -> ()
    %cst_60 = arith.constant dense<0.000000e+00> : vector<1x8x8xf32>
    %121 = tpu.matmul %116, %118, %cst_60 {dimension_numbers = #tpu.dot_dimension_numbers<[2], [2], [1], [1], [0, 0, 0, 1, 1, 1], [0], [0]>} : vector<1x8x4xf32>, vector<1x8x4xf32>, vector<1x8x8xf32> -> vector<1x8x8xf32>
    "tpu.trace_stop"() : () -> ()
    %cst_61 = arith.constant dense<0xFF800000> : vector<1x8xf32>
    %122 = vector.multi_reduction <maximumf>, %121, %cst_61 [2] : vector<1x8x8xf32> to vector<1x8xf32>
    %123 = vector.shape_cast %122 : vector<1x8xf32> to vector<1x8x1xf32>
    %124 = vector.broadcast %123 : vector<1x8x1xf32> to vector<1x8x8xf32>
    %125 = arith.subf %121, %124 : vector<1x8x8xf32>
    %126 = math.exp %125 : vector<1x8x8xf32>
    %cst_62 = arith.constant dense<0.000000e+00> : vector<1x8xf32>
    %127 = vector.multi_reduction <add>, %126, %cst_62 [2] : vector<1x8x8xf32> to vector<1x8xf32>
    %128 = vector.shape_cast %127 : vector<1x8xf32> to vector<1x8x1xf32>
    %129 = tpu.reciprocal %128 {approx = true} : vector<1x8x1xf32> -> vector<1x8x1xf32>
    %130 = vector.broadcast %129 : vector<1x8x1xf32> to vector<1x8x8xf32>
    %131 = arith.mulf %126, %130 : vector<1x8x8xf32>
    %cst_63 = arith.constant dense<0.000000e+00> : vector<8x8xf32>
    %132 = vector.multi_reduction <add>, %131, %cst_63 [0] : vector<1x8x8xf32> to vector<8x8xf32>
    %133 = arith.addf %111, %132 : vector<8x8xf32>
    "tpu.trace_start"() <{level = 10 : i32, message = "bnm,bmd->bnd"}> : () -> ()
    %cst_64 = arith.constant dense<0.000000e+00> : vector<1x8x4xf32>
    %134 = tpu.matmul %131, %120, %cst_64 {dimension_numbers = #tpu.dot_dimension_numbers<[2], [1], [1], [2], [0, 0, 0, 1, 1, 2], [0], [0]>} : vector<1x8x8xf32>, vector<1x8x4xf32>, vector<1x8x4xf32> -> vector<1x8x4xf32>
    "tpu.trace_stop"() : () -> ()
    %135 = vector.shape_cast %134 : vector<1x8x4xf32> to vector<8x4xf32>
    %c0_65 = arith.constant 0 : index
    %c20_66 = arith.constant 20 : index
    %136 = vector.load %arg8[%c0_65, %c20_66] : memref<8x32xf32, #tpu.memory_space<vmem>>, vector<8x4xf32>
    tpu.vector_store %arg8[%c0_65, %c20_66], %135 {strides = array<i32>} : memref<8x32xf32, #tpu.memory_space<vmem>>, vector<8x4xf32>,
    %c0_67 = arith.constant 0 : index
    %c24 = arith.constant 24 : index
    %137 = vector.load %arg7[%c0_67, %c24] : memref<8x96xf32, #tpu.memory_space<vmem>>, vector<8x4xf32>
    %138 = vector.shape_cast %137 : vector<8x4xf32> to vector<1x8x4xf32>
    %c0_68 = arith.constant 0 : index
    %c56 = arith.constant 56 : index
    %139 = vector.load %arg7[%c0_68, %c56] : memref<8x96xf32, #tpu.memory_space<vmem>>, vector<8x4xf32>
    %140 = vector.shape_cast %139 : vector<8x4xf32> to vector<1x8x4xf32>
    %c0_69 = arith.constant 0 : index
    %c88 = arith.constant 88 : index
    %141 = vector.load %arg7[%c0_69, %c88] : memref<8x96xf32, #tpu.memory_space<vmem>>, vector<8x4xf32>
    %142 = vector.shape_cast %141 : vector<8x4xf32> to vector<1x8x4xf32>
    "tpu.trace_start"() <{level = 10 : i32, message = "bnd,bmd->bnm"}> : () -> ()
    %cst_70 = arith.constant dense<0.000000e+00> : vector<1x8x8xf32>
    %143 = tpu.matmul %138, %140, %cst_70 {dimension_numbers = #tpu.dot_dimension_numbers<[2], [2], [1], [1], [0, 0, 0, 1, 1, 1], [0], [0]>} : vector<1x8x4xf32>, vector<1x8x4xf32>, vector<1x8x8xf32> -> vector<1x8x8xf32>
    "tpu.trace_stop"() : () -> ()
    %cst_71 = arith.constant dense<0xFF800000> : vector<1x8xf32>
    %144 = vector.multi_reduction <maximumf>, %143, %cst_71 [2] : vector<1x8x8xf32> to vector<1x8xf32>
    %145 = vector.shape_cast %144 : vector<1x8xf32> to vector<1x8x1xf32>
    %146 = vector.broadcast %145 : vector<1x8x1xf32> to vector<1x8x8xf32>
    %147 = arith.subf %143, %146 : vector<1x8x8xf32>
    %148 = math.exp %147 : vector<1x8x8xf32>
    %cst_72 = arith.constant dense<0.000000e+00> : vector<1x8xf32>
    %149 = vector.multi_reduction <add>, %148, %cst_72 [2] : vector<1x8x8xf32> to vector<1x8xf32>
    %150 = vector.shape_cast %149 : vector<1x8xf32> to vector<1x8x1xf32>
    %151 = tpu.reciprocal %150 {approx = true} : vector<1x8x1xf32> -> vector<1x8x1xf32>
    %152 = vector.broadcast %151 : vector<1x8x1xf32> to vector<1x8x8xf32>
    %153 = arith.mulf %148, %152 : vector<1x8x8xf32>
    %cst_73 = arith.constant dense<0.000000e+00> : vector<8x8xf32>
    %154 = vector.multi_reduction <add>, %153, %cst_73 [0] : vector<1x8x8xf32> to vector<8x8xf32>
    %155 = arith.addf %133, %154 : vector<8x8xf32>
    "tpu.trace_start"() <{level = 10 : i32, message = "bnm,bmd->bnd"}> : () -> ()
    %cst_74 = arith.constant dense<0.000000e+00> : vector<1x8x4xf32>
    %156 = tpu.matmul %153, %142, %cst_74 {dimension_numbers = #tpu.dot_dimension_numbers<[2], [1], [1], [2], [0, 0, 0, 1, 1, 2], [0], [0]>} : vector<1x8x8xf32>, vector<1x8x4xf32>, vector<1x8x4xf32> -> vector<1x8x4xf32>
    "tpu.trace_stop"() : () -> ()
    %157 = vector.shape_cast %156 : vector<1x8x4xf32> to vector<8x4xf32>
    %c0_75 = arith.constant 0 : index
    %c24_76 = arith.constant 24 : index
    %158 = vector.load %arg8[%c0_75, %c24_76] : memref<8x32xf32, #tpu.memory_space<vmem>>, vector<8x4xf32>
    tpu.vector_store %arg8[%c0_75, %c24_76], %157 {strides = array<i32>} : memref<8x32xf32, #tpu.memory_space<vmem>>, vector<8x4xf32>,
    %c0_77 = arith.constant 0 : index
    %c28 = arith.constant 28 : index
    %159 = vector.load %arg7[%c0_77, %c28] : memref<8x96xf32, #tpu.memory_space<vmem>>, vector<8x4xf32>
    %160 = vector.shape_cast %159 : vector<8x4xf32> to vector<1x8x4xf32>
    %c0_78 = arith.constant 0 : index
    %c60 = arith.constant 60 : index
    %161 = vector.load %arg7[%c0_78, %c60] : memref<8x96xf32, #tpu.memory_space<vmem>>, vector<8x4xf32>
    %162 = vector.shape_cast %161 : vector<8x4xf32> to vector<1x8x4xf32>
    %c0_79 = arith.constant 0 : index
    %c92 = arith.constant 92 : index
    %163 = vector.load %arg7[%c0_79, %c92] : memref<8x96xf32, #tpu.memory_space<vmem>>, vector<8x4xf32>
    %164 = vector.shape_cast %163 : vector<8x4xf32> to vector<1x8x4xf32>
    "tpu.trace_start"() <{level = 10 : i32, message = "bnd,bmd->bnm"}> : () -> ()
    %cst_80 = arith.constant dense<0.000000e+00> : vector<1x8x8xf32>
    %165 = tpu.matmul %160, %162, %cst_80 {dimension_numbers = #tpu.dot_dimension_numbers<[2], [2], [1], [1], [0, 0, 0, 1, 1, 1], [0], [0]>} : vector<1x8x4xf32>, vector<1x8x4xf32>, vector<1x8x8xf32> -> vector<1x8x8xf32>
    "tpu.trace_stop"() : () -> ()
    %cst_81 = arith.constant dense<0xFF800000> : vector<1x8xf32>
    %166 = vector.multi_reduction <maximumf>, %165, %cst_81 [2] : vector<1x8x8xf32> to vector<1x8xf32>
    %167 = vector.shape_cast %166 : vector<1x8xf32> to vector<1x8x1xf32>
    %168 = vector.broadcast %167 : vector<1x8x1xf32> to vector<1x8x8xf32>
    %169 = arith.subf %165, %168 : vector<1x8x8xf32>
    %170 = math.exp %169 : vector<1x8x8xf32>
    %cst_82 = arith.constant dense<0.000000e+00> : vector<1x8xf32>
    %171 = vector.multi_reduction <add>, %170, %cst_82 [2] : vector<1x8x8xf32> to vector<1x8xf32>
    %172 = vector.shape_cast %171 : vector<1x8xf32> to vector<1x8x1xf32>
    %173 = tpu.reciprocal %172 {approx = true} : vector<1x8x1xf32> -> vector<1x8x1xf32>
    %174 = vector.broadcast %173 : vector<1x8x1xf32> to vector<1x8x8xf32>
    %175 = arith.mulf %170, %174 : vector<1x8x8xf32>
    %cst_83 = arith.constant dense<0.000000e+00> : vector<8x8xf32>
    %176 = vector.multi_reduction <add>, %175, %cst_83 [0] : vector<1x8x8xf32> to vector<8x8xf32>
    %177 = arith.addf %155, %176 : vector<8x8xf32>
    "tpu.trace_start"() <{level = 10 : i32, message = "bnm,bmd->bnd"}> : () -> ()
    %cst_84 = arith.constant dense<0.000000e+00> : vector<1x8x4xf32>
    %178 = tpu.matmul %175, %164, %cst_84 {dimension_numbers = #tpu.dot_dimension_numbers<[2], [1], [1], [2], [0, 0, 0, 1, 1, 2], [0], [0]>} : vector<1x8x8xf32>, vector<1x8x4xf32>, vector<1x8x4xf32> -> vector<1x8x4xf32>
    "tpu.trace_stop"() : () -> ()
    %179 = vector.shape_cast %178 : vector<1x8x4xf32> to vector<8x4xf32>
    %c0_85 = arith.constant 0 : index
    %c28_86 = arith.constant 28 : index
    %180 = vector.load %arg8[%c0_85, %c28_86] : memref<8x32xf32, #tpu.memory_space<vmem>>, vector<8x4xf32>
    tpu.vector_store %arg8[%c0_85, %c28_86], %179 {strides = array<i32>} : memref<8x32xf32, #tpu.memory_space<vmem>>, vector<8x4xf32>,
    %c0_87 = arith.constant 0 : index
    %c0_88 = arith.constant 0 : index
    %181 = vector.load %arg8[%c0_87, %c0_88] : memref<8x32xf32, #tpu.memory_space<vmem>>, vector<8x32xf32>
    %c0_89 = arith.constant 0 : index
    %c0_90 = arith.constant 0 : index
    %182 = vector.load %arg3[%c0_89, %c0_90] : memref<32x32xf32, #tpu.memory_space<vmem>>, vector<32x32xf32>
    %cst_91 = arith.constant dense<0.000000e+00> : vector<8x32xf32>
    %183 = tpu.matmul %181, %182, %cst_91 {dimension_numbers = #tpu.dot_dimension_numbers<[1], [0], [0], [1], [0, 0, 1, 1], [], []>} : vector<8x32xf32>, vector<32x32xf32>, vector<8x32xf32> -> vector<8x32xf32>
    %c0_92 = arith.constant 0 : index
    %c0_93 = arith.constant 0 : index
    %184 = vector.load %arg4[%c0_92, %c0_93] : memref<1x32xf32, #tpu.memory_space<vmem>>, vector<1x32xf32>
    %185 = vector.broadcast %184 : vector<1x32xf32> to vector<8x32xf32>
    %186 = arith.addf %183, %185 : vector<8x32xf32>
    %c0_94 = arith.constant 0 : index
    %c0_95 = arith.constant 0 : index
    %187 = vector.load %arg5[%c0_94, %c0_95] : memref<8x32xf32, #tpu.memory_space<vmem>>, vector<8x32xf32>
    tpu.vector_store %arg5[%c0_94, %c0_95], %186 {strides = array<i32>} : memref<8x32xf32, #tpu.memory_space<vmem>>, vector<8x32xf32>,
    %c0_96 = arith.constant 0 : index
    %c0_97 = arith.constant 0 : index
    %c0_98 = arith.constant 0 : index
    %188 = vector.load %arg6[%c0_96, %c0_97, %c0_98] : memref<1x8x8xf32, #tpu.memory_space<vmem>>, vector<1x8x8xf32>
    %189 = vector.shape_cast %188 : vector<1x8x8xf32> to vector<8x8xf32>
    %190 = vector.shape_cast %177 : vector<8x8xf32> to vector<1x8x8xf32>
    tpu.vector_store %arg6[%c0_96, %c0_97, %c0_98], %190 {strides = array<i32>} : memref<1x8x8xf32, #tpu.memory_space<vmem>>, vector<1x8x8xf32>,
    return
  }
  func.func @transform_0(%arg0: i32) -> (i32, i32) {
    %c0_i32 = arith.constant 0 : i32
    %c0_i32_0 = arith.constant 0 : i32
    return %arg0, %c0_i32 : i32, i32
  }
  func.func @transform_1(%arg0: i32) -> (i32, i32) {
    %c0_i32 = arith.constant 0 : i32
    %c0_i32_0 = arith.constant 0 : i32
    %c0_i32_1 = arith.constant 0 : i32
    return %c0_i32, %c0_i32_0 : i32, i32
  }
  func.func @transform_2(%arg0: i32) -> (i32, i32) {
    %c0_i32 = arith.constant 0 : i32
    %c0_i32_0 = arith.constant 0 : i32
    %c0_i32_1 = arith.constant 0 : i32
    return %c0_i32, %c0_i32_0 : i32, i32
  }
  func.func @transform_3(%arg0: i32) -> (i32, i32) {
    %c0_i32 = arith.constant 0 : i32
    %c0_i32_0 = arith.constant 0 : i32
    %c0_i32_1 = arith.constant 0 : i32
    return %c0_i32, %c0_i32_0 : i32, i32
  }
  func.func @transform_4(%arg0: i32) -> (i32, i32) {
    %c0_i32 = arith.constant 0 : i32
    %c0_i32_0 = arith.constant 0 : i32
    return %arg0, %c0_i32 : i32, i32
  }
  func.func @transform_5(%arg0: i32) -> (i32, i32, i32) {
    %c0_i32 = arith.constant 0 : i32
    %c0_i32_0 = arith.constant 0 : i32
    %c0_i32_1 = arith.constant 0 : i32
    return %arg0, %c0_i32, %c0_i32_0 : i32, i32, i32
  }
}

</mosaic_0001>

<llo_original>
// kernel: tpu_custom_call.1
$region0: #{tpu_custom_call.1}
  #allocation0 [shape = 'u32[]', space=smem, size = 0x4, offset = 0x4, fixed_abs, tag = 'smem constant byte address 0x4 - core index']
  #allocation1 [shape = 'u32[72,128]{1,0:T(1,128)}', space=vmem, size = 0x9000, scoped, tag = 'internal scratch']
  #allocation2 [shape = 'f32[8,96]{1,0:T(8,128)}', space=vmem, size = 0x1000, scoped, tag = 'scratch operand']
  #allocation3 [shape = 'f32[8,32]{1,0:T(8,128)}', space=vmem, size = 0x1000, scoped, tag = 'scratch operand']
  %s0 = inlined_call_operand.hbm [shape: f32[16,32], index: 0, kind: input, shape index: {}]
  %s1 = inlined_call_operand.hbm [shape: f32[32,96], index: 1, kind: input, shape index: {}]
  %s2 = inlined_call_operand.hbm [shape: f32[32,32], index: 2, kind: input, shape index: {}]
  %s3 = inlined_call_operand.vmem [shape: f32[1,32], index: 3, kind: input, shape index: {}]
  %s4 = inlined_call_operand.hbm [shape: f32[16,32], index: 4, kind: output, shape index: {0}]
  %s5 = inlined_call_operand.hbm [shape: f32[2,8,8], index: 5, kind: output, shape index: {1}]
  %6 = xla_tuple %s4, %s5
  %s7 = sld [smem:[#allocation0]]
  $region69: #{tpu_custom_call.1} parent=0
    _
  %s9 = ssub.s32 1, %s7
  %s10 = scalar_select 0, %s9, %s7
  $region1: #{tpu_custom_call.1} parent=0
    #allocation4 [shape = 'u8[8192]{0}', space=vmem, size = 0x2000, scoped, tag = 'input window, operand 0']
    #allocation5 [shape = 's32[2]{0}', space=sflag, size = 0x8, scoped, tag = 'scoped memory for tpu_custom_call.1']
    #allocation6 [shape = 's32[2]{0}', space=sflag, size = 0x8, scoped, tag = 'scoped memory for tpu_custom_call.1']
    #allocation7 [shape = 'u8[16384]{0}', space=vmem, size = 0x4000, scoped, tag = 'input window, operand 1, single buffered']
    #allocation8 [shape = 's32[1]{0}', space=sflag, size = 0x4, scoped, tag = 'scoped memory for tpu_custom_call.1']
    #allocation9 [shape = 'u8[16384]{0}', space=vmem, size = 0x4000, scoped, tag = 'input window, operand 2, single buffered']
    #allocation10 [shape = 'u8[8192]{0}', space=vmem, size = 0x2000, scoped, tag = 'output window, operand 0']
    #allocation11 [shape = 'u8[8192]{0}', space=vmem, size = 0x2000, scoped, tag = 'output window, operand 1']
    #allocation12 [shape = 's32[2]{0}', space=sflag, size = 0x8, scoped, tag = 'scoped memory for tpu_custom_call.1']
    %11 = vsyncpa [#allocation5], 0
    %s12 = scalar_lea.sflag [#allocation5], 1
    %13 = vsyncpa %s12, 0
    %14 = vsyncpa [#allocation8], 0
    %15 = vsyncpa [#allocation6], 0
    %s16 = scalar_lea.sflag [#allocation6], 1
    %17 = vsyncpa %s16, 0
    %18 = vsyncpa [#allocation12], 0
    %s19 = scalar_lea.sflag [#allocation12], 1
    %20 = vsyncpa %s19, 0
    loop: start=0, step=1, limit=4
    $region2: #{tpu_custom_call.1} parent=1 // loop_pre_header
      _
    $region3: #{tpu_custom_call.1} parent=1 // loop_header
      %s22 = sphi 0, %s26
      %p23 = scmp.ge.s32.totalorder %s22, 4
      %s32 = sphi 0, %s34
      %s35 = sphi 0, %s32
      %s36 = sphi 0, %s35
      %s52 = sphi 0, %s36
      %s56 = sphi 0, %s56
      %s58 = sphi 0, %s56
      %s59 = sphi 0, %s58
      %s73 = sphi 0, %s59
      %s77 = sphi 0, %s77
      %s79 = sphi 0, %s77
      %s80 = sphi 0, %s79
      %s94 = sphi 0, %s80
      %s98 = sphi 0, %s98
      %s100 = sphi 0, %s98
      %s101 = sphi 0, %s100
      %s115 = sphi 0, %s101
      %s121 = sphi 0, %s123
      %s124 = sphi 0, %s121
      %s125 = sphi 0, %s124
      %s141 = sphi 0, %s125
      %s147 = sphi 0, %s149
      %s150 = sphi 0, %s147
      %s151 = sphi 0, %s150
      %s167 = sphi 0, %s151
    $region4: #{tpu_custom_call.1} parent=1 // loop_header_branch
      %25 = sbr.rel (%p23) target = $region8
    $region5: #{tpu_custom_call.1} parent=1 // loop_body
      %s27 = ssub.s32 %s22, 1
      %s28 = ssub.s32 %s22, 2
      %s29 = sadd.s32 %s22, 1
      %s30 = ssub.s32 %s22, %s29
      %p31 = scmp.eq.s32.totalorder %s30, 0
      %s33 = sadd.s32 %s32, 1
      %s34 = scalar_select %p31, %s32, %s33
      %p37 = pneg %p31
      %p38 = scmp.eq.s32.totalorder %s22, 1
      %p39 = por %p37, %p38
      %p40 = scmp.ne.s32.totalorder %s32, %s35
      %p41 = scmp.eq.s32.totalorder %s22, 0
      %p42 = por %p40, %p41
      %p43 = scmp.ne.s32.totalorder %s32, %s35
      %p44 = scmp.eq.s32.totalorder %s27, 1
      %p45 = por %p43, %p44
      %p46 = scmp.ne.s32.totalorder %s35, %s36
      %p47 = scmp.eq.s32.totalorder %s27, 0
      %p48 = por %p46, %p47
      %p49 = scmp.ne.s32.totalorder %s35, %s36
      %p50 = scmp.eq.s32.totalorder %s28, 1
      %p51 = por %p49, %p50
      %p53 = scmp.ne.s32.totalorder %s36, %s52
      %p54 = scmp.eq.s32.totalorder %s28, 0
      %p55 = por %p53, %p54
      %s57 = sadd.s32 %s56, 1
      %p60 = scmp.eq.s32.totalorder %s22, 1
      %p61 = scmp.ne.s32.totalorder %s56, %s58
      %p62 = scmp.eq.s32.totalorder %s22, 0
      %p63 = por %p61, %p62
      %p64 = scmp.ne.s32.totalorder %s56, %s58
      %p65 = scmp.eq.s32.totalorder %s27, 1
      %p66 = por %p64, %p65
      %p67 = scmp.ne.s32.totalorder %s58, %s59
      %p68 = scmp.eq.s32.totalorder %s27, 0
      %p69 = por %p67, %p68
      %p70 = scmp.ne.s32.totalorder %s58, %s59
      %p71 = scmp.eq.s32.totalorder %s28, 1
      %p72 = por %p70, %p71
      %p74 = scmp.ne.s32.totalorder %s59, %s73
      %p75 = scmp.eq.s32.totalorder %s28, 0
      %p76 = por %p74, %p75
      %s78 = sadd.s32 %s77, 1
      %p81 = scmp.eq.s32.totalorder %s22, 1
      %p82 = scmp.ne.s32.totalorder %s77, %s79
      %p83 = scmp.eq.s32.totalorder %s22, 0
      %p84 = por %p82, %p83
      %p85 = scmp.ne.s32.totalorder %s77, %s79
      %p86 = scmp.eq.s32.totalorder %s27, 1
      %p87 = por %p85, %p86
      %p88 = scmp.ne.s32.totalorder %s79, %s80
      %p89 = scmp.eq.s32.totalorder %s27, 0
      %p90 = por %p88, %p89
      %p91 = scmp.ne.s32.totalorder %s79, %s80
      %p92 = scmp.eq.s32.totalorder %s28, 1
      %p93 = por %p91, %p92
      %p95 = scmp.ne.s32.totalorder %s80, %s94
      %p96 = scmp.eq.s32.totalorder %s28, 0
      %p97 = por %p95, %p96
      %s99 = sadd.s32 %s98, 1
      %p102 = scmp.eq.s32.totalorder %s22, 1
      %p103 = scmp.ne.s32.totalorder %s98, %s100
      %p104 = scmp.eq.s32.totalorder %s22, 0
      %p105 = por %p103, %p104
      %p106 = scmp.ne.s32.totalorder %s98, %s100
      %p107 = scmp.eq.s32.totalorder %s27, 1
      %p108 = por %p106, %p107
      %p109 = scmp.ne.s32.totalorder %s100, %s101
      %p110 = scmp.eq.s32.totalorder %s27, 0
      %p111 = por %p109, %p110
      %p112 = scmp.ne.s32.totalorder %s100, %s101
      %p113 = scmp.eq.s32.totalorder %s28, 1
      %p114 = por %p112, %p113
      %p116 = scmp.ne.s32.totalorder %s101, %s115
      %p117 = scmp.eq.s32.totalorder %s28, 0
      %p118 = por %p116, %p117
      %s119 = ssub.s32 %s22, %s29
      %p120 = scmp.eq.s32.totalorder %s119, 0
      %s122 = sadd.s32 %s121, 1
      %s123 = scalar_select %p120, %s121, %s122
      %p126 = pneg %p120
      %p127 = scmp.eq.s32.totalorder %s22, 1
      %p128 = por %p126, %p127
      %p129 = scmp.ne.s32.totalorder %s121, %s124
      %p130 = scmp.eq.s32.totalorder %s22, 0
      %p131 = por %p129, %p130
      %p132 = scmp.ne.s32.totalorder %s121, %s124
      %p133 = scmp.eq.s32.totalorder %s27, 1
      %p134 = por %p132, %p133
      %p135 = scmp.ne.s32.totalorder %s124, %s125
      %p136 = scmp.eq.s32.totalorder %s27, 0
      %p137 = por %p135, %p136
      %p138 = scmp.ne.s32.totalorder %s124, %s125
      %p139 = scmp.eq.s32.totalorder %s28, 1
      %p140 = por %p138, %p139
      %p142 = scmp.ne.s32.totalorder %s125, %s141
      %p143 = scmp.eq.s32.totalorder %s28, 0
      %p144 = por %p142, %p143
      %s145 = ssub.s32 %s22, %s29
      %p146 = scmp.eq.s32.totalorder %s145, 0
      %s148 = sadd.s32 %s147, 1
      %s149 = scalar_select %p146, %s147, %s148
      %p152 = pneg %p146
      %p153 = scmp.eq.s32.totalorder %s22, 1
      %p154 = por %p152, %p153
      %p155 = scmp.ne.s32.totalorder %s147, %s150
      %p156 = scmp.eq.s32.totalorder %s22, 0
      %p157 = por %p155, %p156
      %p158 = scmp.ne.s32.totalorder %s147, %s150
      %p159 = scmp.eq.s32.totalorder %s27, 1
      %p160 = por %p158, %p159
      %p161 = scmp.ne.s32.totalorder %s150, %s151
      %p162 = scmp.eq.s32.totalorder %s27, 0
      %p163 = por %p161, %p162
      %p164 = scmp.ne.s32.totalorder %s150, %s151
      %p165 = scmp.eq.s32.totalorder %s28, 1
      %p166 = por %p164, %p165
      %p168 = scmp.ne.s32.totalorder %s151, %s167
      %p169 = scmp.eq.s32.totalorder %s28, 0
      %p170 = por %p168, %p169
      %p171 = scmp.le.s32.totalorder 1, %s22
      %p172 = scmp.lt.s32.totalorder %s22, 3
      %p173 = pnand %p171, %p172
      %p174 = pneg %p173
      // Predicated region
      $region9: #{tpu_custom_call.1} parent=5 // pred_check
        _
      $region10: #{tpu_custom_call.1} parent=5 // pred_check_branch
        %176 = sbr.rel (%p173) target = $region12
      $region11: #{tpu_custom_call.1} parent=5 // pred_region
        %s177 = ssub.s32 %s22, 1
        // Predicated region
        $region13: #{tpu_custom_call.1} parent=11 // pred_check
          %p178 = pneg %p69
        $region14: #{tpu_custom_call.1} parent=11 // pred_check_branch
          %180 = sbr.rel (%p178) target = $region16
        $region15: #{tpu_custom_call.1} parent=11 // pred_region
          %182 = vsyncadd [#allocation8], 0
          %s183 = sshll.u32 %s1, 4
          %s184 = int_to_ptr.hbm [resolvable:$true] %s183
          %s185 = sshll.u32 [#allocation7], 4
          %s186 = int_to_ptr.vmem [resolvable:$true] %s185
          %191 = dma.hbm_to_vmem [thread:$0]  %s184, 512, %s186, [#allocation8], 128, 128, 8
        $region16: #{tpu_custom_call.1} parent=11 // pred_fallthru
          _
        // Predicated region
        $region17: #{tpu_custom_call.1} parent=11 // pred_check
          %p192 = pneg %p90
        $region18: #{tpu_custom_call.1} parent=11 // pred_check_branch
          %194 = sbr.rel (%p192) target = $region20
        $region19: #{tpu_custom_call.1} parent=11 // pred_region
          %196 = vsyncadd [#allocation8], 0
          %s197 = sshll.u32 %s2, 4
          %s198 = int_to_ptr.hbm [resolvable:$true] %s197
          %s199 = sshll.u32 [#allocation9], 4
          %s200 = int_to_ptr.vmem [resolvable:$true] %s199
          %205 = dma.hbm_to_vmem [thread:$0]  %s198, 512, %s200, [#allocation8], 128, 128, 8
        $region20: #{tpu_custom_call.1} parent=11 // pred_fallthru
          _
        // Predicated region
        $region21: #{tpu_custom_call.1} parent=11 // pred_check
          %p206 = pneg %p111
        $region22: #{tpu_custom_call.1} parent=11 // pred_check_branch
          %208 = sbr.rel (%p206) target = $region24
        $region23: #{tpu_custom_call.1} parent=11 // pred_region
          _
        $region24: #{tpu_custom_call.1} parent=11 // pred_fallthru
          _
      $region12: #{tpu_custom_call.1} parent=5 // pred_fallthru
        _
      %p209 = scmp.lt.s32.totalorder %s22, 2
      // Predicated region
      $region25: #{tpu_custom_call.1} parent=5 // pred_check
        %p210 = pneg %p209
      $region26: #{tpu_custom_call.1} parent=5 // pred_check_branch
        %212 = sbr.rel (%p210) target = $region28
      $region27: #{tpu_custom_call.1} parent=5 // pred_region
        // Predicated region
        $region29: #{tpu_custom_call.1} parent=27 // pred_check
          %p213 = pneg %p42
        $region30: #{tpu_custom_call.1} parent=27 // pred_check_branch
          %215 = sbr.rel (%p213) target = $region32
        $region31: #{tpu_custom_call.1} parent=27 // pred_region
          %s216 = sand.u32 %s32, 1
          %s217 = scalar_lea.sflag [#allocation5], %s216
          %s218 = sand.u32 %s32, 1
          %s219 = smul.addr %s218, 8
          %s220 = scalar_lea.vmem [#allocation4], %s219
          %222 = vsyncadd %s217, 0
          %s223 = smul.addr %s22, 8
          %s224 = scalar_lea.hbm %s0, %s223
          %s226 = sshll.u32 %s224, 4
          %s227 = int_to_ptr.hbm [resolvable:$true] %s226
          %s228 = sshll.u32 %s220, 4
          %s229 = int_to_ptr.vmem [resolvable:$true] %s228
          %231 = dma.hbm_to_vmem [thread:$0]  %s227, 128, %s229, %s217
        $region32: #{tpu_custom_call.1} parent=27 // pred_fallthru
          _
      $region28: #{tpu_custom_call.1} parent=5 // pred_fallthru
        _
      %p232 = scmp.le.s32.totalorder 1, %s22
      %p233 = scmp.lt.s32.totalorder %s22, 3
      %p234 = pnand %p232, %p233
      %p235 = pneg %p234
      // Predicated region
      $region33: #{tpu_custom_call.1} parent=5 // pred_check
        _
      $region34: #{tpu_custom_call.1} parent=5 // pred_check_branch
        %237 = sbr.rel (%p234) target = $region36
      $region35: #{tpu_custom_call.1} parent=5 // pred_region
        %s238 = ssub.s32 %s22, 1
        %s239 = sand.u32 %s35, 1
        %s240 = scalar_lea.sflag [#allocation5], %s239
        %s241 = sand.u32 %s35, 1
        %s242 = smul.addr %s241, 8
        %s243 = scalar_lea.vmem [#allocation4], %s242
        // Predicated region
        $region37: #{tpu_custom_call.1} parent=35 // pred_check
          %p244 = pneg %p48
        $region38: #{tpu_custom_call.1} parent=35 // pred_check_branch
          %246 = sbr.rel (%p244) target = $region40
        $region39: #{tpu_custom_call.1} parent=35 // pred_region
          %248 = dma.done %s240, 128
        $region40: #{tpu_custom_call.1} parent=35 // pred_fallthru
          _
        // Predicated region
        $region41: #{tpu_custom_call.1} parent=35 // pred_check
          %p249 = pneg %p69
        $region42: #{tpu_custom_call.1} parent=35 // pred_check_branch
          %251 = sbr.rel (%p249) target = $region44
        $region43: #{tpu_custom_call.1} parent=35 // pred_region
          %253 = dma.done [#allocation8], 512
        $region44: #{tpu_custom_call.1} parent=35 // pred_fallthru
          _
        // Predicated region
        $region45: #{tpu_custom_call.1} parent=35 // pred_check
          %p254 = pneg %p90
        $region46: #{tpu_custom_call.1} parent=35 // pred_check_branch
          %256 = sbr.rel (%p254) target = $region48
        $region47: #{tpu_custom_call.1} parent=35 // pred_region
          %258 = dma.done [#allocation8], 512
        $region48: #{tpu_custom_call.1} parent=35 // pred_fallthru
          _
        %s259 = sand.u32 %s35, 1
        %s260 = scalar_lea.sflag [#allocation5], %s259
        %s261 = sand.u32 %s35, 1
        %s262 = smul.addr %s261, 8
        %s263 = scalar_lea.vmem [#allocation4], %s262
        %p264 = pneg %p48
        %p265 = pneg %p45
        %p266 = pneg %p69
        %p267 = pneg %p66
        %p268 = pneg %p90
        %p269 = pneg %p87
        %p270 = pneg %p111
        %p271 = pneg %p108
        %p272 = pneg %p137
        %p273 = pneg %p134
        %s274 = sand.u32 %s124, 1
        %s275 = scalar_lea.sflag [#allocation6], %s274
        %s276 = sand.u32 %s124, 1
        %s277 = smul.addr %s276, 8
        %s278 = scalar_lea.vmem [#allocation10], %s277
        %p279 = pneg %p163
        %p280 = pneg %p160
        %s281 = sand.u32 %s150, 1
        %s282 = scalar_lea.sflag [#allocation12], %s281
        %s283 = sand.u32 %s150, 1
        %s284 = smul.addr %s283, 8
        %s285 = scalar_lea.vmem [#allocation11], %s284
        %v286 = vld [vmem:[%s243] sm:$0xff]
        %v287 = vld [vmem:[#allocation7] sm:$0xff]
        %v288 = vld [vmem:[#allocation7 + $0x8] sm:$0xff]
        %v289 = vld [vmem:[#allocation7 + $0x10] sm:$0xff]
        %v290 = vld [vmem:[#allocation7 + $0x18] sm:$0xff]
        %vm291 = vcmask 261120
        %v293 = vsel %vm291, %v286, 0
        %295 = vmatpush.msra.mxu0 0.0
        %296 = vmatpush.msra.mxu0 0.0
        %297 = vmatpush.msra.mxu0 0.0
        %298 = vmatpush.msra.mxu0 0.0
        %299 = vmatpush.msra.mxu0 0.0
        %300 = vmatpush.msra.mxu0 0.0
        %301 = vmatpush.msra.mxu0 0.0
        %302 = vmatpush.msra.mxu0 0.0
        %303 = vmatpush.msra.mxu0 0.0
        %304 = vmatpush.msra.mxu0 0.0
        %305 = vmatpush.msra.mxu0 0.0
        %306 = vmatpush.msra.mxu0 0.0
        %307 = vmatpush.msra.mxu0 %v290
        %308 = vmatpush.msra.mxu0 %v289
        %309 = vmatpush.msra.mxu0 %v288
        %310 = vmatpush.msra.mxu0 %v287
        %311 = vmatmul.f32.gmra.mxu0 %v293
        %v312 = vpop.f32.mrf.mxu0
        %v313 = vadd.f32 0.0, %v312
        %314 = vdwg.mxu0
        %vm315 = vcmask 785408
        %316 = vst.msk [vmem:[#allocation2] sm:$0xff] %vm315, %v313
        %v317 = vld [vmem:[#allocation2] sm:$0xff]
        %319 = vrot.lane.b32.xlu0 %v317, 96
        %v320 = vpop.permute.xlu0 %319
        %vm321 = vcmask 31744
        %v322 = vsel %vm321, %v317, 0
        %v324 = vsel %vm321, %v320, 0
        %326 = vmatpush.xpose.msra.mxu0 0.0
        %327 = vmatpush.xpose.msra.mxu0 0.0
        %328 = vmatpush.xpose.msra.mxu0 0.0
        %329 = vmatpush.xpose.msra.mxu0 0.0
        %330 = vmatpush.xpose.msra.mxu0 0.0
        %331 = vmatpush.xpose.msra.mxu0 0.0
        %332 = vmatpush.xpose.msra.mxu0 0.0
        %333 = vmatpush.xpose.msra.mxu0 0.0
        %334 = vmatpush.xpose.msra.mxu0 0.0
        %335 = vmatpush.xpose.msra.mxu0 0.0
        %336 = vmatpush.xpose.msra.mxu0 0.0
        %337 = vmatpush.xpose.msra.mxu0 0.0
        %338 = vmatpush.xpose.msra.mxu0 0.0
        %339 = vmatpush.xpose.msra.mxu0 0.0
        %340 = vmatpush.xpose.msra.mxu0 0.0
        %341 = vmatpush.xpose.msra.mxu0 %v324
        %342 = vmatmul.f32.gmra.mxu0 %v322
        %v343 = vpop.f32.mrf.mxu0
        %v344 = vadd.f32 0.0, %v343
        %345 = vdwg.mxu0
        %vm346 = vcmask 64512
        %v347 = vsel %vm346, %v344, -inf
        %348 = vmax.xlane.f32.xlu0 %v347
        %v349 = vpop.xlane.xlu0 %348
        %v350 = vsub.f32 %v344, %v349
        %v351 = vmul.f32 %v350, 1.442695
        %v352 = vpow.pop %v351
        %v353 = vsel %vm346, %v352, 0.0
        %354 = vadd.xlane.f32.xlu0 %v353
        %v355 = vpop.xlane.xlu0 %354
        %v356 = vrcp.pop %v355
        %v357 = vmul.f32 %v352, %v356
        %v358 = vadd.f32 %v357, 0.0
        %v359 = vadd.f32 %v358, 0.0
        %360 = vrot.lane.b32.xlu0 %v317, 64
        %v361 = vpop.permute.xlu0 %360
        %v364 = vsel %vm346, %v357, 0
        %366 = vmatpush.msra.mxu0 0.0
        %367 = vmatpush.msra.mxu0 0.0
        %368 = vmatpush.msra.mxu0 0.0
        %369 = vmatpush.msra.mxu0 0.0
        %370 = vmatpush.msra.mxu0 0.0
        %371 = vmatpush.msra.mxu0 0.0
        %372 = vmatpush.msra.mxu0 0.0
        %373 = vmatpush.msra.mxu0 0.0
        %374 = vmatpush.msra.mxu0 0.0
        %375 = vmatpush.msra.mxu0 0.0
        %376 = vmatpush.msra.mxu0 0.0
        %377 = vmatpush.msra.mxu0 0.0
        %378 = vmatpush.msra.mxu0 0.0
        %379 = vmatpush.msra.mxu0 0.0
        %380 = vmatpush.msra.mxu0 0.0
        %381 = vmatpush.msra.mxu0 %v361
        %382 = vmatmul.f32.gmra.mxu0 %v364
        %v383 = vpop.f32.mrf.mxu0
        %v384 = vadd.f32 0.0, %v383
        %385 = vdwg.mxu0
        %386 = vst.msk [vmem:[#allocation3] sm:$0xff] %vm321, %v384
        %v387 = vld [vmem:[#allocation2] sm:$0xff]
        %389 = vrot.lane.b32.xlu0 %v387, 124
        %v390 = vpop.permute.xlu0 %389
        %391 = vrot.lane.b32.xlu0 %v387, 92
        %v392 = vpop.permute.xlu0 %391
        %v393 = vsel %vm321, %v390, 0
        %v395 = vsel %vm321, %v392, 0
        %397 = vmatpush.xpose.msra.mxu0 0.0
        %398 = vmatpush.xpose.msra.mxu0 0.0
        %399 = vmatpush.xpose.msra.mxu0 0.0
        %400 = vmatpush.xpose.msra.mxu0 0.0
        %401 = vmatpush.xpose.msra.mxu0 0.0
        %402 = vmatpush.xpose.msra.mxu0 0.0
        %403 = vmatpush.xpose.msra.mxu0 0.0
        %404 = vmatpush.xpose.msra.mxu0 0.0
        %405 = vmatpush.xpose.msra.mxu0 0.0
        %406 = vmatpush.xpose.msra.mxu0 0.0
        %407 = vmatpush.xpose.msra.mxu0 0.0
        %408 = vmatpush.xpose.msra.mxu0 0.0
        %409 = vmatpush.xpose.msra.mxu0 0.0
        %410 = vmatpush.xpose.msra.mxu0 0.0
        %411 = vmatpush.xpose.msra.mxu0 0.0
        %412 = vmatpush.xpose.msra.mxu0 %v395
        %413 = vmatmul.f32.gmra.mxu0 %v393
        %v414 = vpop.f32.mrf.mxu0
        %v415 = vadd.f32 0.0, %v414
        %416 = vdwg.mxu0
        %v417 = vsel %vm346, %v415, -inf
        %418 = vmax.xlane.f32.xlu0 %v417
        %v419 = vpop.xlane.xlu0 %418
        %v420 = vsub.f32 %v415, %v419
        %v421 = vmul.f32 %v420, 1.442695
        %v422 = vpow.pop %v421
        %v423 = vsel %vm346, %v422, 0.0
        %424 = vadd.xlane.f32.xlu0 %v423
        %v425 = vpop.xlane.xlu0 %424
        %v426 = vrcp.pop %v425
        %v427 = vmul.f32 %v422, %v426
        %v428 = vadd.f32 %v427, 0.0
        %v429 = vadd.f32 %v359, %v428
        %430 = vrot.lane.b32.xlu0 %v387, 60
        %v431 = vpop.permute.xlu0 %430
        %v434 = vsel %vm346, %v427, 0
        %436 = vmatpush.msra.mxu0 0.0
        %437 = vmatpush.msra.mxu0 0.0
        %438 = vmatpush.msra.mxu0 0.0
        %439 = vmatpush.msra.mxu0 0.0
        %440 = vmatpush.msra.mxu0 0.0
        %441 = vmatpush.msra.mxu0 0.0
        %442 = vmatpush.msra.mxu0 0.0
        %443 = vmatpush.msra.mxu0 0.0
        %444 = vmatpush.msra.mxu0 0.0
        %445 = vmatpush.msra.mxu0 0.0
        %446 = vmatpush.msra.mxu0 0.0
        %447 = vmatpush.msra.mxu0 0.0
        %448 = vmatpush.msra.mxu0 0.0
        %449 = vmatpush.msra.mxu0 0.0
        %450 = vmatpush.msra.mxu0 0.0
        %451 = vmatpush.msra.mxu0 %v431
        %452 = vmatmul.f32.gmra.mxu0 %v434
        %v453 = vpop.f32.mrf.mxu0
        %v454 = vadd.f32 0.0, %v453
        %455 = vdwg.mxu0
        %457 = vrot.lane.b32.xlu0 %v454, 4
        %v458 = vpop.permute.xlu0 %457
        %vm460 = vcmask 64544
        %461 = vst.msk [vmem:[#allocation3] sm:$0xff] %vm460, %v458
        %v462 = vld [vmem:[#allocation2] sm:$0xff]
        %464 = vrot.lane.b32.xlu0 %v462, 120
        %v465 = vpop.permute.xlu0 %464
        %466 = vrot.lane.b32.xlu0 %v462, 88
        %v467 = vpop.permute.xlu0 %466
        %v468 = vsel %vm321, %v465, 0
        %v470 = vsel %vm321, %v467, 0
        %472 = vmatpush.xpose.msra.mxu0 0.0
        %473 = vmatpush.xpose.msra.mxu0 0.0
        %474 = vmatpush.xpose.msra.mxu0 0.0
        %475 = vmatpush.xpose.msra.mxu0 0.0
        %476 = vmatpush.xpose.msra.mxu0 0.0
        %477 = vmatpush.xpose.msra.mxu0 0.0
        %478 = vmatpush.xpose.msra.mxu0 0.0
        %479 = vmatpush.xpose.msra.mxu0 0.0
        %480 = vmatpush.xpose.msra.mxu0 0.0
        %481 = vmatpush.xpose.msra.mxu0 0.0
        %482 = vmatpush.xpose.msra.mxu0 0.0
        %483 = vmatpush.xpose.msra.mxu0 0.0
        %484 = vmatpush.xpose.msra.mxu0 0.0
        %485 = vmatpush.xpose.msra.mxu0 0.0
        %486 = vmatpush.xpose.msra.mxu0 0.0
        %487 = vmatpush.xpose.msra.mxu0 %v470
        %488 = vmatmul.f32.gmra.mxu0 %v468
        %v489 = vpop.f32.mrf.mxu0
        %v490 = vadd.f32 0.0, %v489
        %491 = vdwg.mxu0
        %v492 = vsel %vm346, %v490, -inf
        %493 = vmax.xlane.f32.xlu0 %v492
        %v494 = vpop.xlane.xlu0 %493
        %v495 = vsub.f32 %v490, %v494
        %v496 = vmul.f32 %v495, 1.442695
        %v497 = vpow.pop %v496
        %v498 = vsel %vm346, %v497, 0.0
        %499 = vadd.xlane.f32.xlu0 %v498
        %v500 = vpop.xlane.xlu0 %499
        %v501 = vrcp.pop %v500
        %v502 = vmul.f32 %v497, %v501
        %v503 = vadd.f32 %v502, 0.0
        %v504 = vadd.f32 %v429, %v503
        %505 = vrot.lane.b32.xlu0 %v462, 56
        %v506 = vpop.permute.xlu0 %505
        %v509 = vsel %vm346, %v502, 0
        %511 = vmatpush.msra.mxu0 0.0
        %512 = vmatpush.msra.mxu0 0.0
        %513 = vmatpush.msra.mxu0 0.0
        %514 = vmatpush.msra.mxu0 0.0
        %515 = vmatpush.msra.mxu0 0.0
        %516 = vmatpush.msra.mxu0 0.0
        %517 = vmatpush.msra.mxu0 0.0
        %518 = vmatpush.msra.mxu0 0.0
        %519 = vmatpush.msra.mxu0 0.0
        %520 = vmatpush.msra.mxu0 0.0
        %521 = vmatpush.msra.mxu0 0.0
        %522 = vmatpush.msra.mxu0 0.0
        %523 = vmatpush.msra.mxu0 0.0
        %524 = vmatpush.msra.mxu0 0.0
        %525 = vmatpush.msra.mxu0 0.0
        %526 = vmatpush.msra.mxu0 %v506
        %527 = vmatmul.f32.gmra.mxu0 %v509
        %v528 = vpop.f32.mrf.mxu0
        %v529 = vadd.f32 0.0, %v528
        %530 = vdwg.mxu0
        %532 = vrot.lane.b32.xlu0 %v529, 8
        %v533 = vpop.permute.xlu0 %532
        %vm535 = vcmask 97344
        %536 = vst.msk [vmem:[#allocation3] sm:$0xff] %vm535, %v533
        %v537 = vld [vmem:[#allocation2] sm:$0xff]
        %539 = vrot.lane.b32.xlu0 %v537, 116
        %v540 = vpop.permute.xlu0 %539
        %541 = vrot.lane.b32.xlu0 %v537, 84
        %v542 = vpop.permute.xlu0 %541
        %v543 = vsel %vm321, %v540, 0
        %v545 = vsel %vm321, %v542, 0
        %547 = vmatpush.xpose.msra.mxu0 0.0
        %548 = vmatpush.xpose.msra.mxu0 0.0
        %549 = vmatpush.xpose.msra.mxu0 0.0
        %550 = vmatpush.xpose.msra.mxu0 0.0
        %551 = vmatpush.xpose.msra.mxu0 0.0
        %552 = vmatpush.xpose.msra.mxu0 0.0
        %553 = vmatpush.xpose.msra.mxu0 0.0
        %554 = vmatpush.xpose.msra.mxu0 0.0
        %555 = vmatpush.xpose.msra.mxu0 0.0
        %556 = vmatpush.xpose.msra.mxu0 0.0
        %557 = vmatpush.xpose.msra.mxu0 0.0
        %558 = vmatpush.xpose.msra.mxu0 0.0
        %559 = vmatpush.xpose.msra.mxu0 0.0
        %560 = vmatpush.xpose.msra.mxu0 0.0
        %561 = vmatpush.xpose.msra.mxu0 0.0
        %562 = vmatpush.xpose.msra.mxu0 %v545
        %563 = vmatmul.f32.gmra.mxu0 %v543
        %v564 = vpop.f32.mrf.mxu0
        %v565 = vadd.f32 0.0, %v564
        %566 = vdwg.mxu0
        %v567 = vsel %vm346, %v565, -inf
        %568 = vmax.xlane.f32.xlu0 %v567
        %v569 = vpop.xlane.xlu0 %568
        %v570 = vsub.f32 %v565, %v569
        %v571 = vmul.f32 %v570, 1.442695
        %v572 = vpow.pop %v571
        %v573 = vsel %vm346, %v572, 0.0
        %574 = vadd.xlane.f32.xlu0 %v573
        %v575 = vpop.xlane.xlu0 %574
        %v576 = vrcp.pop %v575
        %v577 = vmul.f32 %v572, %v576
        %v578 = vadd.f32 %v577, 0.0
        %v579 = vadd.f32 %v504, %v578
        %580 = vrot.lane.b32.xlu0 %v537, 52
        %v581 = vpop.permute.xlu0 %580
        %v584 = vsel %vm346, %v577, 0
        %586 = vmatpush.msra.mxu0 0.0
        %587 = vmatpush.msra.mxu0 0.0
        %588 = vmatpush.msra.mxu0 0.0
        %589 = vmatpush.msra.mxu0 0.0
        %590 = vmatpush.msra.mxu0 0.0
        %591 = vmatpush.msra.mxu0 0.0
        %592 = vmatpush.msra.mxu0 0.0
        %593 = vmatpush.msra.mxu0 0.0
        %594 = vmatpush.msra.mxu0 0.0
        %595 = vmatpush.msra.mxu0 0.0
        %596 = vmatpush.msra.mxu0 0.0
        %597 = vmatpush.msra.mxu0 0.0
        %598 = vmatpush.msra.mxu0 0.0
        %599 = vmatpush.msra.mxu0 0.0
        %600 = vmatpush.msra.mxu0 0.0
        %601 = vmatpush.msra.mxu0 %v581
        %602 = vmatmul.f32.gmra.mxu0 %v584
        %v603 = vpop.f32.mrf.mxu0
        %v604 = vadd.f32 0.0, %v603
        %605 = vdwg.mxu0
        %607 = vrot.lane.b32.xlu0 %v604, 12
        %v608 = vpop.permute.xlu0 %607
        %vm610 = vcmask 130144
        %611 = vst.msk [vmem:[#allocation3] sm:$0xff] %vm610, %v608
        %v612 = vld [vmem:[#allocation2] sm:$0xff]
        %614 = vrot.lane.b32.xlu0 %v612, 112
        %v615 = vpop.permute.xlu0 %614
        %616 = vrot.lane.b32.xlu0 %v612, 80
        %v617 = vpop.permute.xlu0 %616
        %v618 = vsel %vm321, %v615, 0
        %v620 = vsel %vm321, %v617, 0
        %622 = vmatpush.xpose.msra.mxu0 0.0
        %623 = vmatpush.xpose.msra.mxu0 0.0
        %624 = vmatpush.xpose.msra.mxu0 0.0
        %625 = vmatpush.xpose.msra.mxu0 0.0
        %626 = vmatpush.xpose.msra.mxu0 0.0
        %627 = vmatpush.xpose.msra.mxu0 0.0
        %628 = vmatpush.xpose.msra.mxu0 0.0
        %629 = vmatpush.xpose.msra.mxu0 0.0
        %630 = vmatpush.xpose.msra.mxu0 0.0
        %631 = vmatpush.xpose.msra.mxu0 0.0
        %632 = vmatpush.xpose.msra.mxu0 0.0
        %633 = vmatpush.xpose.msra.mxu0 0.0
        %634 = vmatpush.xpose.msra.mxu0 0.0
        %635 = vmatpush.xpose.msra.mxu0 0.0
        %636 = vmatpush.xpose.msra.mxu0 0.0
        %637 = vmatpush.xpose.msra.mxu0 %v620
        %638 = vmatmul.f32.gmra.mxu0 %v618
        %v639 = vpop.f32.mrf.mxu0
        %v640 = vadd.f32 0.0, %v639
        %641 = vdwg.mxu0
        %v642 = vsel %vm346, %v640, -inf
        %643 = vmax.xlane.f32.xlu0 %v642
        %v644 = vpop.xlane.xlu0 %643
        %v645 = vsub.f32 %v640, %v644
        %v646 = vmul.f32 %v645, 1.442695
        %v647 = vpow.pop %v646
        %v648 = vsel %vm346, %v647, 0.0
        %649 = vadd.xlane.f32.xlu0 %v648
        %v650 = vpop.xlane.xlu0 %649
        %v651 = vrcp.pop %v650
        %v652 = vmul.f32 %v647, %v651
        %v653 = vadd.f32 %v652, 0.0
        %v654 = vadd.f32 %v579, %v653
        %655 = vrot.lane.b32.xlu0 %v612, 48
        %v656 = vpop.permute.xlu0 %655
        %v659 = vsel %vm346, %v652, 0
        %661 = vmatpush.msra.mxu0 0.0
        %662 = vmatpush.msra.mxu0 0.0
        %663 = vmatpush.msra.mxu0 0.0
        %664 = vmatpush.msra.mxu0 0.0
        %665 = vmatpush.msra.mxu0 0.0
        %666 = vmatpush.msra.mxu0 0.0
        %667 = vmatpush.msra.mxu0 0.0
        %668 = vmatpush.msra.mxu0 0.0
        %669 = vmatpush.msra.mxu0 0.0
        %670 = vmatpush.msra.mxu0 0.0
        %671 = vmatpush.msra.mxu0 0.0
        %672 = vmatpush.msra.mxu0 0.0
        %673 = vmatpush.msra.mxu0 0.0
        %674 = vmatpush.msra.mxu0 0.0
        %675 = vmatpush.msra.mxu0 0.0
        %676 = vmatpush.msra.mxu0 %v656
        %677 = vmatmul.f32.gmra.mxu0 %v659
        %v678 = vpop.f32.mrf.mxu0
        %v679 = vadd.f32 0.0, %v678
        %680 = vdwg.mxu0
        %682 = vrot.lane.b32.xlu0 %v679, 16
        %v683 = vpop.permute.xlu0 %682
        %vm685 = vcmask 162944
        %686 = vst.msk [vmem:[#allocation3] sm:$0xff] %vm685, %v683
        %v687 = vld [vmem:[#allocation2] sm:$0xff]
        %689 = vrot.lane.b32.xlu0 %v687, 108
        %v690 = vpop.permute.xlu0 %689
        %691 = vrot.lane.b32.xlu0 %v687, 76
        %v692 = vpop.permute.xlu0 %691
        %v693 = vsel %vm321, %v690, 0
        %v695 = vsel %vm321, %v692, 0
        %697 = vmatpush.xpose.msra.mxu0 0.0
        %698 = vmatpush.xpose.msra.mxu0 0.0
        %699 = vmatpush.xpose.msra.mxu0 0.0
        %700 = vmatpush.xpose.msra.mxu0 0.0
        %701 = vmatpush.xpose.msra.mxu0 0.0
        %702 = vmatpush.xpose.msra.mxu0 0.0
        %703 = vmatpush.xpose.msra.mxu0 0.0
        %704 = vmatpush.xpose.msra.mxu0 0.0
        %705 = vmatpush.xpose.msra.mxu0 0.0
        %706 = vmatpush.xpose.msra.mxu0 0.0
        %707 = vmatpush.xpose.msra.mxu0 0.0
        %708 = vmatpush.xpose.msra.mxu0 0.0
        %709 = vmatpush.xpose.msra.mxu0 0.0
        %710 = vmatpush.xpose.msra.mxu0 0.0
        %711 = vmatpush.xpose.msra.mxu0 0.0
        %712 = vmatpush.xpose.msra.mxu0 %v695
        %713 = vmatmul.f32.gmra.mxu0 %v693
        %v714 = vpop.f32.mrf.mxu0
        %v715 = vadd.f32 0.0, %v714
        %716 = vdwg.mxu0
        %v717 = vsel %vm346, %v715, -inf
        %718 = vmax.xlane.f32.xlu0 %v717
        %v719 = vpop.xlane.xlu0 %718
        %v720 = vsub.f32 %v715, %v719
        %v721 = vmul.f32 %v720, 1.442695
        %v722 = vpow.pop %v721
        %v723 = vsel %vm346, %v722, 0.0
        %724 = vadd.xlane.f32.xlu0 %v723
        %v725 = vpop.xlane.xlu0 %724
        %v726 = vrcp.pop %v725
        %v727 = vmul.f32 %v722, %v726
        %v728 = vadd.f32 %v727, 0.0
        %v729 = vadd.f32 %v654, %v728
        %730 = vrot.lane.b32.xlu0 %v687, 44
        %v731 = vpop.permute.xlu0 %730
        %v734 = vsel %vm346, %v727, 0
        %736 = vmatpush.msra.mxu0 0.0
        %737 = vmatpush.msra.mxu0 0.0
        %738 = vmatpush.msra.mxu0 0.0
        %739 = vmatpush.msra.mxu0 0.0
        %740 = vmatpush.msra.mxu0 0.0
        %741 = vmatpush.msra.mxu0 0.0
        %742 = vmatpush.msra.mxu0 0.0
        %743 = vmatpush.msra.mxu0 0.0
        %744 = vmatpush.msra.mxu0 0.0
        %745 = vmatpush.msra.mxu0 0.0
        %746 = vmatpush.msra.mxu0 0.0
        %747 = vmatpush.msra.mxu0 0.0
        %748 = vmatpush.msra.mxu0 0.0
        %749 = vmatpush.msra.mxu0 0.0
        %750 = vmatpush.msra.mxu0 0.0
        %751 = vmatpush.msra.mxu0 %v731
        %752 = vmatmul.f32.gmra.mxu0 %v734
        %v753 = vpop.f32.mrf.mxu0
        %v754 = vadd.f32 0.0, %v753
        %755 = vdwg.mxu0
        %757 = vrot.lane.b32.xlu0 %v754, 20
        %v758 = vpop.permute.xlu0 %757
        %vm760 = vcmask 195744
        %761 = vst.msk [vmem:[#allocation3] sm:$0xff] %vm760, %v758
        %v762 = vld [vmem:[#allocation2] sm:$0xff]
        %764 = vrot.lane.b32.xlu0 %v762, 104
        %v765 = vpop.permute.xlu0 %764
        %766 = vrot.lane.b32.xlu0 %v762, 72
        %v767 = vpop.permute.xlu0 %766
        %v768 = vsel %vm321, %v765, 0
        %v770 = vsel %vm321, %v767, 0
        %772 = vmatpush.xpose.msra.mxu0 0.0
        %773 = vmatpush.xpose.msra.mxu0 0.0
        %774 = vmatpush.xpose.msra.mxu0 0.0
        %775 = vmatpush.xpose.msra.mxu0 0.0
        %776 = vmatpush.xpose.msra.mxu0 0.0
        %777 = vmatpush.xpose.msra.mxu0 0.0
        %778 = vmatpush.xpose.msra.mxu0 0.0
        %779 = vmatpush.xpose.msra.mxu0 0.0
        %780 = vmatpush.xpose.msra.mxu0 0.0
        %781 = vmatpush.xpose.msra.mxu0 0.0
        %782 = vmatpush.xpose.msra.mxu0 0.0
        %783 = vmatpush.xpose.msra.mxu0 0.0
        %784 = vmatpush.xpose.msra.mxu0 0.0
        %785 = vmatpush.xpose.msra.mxu0 0.0
        %786 = vmatpush.xpose.msra.mxu0 0.0
        %787 = vmatpush.xpose.msra.mxu0 %v770
        %788 = vmatmul.f32.gmra.mxu0 %v768
        %v789 = vpop.f32.mrf.mxu0
        %v790 = vadd.f32 0.0, %v789
        %791 = vdwg.mxu0
        %v792 = vsel %vm346, %v790, -inf
        %793 = vmax.xlane.f32.xlu0 %v792
        %v794 = vpop.xlane.xlu0 %793
        %v795 = vsub.f32 %v790, %v794
        %v796 = vmul.f32 %v795, 1.442695
        %v797 = vpow.pop %v796
        %v798 = vsel %vm346, %v797, 0.0
        %799 = vadd.xlane.f32.xlu0 %v798
        %v800 = vpop.xlane.xlu0 %799
        %v801 = vrcp.pop %v800
        %v802 = vmul.f32 %v797, %v801
        %v803 = vadd.f32 %v802, 0.0
        %v804 = vadd.f32 %v729, %v803
        %805 = vrot.lane.b32.xlu0 %v762, 40
        %v806 = vpop.permute.xlu0 %805
        %v809 = vsel %vm346, %v802, 0
        %811 = vmatpush.msra.mxu0 0.0
        %812 = vmatpush.msra.mxu0 0.0
        %813 = vmatpush.msra.mxu0 0.0
        %814 = vmatpush.msra.mxu0 0.0
        %815 = vmatpush.msra.mxu0 0.0
        %816 = vmatpush.msra.mxu0 0.0
        %817 = vmatpush.msra.mxu0 0.0
        %818 = vmatpush.msra.mxu0 0.0
        %819 = vmatpush.msra.mxu0 0.0
        %820 = vmatpush.msra.mxu0 0.0
        %821 = vmatpush.msra.mxu0 0.0
        %822 = vmatpush.msra.mxu0 0.0
        %823 = vmatpush.msra.mxu0 0.0
        %824 = vmatpush.msra.mxu0 0.0
        %825 = vmatpush.msra.mxu0 0.0
        %826 = vmatpush.msra.mxu0 %v806
        %827 = vmatmul.f32.gmra.mxu0 %v809
        %v828 = vpop.f32.mrf.mxu0
        %v829 = vadd.f32 0.0, %v828
        %830 = vdwg.mxu0
        %832 = vrot.lane.b32.xlu0 %v829, 24
        %v833 = vpop.permute.xlu0 %832
        %vm835 = vcmask 228544
        %836 = vst.msk [vmem:[#allocation3] sm:$0xff] %vm835, %v833
        %v837 = vld [vmem:[#allocation2] sm:$0xff]
        %839 = vrot.lane.b32.xlu0 %v837, 100
        %v840 = vpop.permute.xlu0 %839
        %841 = vrot.lane.b32.xlu0 %v837, 68
        %v842 = vpop.permute.xlu0 %841
        %v843 = vsel %vm321, %v840, 0
        %v845 = vsel %vm321, %v842, 0
        %847 = vmatpush.xpose.msra.mxu0 0.0
        %848 = vmatpush.xpose.msra.mxu0 0.0
        %849 = vmatpush.xpose.msra.mxu0 0.0
        %850 = vmatpush.xpose.msra.mxu0 0.0
        %851 = vmatpush.xpose.msra.mxu0 0.0
        %852 = vmatpush.xpose.msra.mxu0 0.0
        %853 = vmatpush.xpose.msra.mxu0 0.0
        %854 = vmatpush.xpose.msra.mxu0 0.0
        %855 = vmatpush.xpose.msra.mxu0 0.0
        %856 = vmatpush.xpose.msra.mxu0 0.0
        %857 = vmatpush.xpose.msra.mxu0 0.0
        %858 = vmatpush.xpose.msra.mxu0 0.0
        %859 = vmatpush.xpose.msra.mxu0 0.0
        %860 = vmatpush.xpose.msra.mxu0 0.0
        %861 = vmatpush.xpose.msra.mxu0 0.0
        %862 = vmatpush.xpose.msra.mxu0 %v845
        %863 = vmatmul.f32.gmra.mxu0 %v843
        %v864 = vpop.f32.mrf.mxu0
        %v865 = vadd.f32 0.0, %v864
        %866 = vdwg.mxu0
        %v867 = vsel %vm346, %v865, -inf
        %868 = vmax.xlane.f32.xlu0 %v867
        %v869 = vpop.xlane.xlu0 %868
        %v870 = vsub.f32 %v865, %v869
        %v871 = vmul.f32 %v870, 1.442695
        %v872 = vpow.pop %v871
        %v873 = vsel %vm346, %v872, 0.0
        %874 = vadd.xlane.f32.xlu0 %v873
        %v875 = vpop.xlane.xlu0 %874
        %v876 = vrcp.pop %v875
        %v877 = vmul.f32 %v872, %v876
        %v878 = vadd.f32 %v877, 0.0
        %v879 = vadd.f32 %v804, %v878
        %880 = vrot.lane.b32.xlu0 %v837, 36
        %v881 = vpop.permute.xlu0 %880
        %v884 = vsel %vm346, %v877, 0
        %886 = vmatpush.msra.mxu0 0.0
        %887 = vmatpush.msra.mxu0 0.0
        %888 = vmatpush.msra.mxu0 0.0
        %889 = vmatpush.msra.mxu0 0.0
        %890 = vmatpush.msra.mxu0 0.0
        %891 = vmatpush.msra.mxu0 0.0
        %892 = vmatpush.msra.mxu0 0.0
        %893 = vmatpush.msra.mxu0 0.0
        %894 = vmatpush.msra.mxu0 0.0
        %895 = vmatpush.msra.mxu0 0.0
        %896 = vmatpush.msra.mxu0 0.0
        %897 = vmatpush.msra.mxu0 0.0
        %898 = vmatpush.msra.mxu0 0.0
        %899 = vmatpush.msra.mxu0 0.0
        %900 = vmatpush.msra.mxu0 0.0
        %901 = vmatpush.msra.mxu0 %v881
        %902 = vmatmul.f32.gmra.mxu0 %v884
        %v903 = vpop.f32.mrf.mxu0
        %v904 = vadd.f32 0.0, %v903
        %905 = vdwg.mxu0
        %907 = vrot.lane.b32.xlu0 %v904, 28
        %v908 = vpop.permute.xlu0 %907
        %vm910 = vcmask 261344
        %911 = vst.msk [vmem:[#allocation3] sm:$0xff] %vm910, %v908
        %v912 = vld [vmem:[#allocation3] sm:$0xff]
        %v913 = vld [vmem:[#allocation9] sm:$0xff]
        %v914 = vld [vmem:[#allocation9 + $0x8] sm:$0xff]
        %v915 = vld [vmem:[#allocation9 + $0x10] sm:$0xff]
        %v916 = vld [vmem:[#allocation9 + $0x18] sm:$0xff]
        %v917 = vld [vmem:[%s3] sm:$0x1]
        %v919 = vperm.slane %v917, 0
        %v922 = vsel %vm291, %v912, 0
        %924 = vmatpush.msra.mxu0 0.0
        %925 = vmatpush.msra.mxu0 0.0
        %926 = vmatpush.msra.mxu0 0.0
        %927 = vmatpush.msra.mxu0 0.0
        %928 = vmatpush.msra.mxu0 0.0
        %929 = vmatpush.msra.mxu0 0.0
        %930 = vmatpush.msra.mxu0 0.0
        %931 = vmatpush.msra.mxu0 0.0
        %932 = vmatpush.msra.mxu0 0.0
        %933 = vmatpush.msra.mxu0 0.0
        %934 = vmatpush.msra.mxu0 0.0
        %935 = vmatpush.msra.mxu0 0.0
        %936 = vmatpush.msra.mxu0 %v916
        %937 = vmatpush.msra.mxu0 %v915
        %938 = vmatpush.msra.mxu0 %v914
        %939 = vmatpush.msra.mxu0 %v913
        %940 = vmatmul.f32.gmra.mxu0 %v922
        %v941 = vpop.f32.mrf.mxu0
        %v942 = vadd.f32 %v919, %v941
        %943 = vdwg.mxu0
        %944 = vst.msk [vmem:[%s278] sm:$0xff] %vm291, %v942
        %945 = vst.msk [vmem:[%s285] sm:$0xff] %vm346, %v879
        %s946 = sand.u32 %s124, 1
        %s947 = scalar_lea.sflag [#allocation6], %s946
        %s948 = sand.u32 %s124, 1
        %s949 = smul.addr %s948, 8
        %s950 = scalar_lea.vmem [#allocation10], %s949
        %s951 = sand.u32 %s150, 1
        %s952 = scalar_lea.sflag [#allocation12], %s951
        %s953 = sand.u32 %s150, 1
        %s954 = smul.addr %s953, 8
        %s955 = scalar_lea.vmem [#allocation11], %s954
        // Predicated region
        $region49: #{tpu_custom_call.1} parent=35 // pred_check
          %p956 = pneg %p134
        $region50: #{tpu_custom_call.1} parent=35 // pred_check_branch
          %958 = sbr.rel (%p956) target = $region52
        $region51: #{tpu_custom_call.1} parent=35 // pred_region
          %960 = vsyncadd %s947, 0
          %s961 = smul.addr %s27, 8
          %s962 = scalar_lea.hbm %s4, %s961
          %s964 = sshll.u32 %s950, 4
          %s965 = int_to_ptr.vmem [resolvable:$true] %s964
          %s966 = sshll.u32 %s962, 4
          %s967 = int_to_ptr.hbm [resolvable:$true] %s966
          %969 = dma.vmem_to_hbm [thread:$0]  %s965, 128, %s967, %s947
        $region52: #{tpu_custom_call.1} parent=35 // pred_fallthru
          _
        // Predicated region
        $region53: #{tpu_custom_call.1} parent=35 // pred_check
          %p970 = pneg %p160
        $region54: #{tpu_custom_call.1} parent=35 // pred_check_branch
          %972 = sbr.rel (%p970) target = $region56
        $region55: #{tpu_custom_call.1} parent=35 // pred_region
          %974 = vsyncadd %s952, 0
          %s975 = smul.addr %s27, 8
          %s976 = scalar_lea.hbm %s5, %s975
          %s978 = sshll.u32 %s955, 4
          %s979 = int_to_ptr.vmem [resolvable:$true] %s978
          %s980 = sshll.u32 %s976, 4
          %s981 = int_to_ptr.hbm [resolvable:$true] %s980
          %983 = dma.vmem_to_hbm [thread:$0]  %s979, 128, %s981, %s952
        $region56: #{tpu_custom_call.1} parent=35 // pred_fallthru
          _
      $region36: #{tpu_custom_call.1} parent=5 // pred_fallthru
        _
      %p984 = scmp.le.s32.totalorder 2, %s22
      // Predicated region
      $region57: #{tpu_custom_call.1} parent=5 // pred_check
        %p985 = pneg %p984
      $region58: #{tpu_custom_call.1} parent=5 // pred_check_branch
        %987 = sbr.rel (%p985) target = $region60
      $region59: #{tpu_custom_call.1} parent=5 // pred_region
        %s988 = ssub.s32 %s22, 2
        // Predicated region
        $region61: #{tpu_custom_call.1} parent=59 // pred_check
          %p989 = pneg %p140
        $region62: #{tpu_custom_call.1} parent=59 // pred_check_branch
          %991 = sbr.rel (%p989) target = $region64
        $region63: #{tpu_custom_call.1} parent=59 // pred_region
          %s992 = sand.u32 %s125, 1
          %s993 = scalar_lea.sflag [#allocation6], %s992
          %s994 = sand.u32 %s125, 1
          %s995 = smul.addr %s994, 8
          %s996 = scalar_lea.vmem [#allocation10], %s995
          %998 = dma.done %s993, 128
        $region64: #{tpu_custom_call.1} parent=59 // pred_fallthru
          _
        // Predicated region
        $region65: #{tpu_custom_call.1} parent=59 // pred_check
          %p999 = pneg %p166
        $region66: #{tpu_custom_call.1} parent=59 // pred_check_branch
          %1001 = sbr.rel (%p999) target = $region68
        $region67: #{tpu_custom_call.1} parent=59 // pred_region
          %s1002 = sand.u32 %s151, 1
          %s1003 = scalar_lea.sflag [#allocation12], %s1002
          %s1004 = sand.u32 %s151, 1
          %s1005 = smul.addr %s1004, 8
          %s1006 = scalar_lea.vmem [#allocation11], %s1005
          %1008 = dma.done %s1003, 128
        $region68: #{tpu_custom_call.1} parent=59 // pred_fallthru
          _
      $region60: #{tpu_custom_call.1} parent=5 // pred_fallthru
        _
    $region6: #{tpu_custom_call.1} parent=1 // loop_footer
      %s26 = sadd.s32 1, %s22
    $region7: #{tpu_custom_call.1} parent=1 // loop_footer_branch
      %21 = sbr.rel target = $region3
    $region8: #{tpu_custom_call.1} parent=1 // loop_exit
      _
    %1009 = vsyncpa [#allocation5], 1
    %s1010 = scalar_lea.sflag [#allocation5], 1
    %1011 = vsyncpa %s1010, 1
    %1012 = vsyncpa [#allocation8], 1
    %1013 = vsyncpa [#allocation6], 1
    %s1014 = scalar_lea.sflag [#allocation6], 1
    %1015 = vsyncpa %s1014, 1
    %1016 = vsyncpa [#allocation12], 1
    %s1017 = scalar_lea.sflag [#allocation12], 1
    %1018 = vsyncpa %s1017, 1

// kernel: tpu_custom_call.1
$region0: #{tpu_custom_call.1}
  #allocation0 [shape = 'u32[]', space=smem, size = 0x4, offset = 0x4, fixed_abs, tag = 'smem constant byte address 0x4 - core index']
  #allocation1 [shape = 'u32[72,128]{1,0:T(1,128)}', space=vmem, size = 0x9000, scoped, tag = 'internal scratch']
  #allocation2 [shape = 'f32[8,96]{1,0:T(8,128)}', space=vmem, size = 0x1000, scoped, tag = 'scratch operand']
  #allocation3 [shape = 'f32[8,32]{1,0:T(8,128)}', space=vmem, size = 0x1000, scoped, tag = 'scratch operand']
  %s0 = inlined_call_operand.hbm [shape: f32[16,32], index: 0, kind: input, shape index: {}]
  %s1 = inlined_call_operand.hbm [shape: f32[32,96], index: 1, kind: input, shape index: {}]
  %s2 = inlined_call_operand.hbm [shape: f32[32,32], index: 2, kind: input, shape index: {}]
  %s3 = inlined_call_operand.vmem [shape: f32[1,32], index: 3, kind: input, shape index: {}]
  %s4 = inlined_call_operand.hbm [shape: f32[16,32], index: 4, kind: output, shape index: {0}]
  %s5 = inlined_call_operand.hbm [shape: f32[2,8,8], index: 5, kind: output, shape index: {1}]
  %6 = xla_tuple %s4, %s5
  %s7 = sld [smem:[#allocation0]]
  $region69: #{tpu_custom_call.1} parent=0
    _
  %s9 = ssub.s32 1, %s7
  %s10 = scalar_select 0, %s9, %s7
  $region1: #{tpu_custom_call.1} parent=0
    #allocation4 [shape = 'u8[8192]{0}', space=vmem, size = 0x2000, scoped, tag = 'input window, operand 0']
    #allocation5 [shape = 's32[2]{0}', space=sflag, size = 0x8, scoped, tag = 'scoped memory for tpu_custom_call.1']
    #allocation6 [shape = 's32[2]{0}', space=sflag, size = 0x8, scoped, tag = 'scoped memory for tpu_custom_call.1']
    #allocation7 [shape = 'u8[16384]{0}', space=vmem, size = 0x4000, scoped, tag = 'input window, operand 1, single buffered']
    #allocation8 [shape = 's32[1]{0}', space=sflag, size = 0x4, scoped, tag = 'scoped memory for tpu_custom_call.1']
    #allocation9 [shape = 'u8[16384]{0}', space=vmem, size = 0x4000, scoped, tag = 'input window, operand 2, single buffered']
    #allocation10 [shape = 'u8[8192]{0}', space=vmem, size = 0x2000, scoped, tag = 'output window, operand 0']
    #allocation11 [shape = 'u8[8192]{0}', space=vmem, size = 0x2000, scoped, tag = 'output window, operand 1']
    #allocation12 [shape = 's32[2]{0}', space=sflag, size = 0x8, scoped, tag = 'scoped memory for tpu_custom_call.1']
    %11 = vsyncpa [#allocation5], 0
    %s12 = scalar_lea.sflag [#allocation5], 1
    %13 = vsyncpa %s12, 0
    %14 = vsyncpa [#allocation8], 0
    %15 = vsyncpa [#allocation6], 0
    %s16 = scalar_lea.sflag [#allocation6], 1
    %17 = vsyncpa %s16, 0
    %18 = vsyncpa [#allocation12], 0
    %s19 = scalar_lea.sflag [#allocation12], 1
    %20 = vsyncpa %s19, 0
    loop: start=0, step=1, limit=4
    $region2: #{tpu_custom_call.1} parent=1 // loop_pre_header
      _
    $region3: #{tpu_custom_call.1} parent=1 // loop_header
      %s22 = sphi 0, %s26
      %p23 = scmp.ge.s32.totalorder %s22, 4
      %s32 = sphi 0, %s34
      %s35 = sphi 0, %s32
      %s36 = sphi 0, %s35
      %s52 = sphi 0, %s36
      %s56 = sphi 0, %s56
      %s58 = sphi 0, %s56
      %s59 = sphi 0, %s58
      %s73 = sphi 0, %s59
      %s77 = sphi 0, %s77
      %s79 = sphi 0, %s77
      %s80 = sphi 0, %s79
      %s94 = sphi 0, %s80
      %s98 = sphi 0, %s98
      %s100 = sphi 0, %s98
      %s101 = sphi 0, %s100
      %s115 = sphi 0, %s101
      %s121 = sphi 0, %s123
      %s124 = sphi 0, %s121
      %s125 = sphi 0, %s124
      %s141 = sphi 0, %s125
      %s147 = sphi 0, %s149
      %s150 = sphi 0, %s147
      %s151 = sphi 0, %s150
      %s167 = sphi 0, %s151
    $region4: #{tpu_custom_call.1} parent=1 // loop_header_branch
      %25 = sbr.rel (%p23) target = $region8
    $region5: #{tpu_custom_call.1} parent=1 // loop_body
      %s27 = ssub.s32 %s22, 1
      %s28 = ssub.s32 %s22, 2
      %s29 = sadd.s32 %s22, 1
      %s30 = ssub.s32 %s22, %s29
      %p31 = scmp.eq.s32.totalorder %s30, 0
      %s33 = sadd.s32 %s32, 1
      %s34 = scalar_select %p31, %s32, %s33
      %p37 = pneg %p31
      %p38 = scmp.eq.s32.totalorder %s22, 1
      %p39 = por %p37, %p38
      %p40 = scmp.ne.s32.totalorder %s32, %s35
      %p41 = scmp.eq.s32.totalorder %s22, 0
      %p42 = por %p40, %p41
      %p43 = scmp.ne.s32.totalorder %s32, %s35
      %p44 = scmp.eq.s32.totalorder %s27, 1
      %p45 = por %p43, %p44
      %p46 = scmp.ne.s32.totalorder %s35, %s36
      %p47 = scmp.eq.s32.totalorder %s27, 0
      %p48 = por %p46, %p47
      %p49 = scmp.ne.s32.totalorder %s35, %s36
      %p50 = scmp.eq.s32.totalorder %s28, 1
      %p51 = por %p49, %p50
      %p53 = scmp.ne.s32.totalorder %s36, %s52
      %p54 = scmp.eq.s32.totalorder %s28, 0
      %p55 = por %p53, %p54
      %s57 = sadd.s32 %s56, 1
      %p60 = scmp.eq.s32.totalorder %s22, 1
      %p61 = scmp.ne.s32.totalorder %s56, %s58
      %p62 = scmp.eq.s32.totalorder %s22, 0
      %p63 = por %p61, %p62
      %p64 = scmp.ne.s32.totalorder %s56, %s58
      %p65 = scmp.eq.s32.totalorder %s27, 1
      %p66 = por %p64, %p65
      %p67 = scmp.ne.s32.totalorder %s58, %s59
      %p68 = scmp.eq.s32.totalorder %s27, 0
      %p69 = por %p67, %p68
      %p70 = scmp.ne.s32.totalorder %s58, %s59
      %p71 = scmp.eq.s32.totalorder %s28, 1
      %p72 = por %p70, %p71
      %p74 = scmp.ne.s32.totalorder %s59, %s73
      %p75 = scmp.eq.s32.totalorder %s28, 0
      %p76 = por %p74, %p75
      %s78 = sadd.s32 %s77, 1
      %p81 = scmp.eq.s32.totalorder %s22, 1
      %p82 = scmp.ne.s32.totalorder %s77, %s79
      %p83 = scmp.eq.s32.totalorder %s22, 0
      %p84 = por %p82, %p83
      %p85 = scmp.ne.s32.totalorder %s77, %s79
      %p86 = scmp.eq.s32.totalorder %s27, 1
      %p87 = por %p85, %p86
      %p88 = scmp.ne.s32.totalorder %s79, %s80
      %p89 = scmp.eq.s32.totalorder %s27, 0
      %p90 = por %p88, %p89
      %p91 = scmp.ne.s32.totalorder %s79, %s80
      %p92 = scmp.eq.s32.totalorder %s28, 1
      %p93 = por %p91, %p92
      %p95 = scmp.ne.s32.totalorder %s80, %s94
      %p96 = scmp.eq.s32.totalorder %s28, 0
      %p97 = por %p95, %p96
      %s99 = sadd.s32 %s98, 1
      %p102 = scmp.eq.s32.totalorder %s22, 1
      %p103 = scmp.ne.s32.totalorder %s98, %s100
      %p104 = scmp.eq.s32.totalorder %s22, 0
      %p105 = por %p103, %p104
      %p106 = scmp.ne.s32.totalorder %s98, %s100
      %p107 = scmp.eq.s32.totalorder %s27, 1
      %p108 = por %p106, %p107
      %p109 = scmp.ne.s32.totalorder %s100, %s101
      %p110 = scmp.eq.s32.totalorder %s27, 0
      %p111 = por %p109, %p110
      %p112 = scmp.ne.s32.totalorder %s100, %s101
      %p113 = scmp.eq.s32.totalorder %s28, 1
      %p114 = por %p112, %p113
      %p116 = scmp.ne.s32.totalorder %s101, %s115
      %p117 = scmp.eq.s32.totalorder %s28, 0
      %p118 = por %p116, %p117
      %s119 = ssub.s32 %s22, %s29
      %p120 = scmp.eq.s32.totalorder %s119, 0
      %s122 = sadd.s32 %s121, 1
      %s123 = scalar_select %p120, %s121, %s122
      %p126 = pneg %p120
      %p127 = scmp.eq.s32.totalorder %s22, 1
      %p128 = por %p126, %p127
      %p129 = scmp.ne.s32.totalorder %s121, %s124
      %p130 = scmp.eq.s32.totalorder %s22, 0
      %p131 = por %p129, %p130
      %p132 = scmp.ne.s32.totalorder %s121, %s124
      %p133 = scmp.eq.s32.totalorder %s27, 1
      %p134 = por %p132, %p133
      %p135 = scmp.ne.s32.totalorder %s124, %s125
      %p136 = scmp.eq.s32.totalorder %s27, 0
      %p137 = por %p135, %p136
      %p138 = scmp.ne.s32.totalorder %s124, %s125
      %p139 = scmp.eq.s32.totalorder %s28, 1
      %p140 = por %p138, %p139
      %p142 = scmp.ne.s32.totalorder %s125, %s141
      %p143 = scmp.eq.s32.totalorder %s28, 0
      %p144 = por %p142, %p143
      %s145 = ssub.s32 %s22, %s29
      %p146 = scmp.eq.s32.totalorder %s145, 0
      %s148 = sadd.s32 %s147, 1
      %s149 = scalar_select %p146, %s147, %s148
      %p152 = pneg %p146
      %p153 = scmp.eq.s32.totalorder %s22, 1
      %p154 = por %p152, %p153
      %p155 = scmp.ne.s32.totalorder %s147, %s150
      %p156 = scmp.eq.s32.totalorder %s22, 0
      %p157 = por %p155, %p156
      %p158 = scmp.ne.s32.totalorder %s147, %s150
      %p159 = scmp.eq.s32.totalorder %s27, 1
      %p160 = por %p158, %p159
      %p161 = scmp.ne.s32.totalorder %s150, %s151
      %p162 = scmp.eq.s32.totalorder %s27, 0
      %p163 = por %p161, %p162
      %p164 = scmp.ne.s32.totalorder %s150, %s151
      %p165 = scmp.eq.s32.totalorder %s28, 1
      %p166 = por %p164, %p165
      %p168 = scmp.ne.s32.totalorder %s151, %s167
      %p169 = scmp.eq.s32.totalorder %s28, 0
      %p170 = por %p168, %p169
      %p171 = scmp.le.s32.totalorder 1, %s22
      %p172 = scmp.lt.s32.totalorder %s22, 3
      %p173 = pnand %p171, %p172
      %p174 = pneg %p173
      // Predicated region
      $region9: #{tpu_custom_call.1} parent=5 // pred_check
        _
      $region10: #{tpu_custom_call.1} parent=5 // pred_check_branch
        %176 = sbr.rel (%p173) target = $region12
      $region11: #{tpu_custom_call.1} parent=5 // pred_region
        %s177 = ssub.s32 %s22, 1
        // Predicated region
        $region13: #{tpu_custom_call.1} parent=11 // pred_check
          %p178 = pneg %p69
        $region14: #{tpu_custom_call.1} parent=11 // pred_check_branch
          %180 = sbr.rel (%p178) target = $region16
        $region15: #{tpu_custom_call.1} parent=11 // pred_region
          %182 = vsyncadd [#allocation8], 0
          %s183 = sshll.u32 %s1, 4
          %s184 = int_to_ptr.hbm [resolvable:$true] %s183
          %s185 = sshll.u32 [#allocation7], 4
          %s186 = int_to_ptr.vmem [resolvable:$true] %s185
          %191 = dma.hbm_to_vmem [thread:$0]  %s184, 512, %s186, [#allocation8], 128, 128, 8
        $region16: #{tpu_custom_call.1} parent=11 // pred_fallthru
          _
        // Predicated region
        $region17: #{tpu_custom_call.1} parent=11 // pred_check
          %p192 = pneg %p90
        $region18: #{tpu_custom_call.1} parent=11 // pred_check_branch
          %194 = sbr.rel (%p192) target = $region20
        $region19: #{tpu_custom_call.1} parent=11 // pred_region
          %196 = vsyncadd [#allocation8], 0
          %s197 = sshll.u32 %s2, 4
          %s198 = int_to_ptr.hbm [resolvable:$true] %s197
          %s199 = sshll.u32 [#allocation9], 4
          %s200 = int_to_ptr.vmem [resolvable:$true] %s199
          %205 = dma.hbm_to_vmem [thread:$0]  %s198, 512, %s200, [#allocation8], 128, 128, 8
        $region20: #{tpu_custom_call.1} parent=11 // pred_fallthru
          _
        // Predicated region
        $region21: #{tpu_custom_call.1} parent=11 // pred_check
          %p206 = pneg %p111
        $region22: #{tpu_custom_call.1} parent=11 // pred_check_branch
          %208 = sbr.rel (%p206) target = $region24
        $region23: #{tpu_custom_call.1} parent=11 // pred_region
          _
        $region24: #{tpu_custom_call.1} parent=11 // pred_fallthru
          _
      $region12: #{tpu_custom_call.1} parent=5 // pred_fallthru
        _
      %p209 = scmp.lt.s32.totalorder %s22, 2
      // Predicated region
      $region25: #{tpu_custom_call.1} parent=5 // pred_check
        %p210 = pneg %p209
      $region26: #{tpu_custom_call.1} parent=5 // pred_check_branch
        %212 = sbr.rel (%p210) target = $region28
      $region27: #{tpu_custom_call.1} parent=5 // pred_region
        // Predicated region
        $region29: #{tpu_custom_call.1} parent=27 // pred_check
          %p213 = pneg %p42
        $region30: #{tpu_custom_call.1} parent=27 // pred_check_branch
          %215 = sbr.rel (%p213) target = $region32
        $region31: #{tpu_custom_call.1} parent=27 // pred_region
          %s216 = sand.u32 %s32, 1
          %s217 = scalar_lea.sflag [#allocation5], %s216
          %s218 = sand.u32 %s32, 1
          %s219 = smul.addr %s218, 8
          %s220 = scalar_lea.vmem [#allocation4], %s219
          %222 = vsyncadd %s217, 0
          %s223 = smul.addr %s22, 8
          %s224 = scalar_lea.hbm %s0, %s223
          %s226 = sshll.u32 %s224, 4
          %s227 = int_to_ptr.hbm [resolvable:$true] %s226
          %s228 = sshll.u32 %s220, 4
          %s229 = int_to_ptr.vmem [resolvable:$true] %s228
          %231 = dma.hbm_to_vmem [thread:$0]  %s227, 128, %s229, %s217
        $region32: #{tpu_custom_call.1} parent=27 // pred_fallthru
          _
      $region28: #{tpu_custom_call.1} parent=5 // pred_fallthru
        _
      %p232 = scmp.le.s32.totalorder 1, %s22
      %p233 = scmp.lt.s32.totalorder %s22, 3
      %p234 = pnand %p232, %p233
      %p235 = pneg %p234
      // Predicated region
      $region33: #{tpu_custom_call.1} parent=5 // pred_check
        _
      $region34: #{tpu_custom_call.1} parent=5 // pred_check_branch
        %237 = sbr.rel (%p234) target = $region36
      $region35: #{tpu_custom_call.1} parent=5 // pred_region
        %s238 = ssub.s32 %s22, 1
        %s239 = sand.u32 %s35, 1
        %s240 = scalar_lea.sflag [#allocation5], %s239
        %s241 = sand.u32 %s35, 1
        %s242 = smul.addr %s241, 8
        %s243 = scalar_lea.vmem [#allocation4], %s242
        // Predicated region
        $region37: #{tpu_custom_call.1} parent=35 // pred_check
          %p244 = pneg %p48
        $region38: #{tpu_custom_call.1} parent=35 // pred_check_branch
          %246 = sbr.rel (%p244) target = $region40
        $region39: #{tpu_custom_call.1} parent=35 // pred_region
          %248 = dma.done %s240, 128
        $region40: #{tpu_custom_call.1} parent=35 // pred_fallthru
          _
        // Predicated region
        $region41: #{tpu_custom_call.1} parent=35 // pred_check
          %p249 = pneg %p69
        $region42: #{tpu_custom_call.1} parent=35 // pred_check_branch
          %251 = sbr.rel (%p249) target = $region44
        $region43: #{tpu_custom_call.1} parent=35 // pred_region
          %253 = dma.done [#allocation8], 512
        $region44: #{tpu_custom_call.1} parent=35 // pred_fallthru
          _
        // Predicated region
        $region45: #{tpu_custom_call.1} parent=35 // pred_check
          %p254 = pneg %p90
        $region46: #{tpu_custom_call.1} parent=35 // pred_check_branch
          %256 = sbr.rel (%p254) target = $region48
        $region47: #{tpu_custom_call.1} parent=35 // pred_region
          %258 = dma.done [#allocation8], 512
        $region48: #{tpu_custom_call.1} parent=35 // pred_fallthru
          _
        %s259 = sand.u32 %s35, 1
        %s260 = scalar_lea.sflag [#allocation5], %s259
        %s261 = sand.u32 %s35, 1
        %s262 = smul.addr %s261, 8
        %s263 = scalar_lea.vmem [#allocation4], %s262
        %p264 = pneg %p48
        %p265 = pneg %p45
        %p266 = pneg %p69
        %p267 = pneg %p66
        %p268 = pneg %p90
        %p269 = pneg %p87
        %p270 = pneg %p111
        %p271 = pneg %p108
        %p272 = pneg %p137
        %p273 = pneg %p134
        %s274 = sand.u32 %s124, 1
        %s275 = scalar_lea.sflag [#allocation6], %s274
        %s276 = sand.u32 %s124, 1
        %s277 = smul.addr %s276, 8
        %s278 = scalar_lea.vmem [#allocation10], %s277
        %p279 = pneg %p163
        %p280 = pneg %p160
        %s281 = sand.u32 %s150, 1
        %s282 = scalar_lea.sflag [#allocation12], %s281
        %s283 = sand.u32 %s150, 1
        %s284 = smul.addr %s283, 8
        %s285 = scalar_lea.vmem [#allocation11], %s284
        %v286 = vld [vmem:[%s243] sm:$0xff]
        %v287 = vld [vmem:[#allocation7] sm:$0xff]
        %v288 = vld [vmem:[#allocation7 + $0x8] sm:$0xff]
        %v289 = vld [vmem:[#allocation7 + $0x10] sm:$0xff]
        %v290 = vld [vmem:[#allocation7 + $0x18] sm:$0xff]
        %vm291 = vcmask 261120
        %v293 = vsel %vm291, %v286, 0
        %295 = vmatpush.msra.mxu0 0.0
        %296 = vmatpush.msra.mxu0 0.0
        %297 = vmatpush.msra.mxu0 0.0
        %298 = vmatpush.msra.mxu0 0.0
        %299 = vmatpush.msra.mxu0 0.0
        %300 = vmatpush.msra.mxu0 0.0
        %301 = vmatpush.msra.mxu0 0.0
        %302 = vmatpush.msra.mxu0 0.0
        %303 = vmatpush.msra.mxu0 0.0
        %304 = vmatpush.msra.mxu0 0.0
        %305 = vmatpush.msra.mxu0 0.0
        %306 = vmatpush.msra.mxu0 0.0
        %307 = vmatpush.msra.mxu0 %v290
        %308 = vmatpush.msra.mxu0 %v289
        %309 = vmatpush.msra.mxu0 %v288
        %310 = vmatpush.msra.mxu0 %v287
        %311 = vmatmul.f32.gmra.mxu0 %v293
        %v312 = vpop.f32.mrf.mxu0
        %v313 = vadd.f32 0.0, %v312
        %314 = vdwg.mxu0
        %vm315 = vcmask 785408
        %316 = vst.msk [vmem:[#allocation2] sm:$0xff] %vm315, %v313
        %v317 = vld [vmem:[#allocation2] sm:$0xff]
        %319 = vrot.lane.b32.xlu0 %v317, 96
        %v320 = vpop.permute.xlu0 %319
        %vm321 = vcmask 31744
        %v322 = vsel %vm321, %v317, 0
        %v324 = vsel %vm321, %v320, 0
        %326 = vmatpush.xpose.msra.mxu0 0.0
        %327 = vmatpush.xpose.msra.mxu0 0.0
        %328 = vmatpush.xpose.msra.mxu0 0.0
        %329 = vmatpush.xpose.msra.mxu0 0.0
        %330 = vmatpush.xpose.msra.mxu0 0.0
        %331 = vmatpush.xpose.msra.mxu0 0.0
        %332 = vmatpush.xpose.msra.mxu0 0.0
        %333 = vmatpush.xpose.msra.mxu0 0.0
        %334 = vmatpush.xpose.msra.mxu0 0.0
        %335 = vmatpush.xpose.msra.mxu0 0.0
        %336 = vmatpush.xpose.msra.mxu0 0.0
        %337 = vmatpush.xpose.msra.mxu0 0.0
        %338 = vmatpush.xpose.msra.mxu0 0.0
        %339 = vmatpush.xpose.msra.mxu0 0.0
        %340 = vmatpush.xpose.msra.mxu0 0.0
        %341 = vmatpush.xpose.msra.mxu0 %v324
        %342 = vmatmul.f32.gmra.mxu0 %v322
        %v343 = vpop.f32.mrf.mxu0
        %v344 = vadd.f32 0.0, %v343
        %345 = vdwg.mxu0
        %vm346 = vcmask 64512
        %v347 = vsel %vm346, %v344, -inf
        %348 = vmax.xlane.f32.xlu0 %v347
        %v349 = vpop.xlane.xlu0 %348
        %v350 = vsub.f32 %v344, %v349
        %v351 = vmul.f32 %v350, 1.442695
        %v352 = vpow.pop %v351
        %v353 = vsel %vm346, %v352, 0.0
        %354 = vadd.xlane.f32.xlu0 %v353
        %v355 = vpop.xlane.xlu0 %354
        %v356 = vrcp.pop %v355
        %v357 = vmul.f32 %v352, %v356
        %v358 = vadd.f32 %v357, 0.0
        %v359 = vadd.f32 %v358, 0.0
        %360 = vrot.lane.b32.xlu0 %v317, 64
        %v361 = vpop.permute.xlu0 %360
        %v364 = vsel %vm346, %v357, 0
        %366 = vmatpush.msra.mxu0 0.0
        %367 = vmatpush.msra.mxu0 0.0
        %368 = vmatpush.msra.mxu0 0.0
        %369 = vmatpush.msra.mxu0 0.0
        %370 = vmatpush.msra.mxu0 0.0
        %371 = vmatpush.msra.mxu0 0.0
        %372 = vmatpush.msra.mxu0 0.0
        %373 = vmatpush.msra.mxu0 0.0
        %374 = vmatpush.msra.mxu0 0.0
        %375 = vmatpush.msra.mxu0 0.0
        %376 = vmatpush.msra.mxu0 0.0
        %377 = vmatpush.msra.mxu0 0.0
        %378 = vmatpush.msra.mxu0 0.0
        %379 = vmatpush.msra.mxu0 0.0
        %380 = vmatpush.msra.mxu0 0.0
        %381 = vmatpush.msra.mxu0 %v361
        %382 = vmatmul.f32.gmra.mxu0 %v364
        %v383 = vpop.f32.mrf.mxu0
        %v384 = vadd.f32 0.0, %v383
        %385 = vdwg.mxu0
        %386 = vst.msk [vmem:[#allocation3] sm:$0xff] %vm321, %v384
        %v387 = vld [vmem:[#allocation2] sm:$0xff]
        %389 = vrot.lane.b32.xlu0 %v387, 124
        %v390 = vpop.permute.xlu0 %389
        %391 = vrot.lane.b32.xlu0 %v387, 92
        %v392 = vpop.permute.xlu0 %391
        %v393 = vsel %vm321, %v390, 0
        %v395 = vsel %vm321, %v392, 0
        %397 = vmatpush.xpose.msra.mxu0 0.0
        %398 = vmatpush.xpose.msra.mxu0 0.0
        %399 = vmatpush.xpose.msra.mxu0 0.0
        %400 = vmatpush.xpose.msra.mxu0 0.0
        %401 = vmatpush.xpose.msra.mxu0 0.0
        %402 = vmatpush.xpose.msra.mxu0 0.0
        %403 = vmatpush.xpose.msra.mxu0 0.0
        %404 = vmatpush.xpose.msra.mxu0 0.0
        %405 = vmatpush.xpose.msra.mxu0 0.0
        %406 = vmatpush.xpose.msra.mxu0 0.0
        %407 = vmatpush.xpose.msra.mxu0 0.0
        %408 = vmatpush.xpose.msra.mxu0 0.0
        %409 = vmatpush.xpose.msra.mxu0 0.0
        %410 = vmatpush.xpose.msra.mxu0 0.0
        %411 = vmatpush.xpose.msra.mxu0 0.0
        %412 = vmatpush.xpose.msra.mxu0 %v395
        %413 = vmatmul.f32.gmra.mxu0 %v393
        %v414 = vpop.f32.mrf.mxu0
        %v415 = vadd.f32 0.0, %v414
        %416 = vdwg.mxu0
        %v417 = vsel %vm346, %v415, -inf
        %418 = vmax.xlane.f32.xlu0 %v417
        %v419 = vpop.xlane.xlu0 %418
        %v420 = vsub.f32 %v415, %v419
        %v421 = vmul.f32 %v420, 1.442695
        %v422 = vpow.pop %v421
        %v423 = vsel %vm346, %v422, 0.0
        %424 = vadd.xlane.f32.xlu0 %v423
        %v425 = vpop.xlane.xlu0 %424
        %v426 = vrcp.pop %v425
        %v427 = vmul.f32 %v422, %v426
        %v428 = vadd.f32 %v427, 0.0
        %v429 = vadd.f32 %v359, %v428
        %430 = vrot.lane.b32.xlu0 %v387, 60
        %v431 = vpop.permute.xlu0 %430
        %v434 = vsel %vm346, %v427, 0
        %436 = vmatpush.msra.mxu0 0.0
        %437 = vmatpush.msra.mxu0 0.0
        %438 = vmatpush.msra.mxu0 0.0
        %439 = vmatpush.msra.mxu0 0.0
        %440 = vmatpush.msra.mxu0 0.0
        %441 = vmatpush.msra.mxu0 0.0
        %442 = vmatpush.msra.mxu0 0.0
        %443 = vmatpush.msra.mxu0 0.0
        %444 = vmatpush.msra.mxu0 0.0
        %445 = vmatpush.msra.mxu0 0.0
        %446 = vmatpush.msra.mxu0 0.0
        %447 = vmatpush.msra.mxu0 0.0
        %448 = vmatpush.msra.mxu0 0.0
        %449 = vmatpush.msra.mxu0 0.0
        %450 = vmatpush.msra.mxu0 0.0
        %451 = vmatpush.msra.mxu0 %v431
        %452 = vmatmul.f32.gmra.mxu0 %v434
        %v453 = vpop.f32.mrf.mxu0
        %v454 = vadd.f32 0.0, %v453
        %455 = vdwg.mxu0
        %457 = vrot.lane.b32.xlu0 %v454, 4
        %v458 = vpop.permute.xlu0 %457
        %vm460 = vcmask 64544
        %461 = vst.msk [vmem:[#allocation3] sm:$0xff] %vm460, %v458
        %v462 = vld [vmem:[#allocation2] sm:$0xff]
        %464 = vrot.lane.b32.xlu0 %v462, 120
        %v465 = vpop.permute.xlu0 %464
        %466 = vrot.lane.b32.xlu0 %v462, 88
        %v467 = vpop.permute.xlu0 %466
        %v468 = vsel %vm321, %v465, 0
        %v470 = vsel %vm321, %v467, 0
        %472 = vmatpush.xpose.msra.mxu0 0.0
        %473 = vmatpush.xpose.msra.mxu0 0.0
        %474 = vmatpush.xpose.msra.mxu0 0.0
        %475 = vmatpush.xpose.msra.mxu0 0.0
        %476 = vmatpush.xpose.msra.mxu0 0.0
        %477 = vmatpush.xpose.msra.mxu0 0.0
        %478 = vmatpush.xpose.msra.mxu0 0.0
        %479 = vmatpush.xpose.msra.mxu0 0.0
        %480 = vmatpush.xpose.msra.mxu0 0.0
        %481 = vmatpush.xpose.msra.mxu0 0.0
        %482 = vmatpush.xpose.msra.mxu0 0.0
        %483 = vmatpush.xpose.msra.mxu0 0.0
        %484 = vmatpush.xpose.msra.mxu0 0.0
        %485 = vmatpush.xpose.msra.mxu0 0.0
        %486 = vmatpush.xpose.msra.mxu0 0.0
        %487 = vmatpush.xpose.msra.mxu0 %v470
        %488 = vmatmul.f32.gmra.mxu0 %v468
        %v489 = vpop.f32.mrf.mxu0
        %v490 = vadd.f32 0.0, %v489
        %491 = vdwg.mxu0
        %v492 = vsel %vm346, %v490, -inf
        %493 = vmax.xlane.f32.xlu0 %v492
        %v494 = vpop.xlane.xlu0 %493
        %v495 = vsub.f32 %v490, %v494
        %v496 = vmul.f32 %v495, 1.442695
        %v497 = vpow.pop %v496
        %v498 = vsel %vm346, %v497, 0.0
        %499 = vadd.xlane.f32.xlu0 %v498
        %v500 = vpop.xlane.xlu0 %499
        %v501 = vrcp.pop %v500
        %v502 = vmul.f32 %v497, %v501
        %v503 = vadd.f32 %v502, 0.0
        %v504 = vadd.f32 %v429, %v503
        %505 = vrot.lane.b32.xlu0 %v462, 56
        %v506 = vpop.permute.xlu0 %505
        %v509 = vsel %vm346, %v502, 0
        %511 = vmatpush.msra.mxu0 0.0
        %512 = vmatpush.msra.mxu0 0.0
        %513 = vmatpush.msra.mxu0 0.0
        %514 = vmatpush.msra.mxu0 0.0
        %515 = vmatpush.msra.mxu0 0.0
        %516 = vmatpush.msra.mxu0 0.0
        %517 = vmatpush.msra.mxu0 0.0
        %518 = vmatpush.msra.mxu0 0.0
        %519 = vmatpush.msra.mxu0 0.0
        %520 = vmatpush.msra.mxu0 0.0
        %521 = vmatpush.msra.mxu0 0.0
        %522 = vmatpush.msra.mxu0 0.0
        %523 = vmatpush.msra.mxu0 0.0
        %524 = vmatpush.msra.mxu0 0.0
        %525 = vmatpush.msra.mxu0 0.0
        %526 = vmatpush.msra.mxu0 %v506
        %527 = vmatmul.f32.gmra.mxu0 %v509
        %v528 = vpop.f32.mrf.mxu0
        %v529 = vadd.f32 0.0, %v528
        %530 = vdwg.mxu0
        %532 = vrot.lane.b32.xlu0 %v529, 8
        %v533 = vpop.permute.xlu0 %532
        %vm535 = vcmask 97344
        %536 = vst.msk [vmem:[#allocation3] sm:$0xff] %vm535, %v533
        %v537 = vld [vmem:[#allocation2] sm:$0xff]
        %539 = vrot.lane.b32.xlu0 %v537, 116
        %v540 = vpop.permute.xlu0 %539
        %541 = vrot.lane.b32.xlu0 %v537, 84
        %v542 = vpop.permute.xlu0 %541
        %v543 = vsel %vm321, %v540, 0
        %v545 = vsel %vm321, %v542, 0
        %547 = vmatpush.xpose.msra.mxu0 0.0
        %548 = vmatpush.xpose.msra.mxu0 0.0
        %549 = vmatpush.xpose.msra.mxu0 0.0
        %550 = vmatpush.xpose.msra.mxu0 0.0
        %551 = vmatpush.xpose.msra.mxu0 0.0
        %552 = vmatpush.xpose.msra.mxu0 0.0
        %553 = vmatpush.xpose.msra.mxu0 0.0
        %554 = vmatpush.xpose.msra.mxu0 0.0
        %555 = vmatpush.xpose.msra.mxu0 0.0
        %556 = vmatpush.xpose.msra.mxu0 0.0
        %557 = vmatpush.xpose.msra.mxu0 0.0
        %558 = vmatpush.xpose.msra.mxu0 0.0
        %559 = vmatpush.xpose.msra.mxu0 0.0
        %560 = vmatpush.xpose.msra.mxu0 0.0
        %561 = vmatpush.xpose.msra.mxu0 0.0
        %562 = vmatpush.xpose.msra.mxu0 %v545
        %563 = vmatmul.f32.gmra.mxu0 %v543
        %v564 = vpop.f32.mrf.mxu0
        %v565 = vadd.f32 0.0, %v564
        %566 = vdwg.mxu0
        %v567 = vsel %vm346, %v565, -inf
        %568 = vmax.xlane.f32.xlu0 %v567
        %v569 = vpop.xlane.xlu0 %568
        %v570 = vsub.f32 %v565, %v569
        %v571 = vmul.f32 %v570, 1.442695
        %v572 = vpow.pop %v571
        %v573 = vsel %vm346, %v572, 0.0
        %574 = vadd.xlane.f32.xlu0 %v573
        %v575 = vpop.xlane.xlu0 %574
        %v576 = vrcp.pop %v575
        %v577 = vmul.f32 %v572, %v576
        %v578 = vadd.f32 %v577, 0.0
        %v579 = vadd.f32 %v504, %v578
        %580 = vrot.lane.b32.xlu0 %v537, 52
        %v581 = vpop.permute.xlu0 %580
        %v584 = vsel %vm346, %v577, 0
        %586 = vmatpush.msra.mxu0 0.0
        %587 = vmatpush.msra.mxu0 0.0
        %588 = vmatpush.msra.mxu0 0.0
        %589 = vmatpush.msra.mxu0 0.0
        %590 = vmatpush.msra.mxu0 0.0
        %591 = vmatpush.msra.mxu0 0.0
        %592 = vmatpush.msra.mxu0 0.0
        %593 = vmatpush.msra.mxu0 0.0
        %594 = vmatpush.msra.mxu0 0.0
        %595 = vmatpush.msra.mxu0 0.0
        %596 = vmatpush.msra.mxu0 0.0
        %597 = vmatpush.msra.mxu0 0.0
        %598 = vmatpush.msra.mxu0 0.0
        %599 = vmatpush.msra.mxu0 0.0
        %600 = vmatpush.msra.mxu0 0.0
        %601 = vmatpush.msra.mxu0 %v581
        %602 = vmatmul.f32.gmra.mxu0 %v584
        %v603 = vpop.f32.mrf.mxu0
        %v604 = vadd.f32 0.0, %v603
        %605 = vdwg.mxu0
        %607 = vrot.lane.b32.xlu0 %v604, 12
        %v608 = vpop.permute.xlu0 %607
        %vm610 = vcmask 130144
        %611 = vst.msk [vmem:[#allocation3] sm:$0xff] %vm610, %v608
        %v612 = vld [vmem:[#allocation2] sm:$0xff]
        %614 = vrot.lane.b32.xlu0 %v612, 112
        %v615 = vpop.permute.xlu0 %614
        %616 = vrot.lane.b32.xlu0 %v612, 80
        %v617 = vpop.permute.xlu0 %616
        %v618 = vsel %vm321, %v615, 0
        %v620 = vsel %vm321, %v617, 0
        %622 = vmatpush.xpose.msra.mxu0 0.0
        %623 = vmatpush.xpose.msra.mxu0 0.0
        %624 = vmatpush.xpose.msra.mxu0 0.0
        %625 = vmatpush.xpose.msra.mxu0 0.0
        %626 = vmatpush.xpose.msra.mxu0 0.0
        %627 = vmatpush.xpose.msra.mxu0 0.0
        %628 = vmatpush.xpose.msra.mxu0 0.0
        %629 = vmatpush.xpose.msra.mxu0 0.0
        %630 = vmatpush.xpose.msra.mxu0 0.0
        %631 = vmatpush.xpose.msra.mxu0 0.0
        %632 = vmatpush.xpose.msra.mxu0 0.0
        %633 = vmatpush.xpose.msra.mxu0 0.0
        %634 = vmatpush.xpose.msra.mxu0 0.0
        %635 = vmatpush.xpose.msra.mxu0 0.0
        %636 = vmatpush.xpose.msra.mxu0 0.0
        %637 = vmatpush.xpose.msra.mxu0 %v620
        %638 = vmatmul.f32.gmra.mxu0 %v618
        %v639 = vpop.f32.mrf.mxu0
        %v640 = vadd.f32 0.0, %v639
        %641 = vdwg.mxu0
        %v642 = vsel %vm346, %v640, -inf
        %643 = vmax.xlane.f32.xlu0 %v642
        %v644 = vpop.xlane.xlu0 %643
        %v645 = vsub.f32 %v640, %v644
        %v646 = vmul.f32 %v645, 1.442695
        %v647 = vpow.pop %v646
        %v648 = vsel %vm346, %v647, 0.0
        %649 = vadd.xlane.f32.xlu0 %v648
        %v650 = vpop.xlane.xlu0 %649
        %v651 = vrcp.pop %v650
        %v652 = vmul.f32 %v647, %v651
        %v653 = vadd.f32 %v652, 0.0
        %v654 = vadd.f32 %v579, %v653
        %655 = vrot.lane.b32.xlu0 %v612, 48
        %v656 = vpop.permute.xlu0 %655
        %v659 = vsel %vm346, %v652, 0
        %661 = vmatpush.msra.mxu0 0.0
        %662 = vmatpush.msra.mxu0 0.0
        %663 = vmatpush.msra.mxu0 0.0
        %664 = vmatpush.msra.mxu0 0.0
        %665 = vmatpush.msra.mxu0 0.0
        %666 = vmatpush.msra.mxu0 0.0
        %667 = vmatpush.msra.mxu0 0.0
        %668 = vmatpush.msra.mxu0 0.0
        %669 = vmatpush.msra.mxu0 0.0
        %670 = vmatpush.msra.mxu0 0.0
        %671 = vmatpush.msra.mxu0 0.0
        %672 = vmatpush.msra.mxu0 0.0
        %673 = vmatpush.msra.mxu0 0.0
        %674 = vmatpush.msra.mxu0 0.0
        %675 = vmatpush.msra.mxu0 0.0
        %676 = vmatpush.msra.mxu0 %v656
        %677 = vmatmul.f32.gmra.mxu0 %v659
        %v678 = vpop.f32.mrf.mxu0
        %v679 = vadd.f32 0.0, %v678
        %680 = vdwg.mxu0
        %682 = vrot.lane.b32.xlu0 %v679, 16
        %v683 = vpop.permute.xlu0 %682
        %vm685 = vcmask 162944
        %686 = vst.msk [vmem:[#allocation3] sm:$0xff] %vm685, %v683
        %v687 = vld [vmem:[#allocation2] sm:$0xff]
        %689 = vrot.lane.b32.xlu0 %v687, 108
        %v690 = vpop.permute.xlu0 %689
        %691 = vrot.lane.b32.xlu0 %v687, 76
        %v692 = vpop.permute.xlu0 %691
        %v693 = vsel %vm321, %v690, 0
        %v695 = vsel %vm321, %v692, 0
        %697 = vmatpush.xpose.msra.mxu0 0.0
        %698 = vmatpush.xpose.msra.mxu0 0.0
        %699 = vmatpush.xpose.msra.mxu0 0.0
        %700 = vmatpush.xpose.msra.mxu0 0.0
        %701 = vmatpush.xpose.msra.mxu0 0.0
        %702 = vmatpush.xpose.msra.mxu0 0.0
        %703 = vmatpush.xpose.msra.mxu0 0.0
        %704 = vmatpush.xpose.msra.mxu0 0.0
        %705 = vmatpush.xpose.msra.mxu0 0.0
        %706 = vmatpush.xpose.msra.mxu0 0.0
        %707 = vmatpush.xpose.msra.mxu0 0.0
        %708 = vmatpush.xpose.msra.mxu0 0.0
        %709 = vmatpush.xpose.msra.mxu0 0.0
        %710 = vmatpush.xpose.msra.mxu0 0.0
        %711 = vmatpush.xpose.msra.mxu0 0.0
        %712 = vmatpush.xpose.msra.mxu0 %v695
        %713 = vmatmul.f32.gmra.mxu0 %v693
        %v714 = vpop.f32.mrf.mxu0
        %v715 = vadd.f32 0.0, %v714
        %716 = vdwg.mxu0
        %v717 = vsel %vm346, %v715, -inf
        %718 = vmax.xlane.f32.xlu0 %v717
        %v719 = vpop.xlane.xlu0 %718
        %v720 = vsub.f32 %v715, %v719
        %v721 = vmul.f32 %v720, 1.442695
        %v722 = vpow.pop %v721
        %v723 = vsel %vm346, %v722, 0.0
        %724 = vadd.xlane.f32.xlu0 %v723
        %v725 = vpop.xlane.xlu0 %724
        %v726 = vrcp.pop %v725
        %v727 = vmul.f32 %v722, %v726
        %v728 = vadd.f32 %v727, 0.0
        %v729 = vadd.f32 %v654, %v728
        %730 = vrot.lane.b32.xlu0 %v687, 44
        %v731 = vpop.permute.xlu0 %730
        %v734 = vsel %vm346, %v727, 0
        %736 = vmatpush.msra.mxu0 0.0
        %737 = vmatpush.msra.mxu0 0.0
        %738 = vmatpush.msra.mxu0 0.0
        %739 = vmatpush.msra.mxu0 0.0
        %740 = vmatpush.msra.mxu0 0.0
        %741 = vmatpush.msra.mxu0 0.0
        %742 = vmatpush.msra.mxu0 0.0
        %743 = vmatpush.msra.mxu0 0.0
        %744 = vmatpush.msra.mxu0 0.0
        %745 = vmatpush.msra.mxu0 0.0
        %746 = vmatpush.msra.mxu0 0.0
        %747 = vmatpush.msra.mxu0 0.0
        %748 = vmatpush.msra.mxu0 0.0
        %749 = vmatpush.msra.mxu0 0.0
        %750 = vmatpush.msra.mxu0 0.0
        %751 = vmatpush.msra.mxu0 %v731
        %752 = vmatmul.f32.gmra.mxu0 %v734
        %v753 = vpop.f32.mrf.mxu0
        %v754 = vadd.f32 0.0, %v753
        %755 = vdwg.mxu0
        %757 = vrot.lane.b32.xlu0 %v754, 20
        %v758 = vpop.permute.xlu0 %757
        %vm760 = vcmask 195744
        %761 = vst.msk [vmem:[#allocation3] sm:$0xff] %vm760, %v758
        %v762 = vld [vmem:[#allocation2] sm:$0xff]
        %764 = vrot.lane.b32.xlu0 %v762, 104
        %v765 = vpop.permute.xlu0 %764
        %766 = vrot.lane.b32.xlu0 %v762, 72
        %v767 = vpop.permute.xlu0 %766
        %v768 = vsel %vm321, %v765, 0
        %v770 = vsel %vm321, %v767, 0
        %772 = vmatpush.xpose.msra.mxu0 0.0
        %773 = vmatpush.xpose.msra.mxu0 0.0
        %774 = vmatpush.xpose.msra.mxu0 0.0
        %775 = vmatpush.xpose.msra.mxu0 0.0
        %776 = vmatpush.xpose.msra.mxu0 0.0
        %777 = vmatpush.xpose.msra.mxu0 0.0
        %778 = vmatpush.xpose.msra.mxu0 0.0
        %779 = vmatpush.xpose.msra.mxu0 0.0
        %780 = vmatpush.xpose.msra.mxu0 0.0
        %781 = vmatpush.xpose.msra.mxu0 0.0
        %782 = vmatpush.xpose.msra.mxu0 0.0
        %783 = vmatpush.xpose.msra.mxu0 0.0
        %784 = vmatpush.xpose.msra.mxu0 0.0
        %785 = vmatpush.xpose.msra.mxu0 0.0
        %786 = vmatpush.xpose.msra.mxu0 0.0
        %787 = vmatpush.xpose.msra.mxu0 %v770
        %788 = vmatmul.f32.gmra.mxu0 %v768
        %v789 = vpop.f32.mrf.mxu0
        %v790 = vadd.f32 0.0, %v789
        %791 = vdwg.mxu0
        %v792 = vsel %vm346, %v790, -inf
        %793 = vmax.xlane.f32.xlu0 %v792
        %v794 = vpop.xlane.xlu0 %793
        %v795 = vsub.f32 %v790, %v794
        %v796 = vmul.f32 %v795, 1.442695
        %v797 = vpow.pop %v796
        %v798 = vsel %vm346, %v797, 0.0
        %799 = vadd.xlane.f32.xlu0 %v798
        %v800 = vpop.xlane.xlu0 %799
        %v801 = vrcp.pop %v800
        %v802 = vmul.f32 %v797, %v801
        %v803 = vadd.f32 %v802, 0.0
        %v804 = vadd.f32 %v729, %v803
        %805 = vrot.lane.b32.xlu0 %v762, 40
        %v806 = vpop.permute.xlu0 %805
        %v809 = vsel %vm346, %v802, 0
        %811 = vmatpush.msra.mxu0 0.0
        %812 = vmatpush.msra.mxu0 0.0
        %813 = vmatpush.msra.mxu0 0.0
        %814 = vmatpush.msra.mxu0 0.0
        %815 = vmatpush.msra.mxu0 0.0
        %816 = vmatpush.msra.mxu0 0.0
        %817 = vmatpush.msra.mxu0 0.0
        %818 = vmatpush.msra.mxu0 0.0
        %819 = vmatpush.msra.mxu0 0.0
        %820 = vmatpush.msra.mxu0 0.0
        %821 = vmatpush.msra.mxu0 0.0
        %822 = vmatpush.msra.mxu0 0.0
        %823 = vmatpush.msra.mxu0 0.0
        %824 = vmatpush.msra.mxu0 0.0
        %825 = vmatpush.msra.mxu0 0.0
        %826 = vmatpush.msra.mxu0 %v806
        %827 = vmatmul.f32.gmra.mxu0 %v809
        %v828 = vpop.f32.mrf.mxu0
        %v829 = vadd.f32 0.0, %v828
        %830 = vdwg.mxu0
        %832 = vrot.lane.b32.xlu0 %v829, 24
        %v833 = vpop.permute.xlu0 %832
        %vm835 = vcmask 228544
        %836 = vst.msk [vmem:[#allocation3] sm:$0xff] %vm835, %v833
        %v837 = vld [vmem:[#allocation2] sm:$0xff]
        %839 = vrot.lane.b32.xlu0 %v837, 100
        %v840 = vpop.permute.xlu0 %839
        %841 = vrot.lane.b32.xlu0 %v837, 68
        %v842 = vpop.permute.xlu0 %841
        %v843 = vsel %vm321, %v840, 0
        %v845 = vsel %vm321, %v842, 0
        %847 = vmatpush.xpose.msra.mxu0 0.0
        %848 = vmatpush.xpose.msra.mxu0 0.0
        %849 = vmatpush.xpose.msra.mxu0 0.0
        %850 = vmatpush.xpose.msra.mxu0 0.0
        %851 = vmatpush.xpose.msra.mxu0 0.0
        %852 = vmatpush.xpose.msra.mxu0 0.0
        %853 = vmatpush.xpose.msra.mxu0 0.0
        %854 = vmatpush.xpose.msra.mxu0 0.0
        %855 = vmatpush.xpose.msra.mxu0 0.0
        %856 = vmatpush.xpose.msra.mxu0 0.0
        %857 = vmatpush.xpose.msra.mxu0 0.0
        %858 = vmatpush.xpose.msra.mxu0 0.0
        %859 = vmatpush.xpose.msra.mxu0 0.0
        %860 = vmatpush.xpose.msra.mxu0 0.0
        %861 = vmatpush.xpose.msra.mxu0 0.0
        %862 = vmatpush.xpose.msra.mxu0 %v845
        %863 = vmatmul.f32.gmra.mxu0 %v843
        %v864 = vpop.f32.mrf.mxu0
        %v865 = vadd.f32 0.0, %v864
        %866 = vdwg.mxu0
        %v867 = vsel %vm346, %v865, -inf
        %868 = vmax.xlane.f32.xlu0 %v867
        %v869 = vpop.xlane.xlu0 %868
        %v870 = vsub.f32 %v865, %v869
        %v871 = vmul.f32 %v870, 1.442695
        %v872 = vpow.pop %v871
        %v873 = vsel %vm346, %v872, 0.0
        %874 = vadd.xlane.f32.xlu0 %v873
        %v875 = vpop.xlane.xlu0 %874
        %v876 = vrcp.pop %v875
        %v877 = vmul.f32 %v872, %v876
        %v878 = vadd.f32 %v877, 0.0
        %v879 = vadd.f32 %v804, %v878
        %880 = vrot.lane.b32.xlu0 %v837, 36
        %v881 = vpop.permute.xlu0 %880
        %v884 = vsel %vm346, %v877, 0
        %886 = vmatpush.msra.mxu0 0.0
        %887 = vmatpush.msra.mxu0 0.0
        %888 = vmatpush.msra.mxu0 0.0
        %889 = vmatpush.msra.mxu0 0.0
        %890 = vmatpush.msra.mxu0 0.0
        %891 = vmatpush.msra.mxu0 0.0
        %892 = vmatpush.msra.mxu0 0.0
        %893 = vmatpush.msra.mxu0 0.0
        %894 = vmatpush.msra.mxu0 0.0
        %895 = vmatpush.msra.mxu0 0.0
        %896 = vmatpush.msra.mxu0 0.0
        %897 = vmatpush.msra.mxu0 0.0
        %898 = vmatpush.msra.mxu0 0.0
        %899 = vmatpush.msra.mxu0 0.0
        %900 = vmatpush.msra.mxu0 0.0
        %901 = vmatpush.msra.mxu0 %v881
        %902 = vmatmul.f32.gmra.mxu0 %v884
        %v903 = vpop.f32.mrf.mxu0
        %v904 = vadd.f32 0.0, %v903
        %905 = vdwg.mxu0
        %907 = vrot.lane.b32.xlu0 %v904, 28
        %v908 = vpop.permute.xlu0 %907
        %vm910 = vcmask 261344
        %911 = vst.msk [vmem:[#allocation3] sm:$0xff] %vm910, %v908
        %v912 = vld [vmem:[#allocation3] sm:$0xff]
        %v913 = vld [vmem:[#allocation9] sm:$0xff]
        %v914 = vld [vmem:[#allocation9 + $0x8] sm:$0xff]
        %v915 = vld [vmem:[#allocation9 + $0x10] sm:$0xff]
        %v916 = vld [vmem:[#allocation9 + $0x18] sm:$0xff]
        %v917 = vld [vmem:[%s3] sm:$0x1]
        %v919 = vperm.slane %v917, 0
        %v922 = vsel %vm291, %v912, 0
        %924 = vmatpush.msra.mxu0 0.0
        %925 = vmatpush.msra.mxu0 0.0
        %926 = vmatpush.msra.mxu0 0.0
        %927 = vmatpush.msra.mxu0 0.0
        %928 = vmatpush.msra.mxu0 0.0
        %929 = vmatpush.msra.mxu0 0.0
        %930 = vmatpush.msra.mxu0 0.0
        %931 = vmatpush.msra.mxu0 0.0
        %932 = vmatpush.msra.mxu0 0.0
        %933 = vmatpush.msra.mxu0 0.0
        %934 = vmatpush.msra.mxu0 0.0
        %935 = vmatpush.msra.mxu0 0.0
        %936 = vmatpush.msra.mxu0 %v916
        %937 = vmatpush.msra.mxu0 %v915
        %938 = vmatpush.msra.mxu0 %v914
        %939 = vmatpush.msra.mxu0 %v913
        %940 = vmatmul.f32.gmra.mxu0 %v922
        %v941 = vpop.f32.mrf.mxu0
        %v942 = vadd.f32 %v919, %v941
        %943 = vdwg.mxu0
        %944 = vst.msk [vmem:[%s278] sm:$0xff] %vm291, %v942
        %945 = vst.msk [vmem:[%s285] sm:$0xff] %vm346, %v879
        %s946 = sand.u32 %s124, 1
        %s947 = scalar_lea.sflag [#allocation6], %s946
        %s948 = sand.u32 %s124, 1
        %s949 = smul.addr %s948, 8
        %s950 = scalar_lea.vmem [#allocation10], %s949
        %s951 = sand.u32 %s150, 1
        %s952 = scalar_lea.sflag [#allocation12], %s951
        %s953 = sand.u32 %s150, 1
        %s954 = smul.addr %s953, 8
        %s955 = scalar_lea.vmem [#allocation11], %s954
        // Predicated region
        $region49: #{tpu_custom_call.1} parent=35 // pred_check
          %p956 = pneg %p134
        $region50: #{tpu_custom_call.1} parent=35 // pred_check_branch
          %958 = sbr.rel (%p956) target = $region52
        $region51: #{tpu_custom_call.1} parent=35 // pred_region
          %960 = vsyncadd %s947, 0
          %s961 = smul.addr %s27, 8
          %s962 = scalar_lea.hbm %s4, %s961
          %s964 = sshll.u32 %s950, 4
          %s965 = int_to_ptr.vmem [resolvable:$true] %s964
          %s966 = sshll.u32 %s962, 4
          %s967 = int_to_ptr.hbm [resolvable:$true] %s966
          %969 = dma.vmem_to_hbm [thread:$0]  %s965, 128, %s967, %s947
        $region52: #{tpu_custom_call.1} parent=35 // pred_fallthru
          _
        // Predicated region
        $region53: #{tpu_custom_call.1} parent=35 // pred_check
          %p970 = pneg %p160
        $region54: #{tpu_custom_call.1} parent=35 // pred_check_branch
          %972 = sbr.rel (%p970) target = $region56
        $region55: #{tpu_custom_call.1} parent=35 // pred_region
          %974 = vsyncadd %s952, 0
          %s975 = smul.addr %s27, 8
          %s976 = scalar_lea.hbm %s5, %s975
          %s978 = sshll.u32 %s955, 4
          %s979 = int_to_ptr.vmem [resolvable:$true] %s978
          %s980 = sshll.u32 %s976, 4
          %s981 = int_to_ptr.hbm [resolvable:$true] %s980
          %983 = dma.vmem_to_hbm [thread:$0]  %s979, 128, %s981, %s952
        $region56: #{tpu_custom_call.1} parent=35 // pred_fallthru
          _
      $region36: #{tpu_custom_call.1} parent=5 // pred_fallthru
        _
      %p984 = scmp.le.s32.totalorder 2, %s22
      // Predicated region
      $region57: #{tpu_custom_call.1} parent=5 // pred_check
        %p985 = pneg %p984
      $region58: #{tpu_custom_call.1} parent=5 // pred_check_branch
        %987 = sbr.rel (%p985) target = $region60
      $region59: #{tpu_custom_call.1} parent=5 // pred_region
        %s988 = ssub.s32 %s22, 2
        // Predicated region
        $region61: #{tpu_custom_call.1} parent=59 // pred_check
          %p989 = pneg %p140
        $region62: #{tpu_custom_call.1} parent=59 // pred_check_branch
          %991 = sbr.rel (%p989) target = $region64
        $region63: #{tpu_custom_call.1} parent=59 // pred_region
          %s992 = sand.u32 %s125, 1
          %s993 = scalar_lea.sflag [#allocation6], %s992
          %s994 = sand.u32 %s125, 1
          %s995 = smul.addr %s994, 8
          %s996 = scalar_lea.vmem [#allocation10], %s995
          %998 = dma.done %s993, 128
        $region64: #{tpu_custom_call.1} parent=59 // pred_fallthru
          _
        // Predicated region
        $region65: #{tpu_custom_call.1} parent=59 // pred_check
          %p999 = pneg %p166
        $region66: #{tpu_custom_call.1} parent=59 // pred_check_branch
          %1001 = sbr.rel (%p999) target = $region68
        $region67: #{tpu_custom_call.1} parent=59 // pred_region
          %s1002 = sand.u32 %s151, 1
          %s1003 = scalar_lea.sflag [#allocation12], %s1002
          %s1004 = sand.u32 %s151, 1
          %s1005 = smul.addr %s1004, 8
          %s1006 = scalar_lea.vmem [#allocation11], %s1005
          %1008 = dma.done %s1003, 128
        $region68: #{tpu_custom_call.1} parent=59 // pred_fallthru
          _
      $region60: #{tpu_custom_call.1} parent=5 // pred_fallthru
        _
    $region6: #{tpu_custom_call.1} parent=1 // loop_footer
      %s26 = sadd.s32 1, %s22
    $region7: #{tpu_custom_call.1} parent=1 // loop_footer_branch
      %21 = sbr.rel target = $region3
    $region8: #{tpu_custom_call.1} parent=1 // loop_exit
      _
    %1009 = vsyncpa [#allocation5], 1
    %s1010 = scalar_lea.sflag [#allocation5], 1
    %1011 = vsyncpa %s1010, 1
    %1012 = vsyncpa [#allocation8], 1
    %1013 = vsyncpa [#allocation6], 1
    %s1014 = scalar_lea.sflag [#allocation6], 1
    %1015 = vsyncpa %s1014, 1
    %1016 = vsyncpa [#allocation12], 1
    %s1017 = scalar_lea.sflag [#allocation12], 1
    %1018 = vsyncpa %s1017, 1

</llo_original>
